<compile_context>
chip_gen: v7x
topology: tpu7x:2x2x1
jax: 0.10.0
libtpu: 0.0.40
codegen_flags: <defaults>
</compile_context>

<pallas_src>
import functools

import jax
import jax.numpy as jnp
import numpy as np
from jax.experimental import pallas as pl
from jax.experimental.pallas import tpu as pltpu


def _make_psablock_kernel(H, W, C, num_heads, key_dim, head_dim, shortcut):
    N = H * W
    Dq = num_heads * key_dim
    scale = float(key_dim) ** -0.5

    def kernel(x_ref, wqkv_ref, bqkv_ref, wpe_ref, bpe_ref,
               wproj_ref, bproj_ref, w1_ref, b1_ref, w2_ref, b2_ref,
               out_ref, pad_ref):
        # (1, H, W, C) -> flattened tokens (N, C); C stays the lane dim.
        xf = x_ref[0].reshape(N, C).astype(jnp.float32)

        # ---- Attention.qkv : 1x1 conv + folded BN (act=False) ---------------
        # weight columns were permuted wrapper-side to [Q_all | K_all | V_all].
        qkv = jnp.dot(xf, wqkv_ref[...], preferred_element_type=jnp.float32)
        qkv = qkv + bqkv_ref[...]

        q_all = qkv[:, :Dq]
        k_all = qkv[:, Dq:2 * Dq]
        v_all = qkv[:, 2 * Dq:]          # (N, C), channel = head*head_dim + d

        # ---- multi-head self-attention (whole sequence resident in VMEM) ----
        heads = []
        for h_i in range(num_heads):
            q_h = q_all[:, h_i * key_dim:(h_i + 1) * key_dim]
            k_h = k_all[:, h_i * key_dim:(h_i + 1) * key_dim]
            v_h = v_all[:, h_i * head_dim:(h_i + 1) * head_dim]
            s = jnp.dot(q_h, k_h.T, preferred_element_type=jnp.float32) * scale
            p = jax.nn.softmax(s, axis=-1)
            heads.append(jnp.dot(p, v_h, preferred_element_type=jnp.float32))
        attended = jnp.concatenate(heads, axis=-1)            # (N, C)

        # ---- Attention.pe : depthwise 3x3 conv + folded BN on V -------------
        pad_ref[...] = jnp.zeros_like(pad_ref)
        pad_ref[1:H + 1, 1:W + 1, :] = v_all.reshape(H, W, C)
        pe = jnp.zeros((H, W, C), jnp.float32)
        for dy in range(3):
            for dx in range(3):
                tap = wpe_ref[dy * 3 + dx, :].reshape(1, 1, C)
                pe = pe + pad_ref[dy:dy + H, dx:dx + W, :] * tap

        att = attended + pe.reshape(N, C) + bpe_ref[...]

        # ---- Attention.proj : 1x1 conv + folded BN (act=False) --------------
        proj = jnp.dot(att, wproj_ref[...], preferred_element_type=jnp.float32)
        proj = proj + bproj_ref[...]

        y = xf + proj if shortcut else proj                   # PSABlock res #1

        # ---- FFN : Conv1x1+BN+SiLU -> Conv1x1+BN (act=False) ----------------
        f = jnp.dot(y, w1_ref[...], preferred_element_type=jnp.float32)
        f = f + b1_ref[...]
        f = f * jax.nn.sigmoid(f)                             # SiLU
        f = jnp.dot(f, w2_ref[...], preferred_element_type=jnp.float32)
        f = f + b2_ref[...]

        out = y + f if shortcut else f                        # PSABlock res #2
        out_ref[...] = out.reshape(1, H, W, C).astype(out_ref.dtype)

    return kernel


@functools.partial(jax.jit, static_argnames=("num_heads", "shortcut"))
def psablock_forward(x, params, num_heads=4, shortcut=True):
    """PSABlock forward.  x: (B, H, W, C) NHWC (PyTorch reference is NCHW)."""
    B, H, W, C = x.shape
    head_dim = C // num_heads
    h_total = params["wqkv"].shape[1]
    key_dim = (h_total - C) // (2 * num_heads)
    per = 2 * key_dim + head_dim

    # ---- wrapper-side layout plumbing (one-time, cheap XLA ops) -------------
    # Permute qkv output channels from per-head interleaved [q|k|v] (PyTorch
    # view/split order) to [Q_all | K_all | V_all]; V then already has the
    # (head*head_dim + d) channel layout needed by `pe` and the output view.
    perm = []
    for off, width in ((0, key_dim), (key_dim, key_dim), (2 * key_dim, head_dim)):
        for h_i in range(num_heads):
            perm.extend(range(h_i * per + off, h_i * per + off + width))
    perm = np.asarray(perm, dtype=np.int32)

    wqkv = jnp.asarray(params["wqkv"], jnp.float32)[:, perm]
    bqkv = jnp.asarray(params["bqkv"], jnp.float32)[perm].reshape(1, h_total)
    wpe = jnp.asarray(params["wpe"], jnp.float32).reshape(9, C)
    bpe = jnp.asarray(params["bpe"], jnp.float32).reshape(1, C)
    wproj = jnp.asarray(params["wproj"], jnp.float32)
    bproj = jnp.asarray(params["bproj"], jnp.float32).reshape(1, C)
    w1 = jnp.asarray(params["w1"], jnp.float32)
    b1 = jnp.asarray(params["b1"], jnp.float32).reshape(1, 2 * C)
    w2 = jnp.asarray(params["w2"], jnp.float32)
    b2 = jnp.asarray(params["b2"], jnp.float32).reshape(1, C)

    kernel = _make_psablock_kernel(H, W, C, num_heads, key_dim, head_dim,
                                   shortcut)
    full2d = lambda n: (0, 0)

    return pl.pallas_call(
        kernel,
        out_shape=jax.ShapeDtypeStruct((B, H, W, C), x.dtype),
        grid=(B,),
        in_specs=[
            pl.BlockSpec((1, H, W, C), lambda n: (n, 0, 0, 0)),
            pl.BlockSpec((C, h_total), full2d),
            pl.BlockSpec((1, h_total), full2d),
            pl.BlockSpec((9, C), full2d),
            pl.BlockSpec((1, C), full2d),
            pl.BlockSpec((C, C), full2d),
            pl.BlockSpec((1, C), full2d),
            pl.BlockSpec((C, 2 * C), full2d),
            pl.BlockSpec((1, 2 * C), full2d),
            pl.BlockSpec((2 * C, C), full2d),
            pl.BlockSpec((1, C), full2d),
        ],
        out_specs=pl.BlockSpec((1, H, W, C), lambda n: (n, 0, 0, 0)),
        scratch_shapes=[pltpu.VMEM((H + 2, W + 2, C), jnp.float32)],
        compiler_params=pltpu.CompilerParams(
            dimension_semantics=("parallel",)),
    )(x, wqkv, bqkv, wpe, bpe, wproj, bproj, w1, b1, w2, b2)


# ------------------------------- reference ----------------------------------
def _reference_forward(x, params, num_heads=4, shortcut=True):
    """Pure-JAX PSABlock reference (NHWC), following PyTorch semantics."""
    B, H, W, C = x.shape
    N = H * W
    head_dim = C // num_heads
    h_total = params["wqkv"].shape[1]
    key_dim = (h_total - C) // (2 * num_heads)
    per = 2 * key_dim + head_dim
    scale = key_dim ** -0.5

    xf = x.reshape(B, N, C)
    qkv = xf @ params["wqkv"] + params["bqkv"]               # (B, N, h)
    qkv_t = jnp.transpose(qkv, (0, 2, 1)).reshape(B, num_heads, per, N)
    q = qkv_t[:, :, :key_dim, :]
    k = qkv_t[:, :, key_dim:2 * key_dim, :]
    v = qkv_t[:, :, 2 * key_dim:, :]                         # (B, nh, hd, N)

    attn = jnp.einsum("bhdn,bhdm->bhnm", q, k) * scale
    attn = jax.nn.softmax(attn, axis=-1)
    out = jnp.einsum("bhdm,bhnm->bhdn", v, attn)             # (B, nh, hd, N)
    out_nhwc = jnp.transpose(out.reshape(B, C, H, W), (0, 2, 3, 1))
    v_nhwc = jnp.transpose(v.reshape(B, C, H, W), (0, 2, 3, 1))

    wpe = params["wpe"].reshape(3, 3, 1, C)                  # depthwise HWIO
    pe = jax.lax.conv_general_dilated(
        v_nhwc, wpe, window_strides=(1, 1), padding="SAME",
        dimension_numbers=("NHWC", "HWIO", "NHWC"),
        feature_group_count=C) + params["bpe"]

    att = (out_nhwc + pe).reshape(B, N, C)
    proj = (att @ params["wproj"] + params["bproj"]).reshape(B, H, W, C)

    y = x + proj if shortcut else proj

    f = y.reshape(B, N, C) @ params["w1"] + params["b1"]
    f = f * jax.nn.sigmoid(f)
    f = (f @ params["w2"] + params["b2"]).reshape(B, H, W, C)
    return y + f if shortcut else f


# ------------------------------ parameters -----------------------------------
def _fold_bn(w, gamma, beta, mean, var, eps=1e-3):
    """Fold BatchNorm2d (inference, ultralytics eps=1e-3) into weight/bias."""
    scale = gamma / jnp.sqrt(var + eps)
    return w * scale, beta - mean * scale


def init_psablock_params(key, c, num_heads=4, attn_ratio=0.5):
    """Deterministic synthetic parameters matching PSABlock(c, ...)."""
    head_dim = c // num_heads
    key_dim = int(head_dim * attn_ratio)
    h = c + 2 * num_heads * key_dim

    def conv_bn(k, cout, wshape):
        kw, k1, k2, k3, k4 = jax.random.split(k, 5)
        w = 0.1 * jax.random.normal(kw, wshape, jnp.float32)
        gamma = 1.0 + 0.1 * jax.random.normal(k1, (cout,), jnp.float32)
        beta = 0.1 * jax.random.normal(k2, (cout,), jnp.float32)
        mean = 0.1 * jax.random.normal(k3, (cout,), jnp.float32)
        var = jnp.abs(jax.random.normal(k4, (cout,), jnp.float32)) + 0.5
        return _fold_bn(w, gamma, beta, mean, var)

    ks = jax.random.split(key, 5)
    wqkv, bqkv = conv_bn(ks[0], h, (c, h))            # 1x1 conv as (Cin, Cout)
    wpe, bpe = conv_bn(ks[1], c, (3, 3, c))           # depthwise 3x3, per-chan
    wproj, bproj = conv_bn(ks[2], c, (c, c))
    w1, b1 = conv_bn(ks[3], 2 * c, (c, 2 * c))
    w2, b2 = conv_bn(ks[4], c, (2 * c, c))
    return dict(wqkv=wqkv, bqkv=bqkv, wpe=wpe, bpe=bpe, wproj=wproj,
                bproj=bproj, w1=w1, b1=b1, w2=w2, b2=b2)


if __name__ == "__main__":
    # PSABlock(c=128, attn_ratio=0.5, num_heads=4, shortcut=True) on a small
    # 8x8 feature map: head_dim=32, key_dim=16, qkv width h=256, N=64 tokens.
    B, H, W, C = 2, 8, 8, 128
    NUM_HEADS = 4

    key = jax.random.PRNGKey(0)
    kx, kp = jax.random.split(key)
    x = jax.random.normal(kx, (B, H, W, C), jnp.float32)   # layout: NHWC
    params = init_psablock_params(kp, C, num_heads=NUM_HEADS, attn_ratio=0.5)

    out = psablock_forward(x, params, num_heads=NUM_HEADS, shortcut=True)
    out = jax.block_until_ready(out)

    ref = _reference_forward(x, params, num_heads=NUM_HEADS, shortcut=True)
    np.testing.assert_allclose(np.asarray(out), np.asarray(ref),
                               rtol=1e-3, atol=1e-3)

    print("KERNEL_OK")
</pallas_src>

<mosaic_0001>
module attributes {stable_mosaic.version = 11 : i64} {
  func.func @kernel(%arg0: i32, %arg1: memref<1x8x8x128xf32, #tpu.memory_space<vmem>>, %arg2: memref<128x256xf32, #tpu.memory_space<vmem>>, %arg3: memref<1x256xf32, #tpu.memory_space<vmem>>, %arg4: memref<9x128xf32, #tpu.memory_space<vmem>>, %arg5: memref<1x128xf32, #tpu.memory_space<vmem>>, %arg6: memref<128x128xf32, #tpu.memory_space<vmem>>, %arg7: memref<1x128xf32, #tpu.memory_space<vmem>>, %arg8: memref<128x256xf32, #tpu.memory_space<vmem>>, %arg9: memref<1x256xf32, #tpu.memory_space<vmem>>, %arg10: memref<256x128xf32, #tpu.memory_space<vmem>>, %arg11: memref<1x128xf32, #tpu.memory_space<vmem>>, %arg12: memref<1x8x8x128xf32, #tpu.memory_space<vmem>>, %arg13: memref<10x10x128xf32, #tpu.memory_space<vmem>>) attributes {dimension_semantics = [#tpu.dimension_semantics<parallel>], iteration_bounds = array<i64: 2>, scalar_prefetch = 0 : i64, scratch_operands = 1 : i64, tpu.core_type = #tpu.core_type<tc>, window_params = [{transform_indices = @transform_0, window_bounds = array<i64: 1, 8, 8, 128>}, {pipeline_mode = #tpu.pipeline_mode<synchronous>, transform_indices = @transform_1, window_bounds = array<i64: 128, 256>}, {pipeline_mode = #tpu.pipeline_mode<synchronous>, transform_indices = @transform_2, window_bounds = array<i64: 1, 256>}, {pipeline_mode = #tpu.pipeline_mode<synchronous>, transform_indices = @transform_3, window_bounds = array<i64: 9, 128>}, {pipeline_mode = #tpu.pipeline_mode<synchronous>, transform_indices = @transform_4, window_bounds = array<i64: 1, 128>}, {pipeline_mode = #tpu.pipeline_mode<synchronous>, transform_indices = @transform_5, window_bounds = array<i64: 128, 128>}, {pipeline_mode = #tpu.pipeline_mode<synchronous>, transform_indices = @transform_6, window_bounds = array<i64: 1, 128>}, {pipeline_mode = #tpu.pipeline_mode<synchronous>, transform_indices = @transform_7, window_bounds = array<i64: 128, 256>}, {pipeline_mode = #tpu.pipeline_mode<synchronous>, transform_indices = @transform_8, window_bounds = array<i64: 1, 256>}, {pipeline_mode = #tpu.pipeline_mode<synchronous>, transform_indices = @transform_9, window_bounds = array<i64: 256, 128>}, {pipeline_mode = #tpu.pipeline_mode<synchronous>, transform_indices = @transform_10, window_bounds = array<i64: 1, 128>}, {transform_indices = @transform_11, window_bounds = array<i64: 1, 8, 8, 128>}]} {
    %c0 = arith.constant 0 : index
    %c0_0 = arith.constant 0 : index
    %c0_1 = arith.constant 0 : index
    %c0_2 = arith.constant 0 : index
    %0 = vector.load %arg1[%c0, %c0_0, %c0_1, %c0_2] : memref<1x8x8x128xf32, #tpu.memory_space<vmem>>, vector<1x8x8x128xf32>
    %1 = vector.shape_cast %0 : vector<1x8x8x128xf32> to vector<8x8x128xf32>
    %2 = vector.shape_cast %1 : vector<8x8x128xf32> to vector<64x128xf32>
    %c0_3 = arith.constant 0 : index
    %c0_4 = arith.constant 0 : index
    %3 = vector.load %arg2[%c0_3, %c0_4] : memref<128x256xf32, #tpu.memory_space<vmem>>, vector<128x256xf32>
    %cst = arith.constant dense<0.000000e+00> : vector<64x256xf32>
    %4 = tpu.matmul %2, %3, %cst {dimension_numbers = #tpu.dot_dimension_numbers<[1], [0], [0], [1], [0, 0, 1, 1], [], []>} : vector<64x128xf32>, vector<128x256xf32>, vector<64x256xf32> -> vector<64x256xf32>
    %c0_5 = arith.constant 0 : index
    %c0_6 = arith.constant 0 : index
    %5 = vector.load %arg3[%c0_5, %c0_6] : memref<1x256xf32, #tpu.memory_space<vmem>>, vector<1x256xf32>
    %6 = vector.broadcast %5 : vector<1x256xf32> to vector<64x256xf32>
    %7 = arith.addf %4, %6 : vector<64x256xf32>
    %8 = vector.extract_strided_slice %7 {offsets = [0, 0], sizes = [64, 64], strides = [1, 1]} : vector<64x256xf32> to vector<64x64xf32>
    %9 = vector.extract_strided_slice %7 {offsets = [0, 64], sizes = [64, 64], strides = [1, 1]} : vector<64x256xf32> to vector<64x64xf32>
    %10 = vector.extract_strided_slice %7 {offsets = [0, 128], sizes = [64, 128], strides = [1, 1]} : vector<64x256xf32> to vector<64x128xf32>
    %11 = vector.extract_strided_slice %8 {offsets = [0, 0], sizes = [64, 16], strides = [1, 1]} : vector<64x64xf32> to vector<64x16xf32>
    %12 = vector.extract_strided_slice %9 {offsets = [0, 0], sizes = [64, 16], strides = [1, 1]} : vector<64x64xf32> to vector<64x16xf32>
    %13 = vector.extract_strided_slice %10 {offsets = [0, 0], sizes = [64, 32], strides = [1, 1]} : vector<64x128xf32> to vector<64x32xf32>
    %14 = tpu.transpose %12, [1, 0] : vector<64x16xf32> -> vector<16x64xf32>
    %cst_7 = arith.constant dense<0.000000e+00> : vector<64x64xf32>
    %15 = tpu.matmul %11, %14, %cst_7 {dimension_numbers = #tpu.dot_dimension_numbers<[1], [0], [0], [1], [0, 0, 1, 1], [], []>} : vector<64x16xf32>, vector<16x64xf32>, vector<64x64xf32> -> vector<64x64xf32>
    %cst_8 = arith.constant 2.500000e-01 : f32
    %16 = vector.broadcast %cst_8 : f32 to vector<64x64xf32>
    %17 = arith.mulf %15, %16 : vector<64x64xf32>
    %cst_9 = arith.constant dense<0xFF800000> : vector<64xf32>
    %18 = vector.multi_reduction <maximumf>, %17, %cst_9 [1] : vector<64x64xf32> to vector<64xf32>
    %cst_10 = arith.constant 0xFF800000 : f32
    %19 = vector.broadcast %cst_10 : f32 to vector<64xf32>
    %20 = arith.maximumf %19, %18 : vector<64xf32>
    %21 = vector.shape_cast %20 : vector<64xf32> to vector<64x1xf32>
    %22 = vector.broadcast %21 : vector<64x1xf32> to vector<64x64xf32>
    %23 = arith.subf %17, %22 : vector<64x64xf32>
    %24 = math.exp %23 : vector<64x64xf32>
    %cst_11 = arith.constant dense<0.000000e+00> : vector<64xf32>
    %25 = vector.multi_reduction <add>, %24, %cst_11 [1] : vector<64x64xf32> to vector<64xf32>
    %26 = vector.shape_cast %25 : vector<64xf32> to vector<64x1xf32>
    %27 = vector.broadcast %26 : vector<64x1xf32> to vector<64x64xf32>
    %28 = arith.divf %24, %27 : vector<64x64xf32>
    %cst_12 = arith.constant dense<0.000000e+00> : vector<64x32xf32>
    %29 = tpu.matmul %28, %13, %cst_12 {dimension_numbers = #tpu.dot_dimension_numbers<[1], [0], [0], [1], [0, 0, 1, 1], [], []>} : vector<64x64xf32>, vector<64x32xf32>, vector<64x32xf32> -> vector<64x32xf32>
    %30 = vector.extract_strided_slice %8 {offsets = [0, 16], sizes = [64, 16], strides = [1, 1]} : vector<64x64xf32> to vector<64x16xf32>
    %31 = vector.extract_strided_slice %9 {offsets = [0, 16], sizes = [64, 16], strides = [1, 1]} : vector<64x64xf32> to vector<64x16xf32>
    %32 = vector.extract_strided_slice %10 {offsets = [0, 32], sizes = [64, 32], strides = [1, 1]} : vector<64x128xf32> to vector<64x32xf32>
    %33 = tpu.transpose %31, [1, 0] : vector<64x16xf32> -> vector<16x64xf32>
    %cst_13 = arith.constant dense<0.000000e+00> : vector<64x64xf32>
    %34 = tpu.matmul %30, %33, %cst_13 {dimension_numbers = #tpu.dot_dimension_numbers<[1], [0], [0], [1], [0, 0, 1, 1], [], []>} : vector<64x16xf32>, vector<16x64xf32>, vector<64x64xf32> -> vector<64x64xf32>
    %cst_14 = arith.constant 2.500000e-01 : f32
    %35 = vector.broadcast %cst_14 : f32 to vector<64x64xf32>
    %36 = arith.mulf %34, %35 : vector<64x64xf32>
    %cst_15 = arith.constant dense<0xFF800000> : vector<64xf32>
    %37 = vector.multi_reduction <maximumf>, %36, %cst_15 [1] : vector<64x64xf32> to vector<64xf32>
    %cst_16 = arith.constant 0xFF800000 : f32
    %38 = vector.broadcast %cst_16 : f32 to vector<64xf32>
    %39 = arith.maximumf %38, %37 : vector<64xf32>
    %40 = vector.shape_cast %39 : vector<64xf32> to vector<64x1xf32>
    %41 = vector.broadcast %40 : vector<64x1xf32> to vector<64x64xf32>
    %42 = arith.subf %36, %41 : vector<64x64xf32>
    %43 = math.exp %42 : vector<64x64xf32>
    %cst_17 = arith.constant dense<0.000000e+00> : vector<64xf32>
    %44 = vector.multi_reduction <add>, %43, %cst_17 [1] : vector<64x64xf32> to vector<64xf32>
    %45 = vector.shape_cast %44 : vector<64xf32> to vector<64x1xf32>
    %46 = vector.broadcast %45 : vector<64x1xf32> to vector<64x64xf32>
    %47 = arith.divf %43, %46 : vector<64x64xf32>
    %cst_18 = arith.constant dense<0.000000e+00> : vector<64x32xf32>
    %48 = tpu.matmul %47, %32, %cst_18 {dimension_numbers = #tpu.dot_dimension_numbers<[1], [0], [0], [1], [0, 0, 1, 1], [], []>} : vector<64x64xf32>, vector<64x32xf32>, vector<64x32xf32> -> vector<64x32xf32>
    %49 = vector.extract_strided_slice %8 {offsets = [0, 32], sizes = [64, 16], strides = [1, 1]} : vector<64x64xf32> to vector<64x16xf32>
    %50 = vector.extract_strided_slice %9 {offsets = [0, 32], sizes = [64, 16], strides = [1, 1]} : vector<64x64xf32> to vector<64x16xf32>
    %51 = vector.extract_strided_slice %10 {offsets = [0, 64], sizes = [64, 32], strides = [1, 1]} : vector<64x128xf32> to vector<64x32xf32>
    %52 = tpu.transpose %50, [1, 0] : vector<64x16xf32> -> vector<16x64xf32>
    %cst_19 = arith.constant dense<0.000000e+00> : vector<64x64xf32>
    %53 = tpu.matmul %49, %52, %cst_19 {dimension_numbers = #tpu.dot_dimension_numbers<[1], [0], [0], [1], [0, 0, 1, 1], [], []>} : vector<64x16xf32>, vector<16x64xf32>, vector<64x64xf32> -> vector<64x64xf32>
    %cst_20 = arith.constant 2.500000e-01 : f32
    %54 = vector.broadcast %cst_20 : f32 to vector<64x64xf32>
    %55 = arith.mulf %53, %54 : vector<64x64xf32>
    %cst_21 = arith.constant dense<0xFF800000> : vector<64xf32>
    %56 = vector.multi_reduction <maximumf>, %55, %cst_21 [1] : vector<64x64xf32> to vector<64xf32>
    %cst_22 = arith.constant 0xFF800000 : f32
    %57 = vector.broadcast %cst_22 : f32 to vector<64xf32>
    %58 = arith.maximumf %57, %56 : vector<64xf32>
    %59 = vector.shape_cast %58 : vector<64xf32> to vector<64x1xf32>
    %60 = vector.broadcast %59 : vector<64x1xf32> to vector<64x64xf32>
    %61 = arith.subf %55, %60 : vector<64x64xf32>
    %62 = math.exp %61 : vector<64x64xf32>
    %cst_23 = arith.constant dense<0.000000e+00> : vector<64xf32>
    %63 = vector.multi_reduction <add>, %62, %cst_23 [1] : vector<64x64xf32> to vector<64xf32>
    %64 = vector.shape_cast %63 : vector<64xf32> to vector<64x1xf32>
    %65 = vector.broadcast %64 : vector<64x1xf32> to vector<64x64xf32>
    %66 = arith.divf %62, %65 : vector<64x64xf32>
    %cst_24 = arith.constant dense<0.000000e+00> : vector<64x32xf32>
    %67 = tpu.matmul %66, %51, %cst_24 {dimension_numbers = #tpu.dot_dimension_numbers<[1], [0], [0], [1], [0, 0, 1, 1], [], []>} : vector<64x64xf32>, vector<64x32xf32>, vector<64x32xf32> -> vector<64x32xf32>
    %68 = vector.extract_strided_slice %8 {offsets = [0, 48], sizes = [64, 16], strides = [1, 1]} : vector<64x64xf32> to vector<64x16xf32>
    %69 = vector.extract_strided_slice %9 {offsets = [0, 48], sizes = [64, 16], strides = [1, 1]} : vector<64x64xf32> to vector<64x16xf32>
    %70 = vector.extract_strided_slice %10 {offsets = [0, 96], sizes = [64, 32], strides = [1, 1]} : vector<64x128xf32> to vector<64x32xf32>
    %71 = tpu.transpose %69, [1, 0] : vector<64x16xf32> -> vector<16x64xf32>
    %cst_25 = arith.constant dense<0.000000e+00> : vector<64x64xf32>
    %72 = tpu.matmul %68, %71, %cst_25 {dimension_numbers = #tpu.dot_dimension_numbers<[1], [0], [0], [1], [0, 0, 1, 1], [], []>} : vector<64x16xf32>, vector<16x64xf32>, vector<64x64xf32> -> vector<64x64xf32>
    %cst_26 = arith.constant 2.500000e-01 : f32
    %73 = vector.broadcast %cst_26 : f32 to vector<64x64xf32>
    %74 = arith.mulf %72, %73 : vector<64x64xf32>
    %cst_27 = arith.constant dense<0xFF800000> : vector<64xf32>
    %75 = vector.multi_reduction <maximumf>, %74, %cst_27 [1] : vector<64x64xf32> to vector<64xf32>
    %cst_28 = arith.constant 0xFF800000 : f32
    %76 = vector.broadcast %cst_28 : f32 to vector<64xf32>
    %77 = arith.maximumf %76, %75 : vector<64xf32>
    %78 = vector.shape_cast %77 : vector<64xf32> to vector<64x1xf32>
    %79 = vector.broadcast %78 : vector<64x1xf32> to vector<64x64xf32>
    %80 = arith.subf %74, %79 : vector<64x64xf32>
    %81 = math.exp %80 : vector<64x64xf32>
    %cst_29 = arith.constant dense<0.000000e+00> : vector<64xf32>
    %82 = vector.multi_reduction <add>, %81, %cst_29 [1] : vector<64x64xf32> to vector<64xf32>
    %83 = vector.shape_cast %82 : vector<64xf32> to vector<64x1xf32>
    %84 = vector.broadcast %83 : vector<64x1xf32> to vector<64x64xf32>
    %85 = arith.divf %81, %84 : vector<64x64xf32>
    %cst_30 = arith.constant dense<0.000000e+00> : vector<64x32xf32>
    %86 = tpu.matmul %85, %70, %cst_30 {dimension_numbers = #tpu.dot_dimension_numbers<[1], [0], [0], [1], [0, 0, 1, 1], [], []>} : vector<64x64xf32>, vector<64x32xf32>, vector<64x32xf32> -> vector<64x32xf32>
    %87 = tpu.concatenate %29, %48, %67, %86 in 1 : vector<64x32xf32>, vector<64x32xf32>, vector<64x32xf32>, vector<64x32xf32> -> vector<64x128xf32>
    %cst_31 = arith.constant 0.000000e+00 : f32
    %88 = vector.broadcast %cst_31 : f32 to vector<10x10x128xf32>
    %c0_32 = arith.constant 0 : index
    %c0_33 = arith.constant 0 : index
    %c0_34 = arith.constant 0 : index
    %89 = vector.load %arg13[%c0_32, %c0_33, %c0_34] : memref<10x10x128xf32, #tpu.memory_space<vmem>>, vector<10x10x128xf32>
    tpu.vector_store %arg13[%c0_32, %c0_33, %c0_34], %88 {strides = array<i32>} : memref<10x10x128xf32, #tpu.memory_space<vmem>>, vector<10x10x128xf32>,
    %90 = vector.shape_cast %10 : vector<64x128xf32> to vector<8x8x128xf32>
    %c1 = arith.constant 1 : index
    %c1_35 = arith.constant 1 : index
    %c0_36 = arith.constant 0 : index
    %91 = vector.load %arg13[%c1, %c1_35, %c0_36] : memref<10x10x128xf32, #tpu.memory_space<vmem>>, vector<8x8x128xf32>
    tpu.vector_store %arg13[%c1, %c1_35, %c0_36], %90 {strides = array<i32>} : memref<10x10x128xf32, #tpu.memory_space<vmem>>, vector<8x8x128xf32>,
    %cst_37 = arith.constant 0.000000e+00 : f32
    %92 = vector.broadcast %cst_37 : f32 to vector<8x8x128xf32>
    %c0_38 = arith.constant 0 : index
    %c0_39 = arith.constant 0 : index
    %93 = vector.load %arg4[%c0_38, %c0_39] : memref<9x128xf32, #tpu.memory_space<vmem>>, vector<1x128xf32>
    %94 = vector.shape_cast %93 : vector<1x128xf32> to vector<128xf32>
    %95 = vector.shape_cast %94 : vector<128xf32> to vector<1x1x128xf32>
    %c0_40 = arith.constant 0 : index
    %c0_41 = arith.constant 0 : index
    %c0_42 = arith.constant 0 : index
    %96 = vector.load %arg13[%c0_40, %c0_41, %c0_42] : memref<10x10x128xf32, #tpu.memory_space<vmem>>, vector<8x8x128xf32>
    %97 = vector.broadcast %95 : vector<1x1x128xf32> to vector<8x8x128xf32>
    %98 = arith.mulf %96, %97 : vector<8x8x128xf32>
    %99 = arith.addf %92, %98 : vector<8x8x128xf32>
    %c1_43 = arith.constant 1 : index
    %c0_44 = arith.constant 0 : index
    %100 = vector.load %arg4[%c1_43, %c0_44] : memref<9x128xf32, #tpu.memory_space<vmem>>, vector<1x128xf32>
    %101 = vector.shape_cast %100 : vector<1x128xf32> to vector<128xf32>
    %102 = vector.shape_cast %101 : vector<128xf32> to vector<1x1x128xf32>
    %c0_45 = arith.constant 0 : index
    %c1_46 = arith.constant 1 : index
    %c0_47 = arith.constant 0 : index
    %103 = vector.load %arg13[%c0_45, %c1_46, %c0_47] : memref<10x10x128xf32, #tpu.memory_space<vmem>>, vector<8x8x128xf32>
    %104 = vector.broadcast %102 : vector<1x1x128xf32> to vector<8x8x128xf32>
    %105 = arith.mulf %103, %104 : vector<8x8x128xf32>
    %106 = arith.addf %99, %105 : vector<8x8x128xf32>
    %c2 = arith.constant 2 : index
    %c0_48 = arith.constant 0 : index
    %107 = vector.load %arg4[%c2, %c0_48] : memref<9x128xf32, #tpu.memory_space<vmem>>, vector<1x128xf32>
    %108 = vector.shape_cast %107 : vector<1x128xf32> to vector<128xf32>
    %109 = vector.shape_cast %108 : vector<128xf32> to vector<1x1x128xf32>
    %c0_49 = arith.constant 0 : index
    %c2_50 = arith.constant 2 : index
    %c0_51 = arith.constant 0 : index
    %110 = vector.load %arg13[%c0_49, %c2_50, %c0_51] : memref<10x10x128xf32, #tpu.memory_space<vmem>>, vector<8x8x128xf32>
    %111 = vector.broadcast %109 : vector<1x1x128xf32> to vector<8x8x128xf32>
    %112 = arith.mulf %110, %111 : vector<8x8x128xf32>
    %113 = arith.addf %106, %112 : vector<8x8x128xf32>
    %c3 = arith.constant 3 : index
    %c0_52 = arith.constant 0 : index
    %114 = vector.load %arg4[%c3, %c0_52] : memref<9x128xf32, #tpu.memory_space<vmem>>, vector<1x128xf32>
    %115 = vector.shape_cast %114 : vector<1x128xf32> to vector<128xf32>
    %116 = vector.shape_cast %115 : vector<128xf32> to vector<1x1x128xf32>
    %c1_53 = arith.constant 1 : index
    %c0_54 = arith.constant 0 : index
    %c0_55 = arith.constant 0 : index
    %117 = vector.load %arg13[%c1_53, %c0_54, %c0_55] : memref<10x10x128xf32, #tpu.memory_space<vmem>>, vector<8x8x128xf32>
    %118 = vector.broadcast %116 : vector<1x1x128xf32> to vector<8x8x128xf32>
    %119 = arith.mulf %117, %118 : vector<8x8x128xf32>
    %120 = arith.addf %113, %119 : vector<8x8x128xf32>
    %c4 = arith.constant 4 : index
    %c0_56 = arith.constant 0 : index
    %121 = vector.load %arg4[%c4, %c0_56] : memref<9x128xf32, #tpu.memory_space<vmem>>, vector<1x128xf32>
    %122 = vector.shape_cast %121 : vector<1x128xf32> to vector<128xf32>
    %123 = vector.shape_cast %122 : vector<128xf32> to vector<1x1x128xf32>
    %c1_57 = arith.constant 1 : index
    %c1_58 = arith.constant 1 : index
    %c0_59 = arith.constant 0 : index
    %124 = vector.load %arg13[%c1_57, %c1_58, %c0_59] : memref<10x10x128xf32, #tpu.memory_space<vmem>>, vector<8x8x128xf32>
    %125 = vector.broadcast %123 : vector<1x1x128xf32> to vector<8x8x128xf32>
    %126 = arith.mulf %124, %125 : vector<8x8x128xf32>
    %127 = arith.addf %120, %126 : vector<8x8x128xf32>
    %c5 = arith.constant 5 : index
    %c0_60 = arith.constant 0 : index
    %128 = vector.load %arg4[%c5, %c0_60] : memref<9x128xf32, #tpu.memory_space<vmem>>, vector<1x128xf32>
    %129 = vector.shape_cast %128 : vector<1x128xf32> to vector<128xf32>
    %130 = vector.shape_cast %129 : vector<128xf32> to vector<1x1x128xf32>
    %c1_61 = arith.constant 1 : index
    %c2_62 = arith.constant 2 : index
    %c0_63 = arith.constant 0 : index
    %131 = vector.load %arg13[%c1_61, %c2_62, %c0_63] : memref<10x10x128xf32, #tpu.memory_space<vmem>>, vector<8x8x128xf32>
    %132 = vector.broadcast %130 : vector<1x1x128xf32> to vector<8x8x128xf32>
    %133 = arith.mulf %131, %132 : vector<8x8x128xf32>
    %134 = arith.addf %127, %133 : vector<8x8x128xf32>
    %c6 = arith.constant 6 : index
    %c0_64 = arith.constant 0 : index
    %135 = vector.load %arg4[%c6, %c0_64] : memref<9x128xf32, #tpu.memory_space<vmem>>, vector<1x128xf32>
    %136 = vector.shape_cast %135 : vector<1x128xf32> to vector<128xf32>
    %137 = vector.shape_cast %136 : vector<128xf32> to vector<1x1x128xf32>
    %c2_65 = arith.constant 2 : index
    %c0_66 = arith.constant 0 : index
    %c0_67 = arith.constant 0 : index
    %138 = vector.load %arg13[%c2_65, %c0_66, %c0_67] : memref<10x10x128xf32, #tpu.memory_space<vmem>>, vector<8x8x128xf32>
    %139 = vector.broadcast %137 : vector<1x1x128xf32> to vector<8x8x128xf32>
    %140 = arith.mulf %138, %139 : vector<8x8x128xf32>
    %141 = arith.addf %134, %140 : vector<8x8x128xf32>
    %c7 = arith.constant 7 : index
    %c0_68 = arith.constant 0 : index
    %142 = vector.load %arg4[%c7, %c0_68] : memref<9x128xf32, #tpu.memory_space<vmem>>, vector<1x128xf32>
    %143 = vector.shape_cast %142 : vector<1x128xf32> to vector<128xf32>
    %144 = vector.shape_cast %143 : vector<128xf32> to vector<1x1x128xf32>
    %c2_69 = arith.constant 2 : index
    %c1_70 = arith.constant 1 : index
    %c0_71 = arith.constant 0 : index
    %145 = vector.load %arg13[%c2_69, %c1_70, %c0_71] : memref<10x10x128xf32, #tpu.memory_space<vmem>>, vector<8x8x128xf32>
    %146 = vector.broadcast %144 : vector<1x1x128xf32> to vector<8x8x128xf32>
    %147 = arith.mulf %145, %146 : vector<8x8x128xf32>
    %148 = arith.addf %141, %147 : vector<8x8x128xf32>
    %c8 = arith.constant 8 : index
    %c0_72 = arith.constant 0 : index
    %149 = vector.load %arg4[%c8, %c0_72] : memref<9x128xf32, #tpu.memory_space<vmem>>, vector<1x128xf32>
    %150 = vector.shape_cast %149 : vector<1x128xf32> to vector<128xf32>
    %151 = vector.shape_cast %150 : vector<128xf32> to vector<1x1x128xf32>
    %c2_73 = arith.constant 2 : index
    %c2_74 = arith.constant 2 : index
    %c0_75 = arith.constant 0 : index
    %152 = vector.load %arg13[%c2_73, %c2_74, %c0_75] : memref<10x10x128xf32, #tpu.memory_space<vmem>>, vector<8x8x128xf32>
    %153 = vector.broadcast %151 : vector<1x1x128xf32> to vector<8x8x128xf32>
    %154 = arith.mulf %152, %153 : vector<8x8x128xf32>
    %155 = arith.addf %148, %154 : vector<8x8x128xf32>
    %156 = vector.shape_cast %155 : vector<8x8x128xf32> to vector<64x128xf32>
    %157 = arith.addf %87, %156 : vector<64x128xf32>
    %c0_76 = arith.constant 0 : index
    %c0_77 = arith.constant 0 : index
    %158 = vector.load %arg5[%c0_76, %c0_77] : memref<1x128xf32, #tpu.memory_space<vmem>>, vector<1x128xf32>
    %159 = vector.broadcast %158 : vector<1x128xf32> to vector<64x128xf32>
    %160 = arith.addf %157, %159 : vector<64x128xf32>
    %c0_78 = arith.constant 0 : index
    %c0_79 = arith.constant 0 : index
    %161 = vector.load %arg6[%c0_78, %c0_79] : memref<128x128xf32, #tpu.memory_space<vmem>>, vector<128x128xf32>
    %cst_80 = arith.constant dense<0.000000e+00> : vector<64x128xf32>
    %162 = tpu.matmul %160, %161, %cst_80 {dimension_numbers = #tpu.dot_dimension_numbers<[1], [0], [0], [1], [0, 0, 1, 1], [], []>} : vector<64x128xf32>, vector<128x128xf32>, vector<64x128xf32> -> vector<64x128xf32>
    %c0_81 = arith.constant 0 : index
    %c0_82 = arith.constant 0 : index
    %163 = vector.load %arg7[%c0_81, %c0_82] : memref<1x128xf32, #tpu.memory_space<vmem>>, vector<1x128xf32>
    %164 = vector.broadcast %163 : vector<1x128xf32> to vector<64x128xf32>
    %165 = arith.addf %162, %164 : vector<64x128xf32>
    %166 = arith.addf %2, %165 : vector<64x128xf32>
    %c0_83 = arith.constant 0 : index
    %c0_84 = arith.constant 0 : index
    %167 = vector.load %arg8[%c0_83, %c0_84] : memref<128x256xf32, #tpu.memory_space<vmem>>, vector<128x256xf32>
    %cst_85 = arith.constant dense<0.000000e+00> : vector<64x256xf32>
    %168 = tpu.matmul %166, %167, %cst_85 {dimension_numbers = #tpu.dot_dimension_numbers<[1], [0], [0], [1], [0, 0, 1, 1], [], []>} : vector<64x128xf32>, vector<128x256xf32>, vector<64x256xf32> -> vector<64x256xf32>
    %c0_86 = arith.constant 0 : index
    %c0_87 = arith.constant 0 : index
    %169 = vector.load %arg9[%c0_86, %c0_87] : memref<1x256xf32, #tpu.memory_space<vmem>>, vector<1x256xf32>
    %170 = vector.broadcast %169 : vector<1x256xf32> to vector<64x256xf32>
    %171 = arith.addf %168, %170 : vector<64x256xf32>
    %172 = arith.negf %171 : vector<64x256xf32>
    %173 = math.exp %172 : vector<64x256xf32>
    %cst_88 = arith.constant 1.000000e+00 : f32
    %174 = vector.broadcast %cst_88 : f32 to vector<64x256xf32>
    %175 = arith.addf %174, %173 : vector<64x256xf32>
    %176 = arith.divf %174, %175 : vector<64x256xf32>
    %177 = arith.mulf %171, %176 : vector<64x256xf32>
    %c0_89 = arith.constant 0 : index
    %c0_90 = arith.constant 0 : index
    %178 = vector.load %arg10[%c0_89, %c0_90] : memref<256x128xf32, #tpu.memory_space<vmem>>, vector<256x128xf32>
    %cst_91 = arith.constant dense<0.000000e+00> : vector<64x128xf32>
    %179 = tpu.matmul %177, %178, %cst_91 {dimension_numbers = #tpu.dot_dimension_numbers<[1], [0], [0], [1], [0, 0, 1, 1], [], []>} : vector<64x256xf32>, vector<256x128xf32>, vector<64x128xf32> -> vector<64x128xf32>
    %c0_92 = arith.constant 0 : index
    %c0_93 = arith.constant 0 : index
    %180 = vector.load %arg11[%c0_92, %c0_93] : memref<1x128xf32, #tpu.memory_space<vmem>>, vector<1x128xf32>
    %181 = vector.broadcast %180 : vector<1x128xf32> to vector<64x128xf32>
    %182 = arith.addf %179, %181 : vector<64x128xf32>
    %183 = arith.addf %166, %182 : vector<64x128xf32>
    %184 = vector.shape_cast %183 : vector<64x128xf32> to vector<1x8x8x128xf32>
    %c0_94 = arith.constant 0 : index
    %c0_95 = arith.constant 0 : index
    %c0_96 = arith.constant 0 : index
    %c0_97 = arith.constant 0 : index
    %185 = vector.load %arg12[%c0_94, %c0_95, %c0_96, %c0_97] : memref<1x8x8x128xf32, #tpu.memory_space<vmem>>, vector<1x8x8x128xf32>
    tpu.vector_store %arg12[%c0_94, %c0_95, %c0_96, %c0_97], %184 {strides = array<i32>} : memref<1x8x8x128xf32, #tpu.memory_space<vmem>>, vector<1x8x8x128xf32>,
    return
  }
  func.func @transform_0(%arg0: i32) -> (i32, i32, i32, i32) {
    %c0_i32 = arith.constant 0 : i32
    %c0_i32_0 = arith.constant 0 : i32
    %c0_i32_1 = arith.constant 0 : i32
    %c0_i32_2 = arith.constant 0 : i32
    return %arg0, %c0_i32, %c0_i32_0, %c0_i32_1 : i32, i32, i32, i32
  }
  func.func @transform_1(%arg0: i32) -> (i32, i32) {
    %c0_i32 = arith.constant 0 : i32
    %c0_i32_0 = arith.constant 0 : i32
    %c0_i32_1 = arith.constant 0 : i32
    return %c0_i32, %c0_i32_0 : i32, i32
  }
  func.func @transform_2(%arg0: i32) -> (i32, i32) {
    %c0_i32 = arith.constant 0 : i32
    %c0_i32_0 = arith.constant 0 : i32
    %c0_i32_1 = arith.constant 0 : i32
    return %c0_i32, %c0_i32_0 : i32, i32
  }
  func.func @transform_3(%arg0: i32) -> (i32, i32) {
    %c0_i32 = arith.constant 0 : i32
    %c0_i32_0 = arith.constant 0 : i32
    %c0_i32_1 = arith.constant 0 : i32
    return %c0_i32, %c0_i32_0 : i32, i32
  }
  func.func @transform_4(%arg0: i32) -> (i32, i32) {
    %c0_i32 = arith.constant 0 : i32
    %c0_i32_0 = arith.constant 0 : i32
    %c0_i32_1 = arith.constant 0 : i32
    return %c0_i32, %c0_i32_0 : i32, i32
  }
  func.func @transform_5(%arg0: i32) -> (i32, i32) {
    %c0_i32 = arith.constant 0 : i32
    %c0_i32_0 = arith.constant 0 : i32
    %c0_i32_1 = arith.constant 0 : i32
    return %c0_i32, %c0_i32_0 : i32, i32
  }
  func.func @transform_6(%arg0: i32) -> (i32, i32) {
    %c0_i32 = arith.constant 0 : i32
    %c0_i32_0 = arith.constant 0 : i32
    %c0_i32_1 = arith.constant 0 : i32
    return %c0_i32, %c0_i32_0 : i32, i32
  }
  func.func @transform_7(%arg0: i32) -> (i32, i32) {
    %c0_i32 = arith.constant 0 : i32
    %c0_i32_0 = arith.constant 0 : i32
    %c0_i32_1 = arith.constant 0 : i32
    return %c0_i32, %c0_i32_0 : i32, i32
  }
  func.func @transform_8(%arg0: i32) -> (i32, i32) {
    %c0_i32 = arith.constant 0 : i32
    %c0_i32_0 = arith.constant 0 : i32
    %c0_i32_1 = arith.constant 0 : i32
    return %c0_i32, %c0_i32_0 : i32, i32
  }
  func.func @transform_9(%arg0: i32) -> (i32, i32) {
    %c0_i32 = arith.constant 0 : i32
    %c0_i32_0 = arith.constant 0 : i32
    %c0_i32_1 = arith.constant 0 : i32
    return %c0_i32, %c0_i32_0 : i32, i32
  }
  func.func @transform_10(%arg0: i32) -> (i32, i32) {
    %c0_i32 = arith.constant 0 : i32
    %c0_i32_0 = arith.constant 0 : i32
    %c0_i32_1 = arith.constant 0 : i32
    return %c0_i32, %c0_i32_0 : i32, i32
  }
  func.func @transform_11(%arg0: i32) -> (i32, i32, i32, i32) {
    %c0_i32 = arith.constant 0 : i32
    %c0_i32_0 = arith.constant 0 : i32
    %c0_i32_1 = arith.constant 0 : i32
    %c0_i32_2 = arith.constant 0 : i32
    return %arg0, %c0_i32, %c0_i32_0, %c0_i32_1 : i32, i32, i32, i32
  }
}

</mosaic_0001>

<llo_original>
// kernel: psablock_forward.1
$region0: #{psablock_forward.1}
  #allocation0 [shape = 'u32[]', space=smem, size = 0x4, offset = 0x4, fixed_abs, tag = 'smem constant byte address 0x4 - core index']
  #allocation1 [shape = 'u32[144,128]{1,0:T(1,128)}', space=vmem, size = 0x12000, scoped, tag = 'internal scratch']
  #allocation2 [shape = 'f32[10,10,128]{2,1,0:T(8,128)}', space=vmem, size = 0x14000, scoped, tag = 'scratch operand']
  %s0 = inlined_call_operand.vmem [shape: f32[2,8,8,128], index: 0, kind: input, shape index: {}]
  %s1 = inlined_call_operand.vmem [shape: f32[128,256], index: 1, kind: input, shape index: {}]
  %s2 = inlined_call_operand.vmem [shape: f32[1,256], index: 2, kind: input, shape index: {}]
  %s3 = inlined_call_operand.vmem [shape: f32[9,128], index: 3, kind: input, shape index: {}]
  %s4 = inlined_call_operand.vmem [shape: f32[1,128], index: 4, kind: input, shape index: {}]
  %s5 = inlined_call_operand.vmem [shape: f32[128,128], index: 5, kind: input, shape index: {}]
  %s6 = inlined_call_operand.vmem [shape: f32[1,128], index: 6, kind: input, shape index: {}]
  %s7 = inlined_call_operand.vmem [shape: f32[128,256], index: 7, kind: input, shape index: {}]
  %s8 = inlined_call_operand.vmem [shape: f32[1,256], index: 8, kind: input, shape index: {}]
  %s9 = inlined_call_operand.vmem [shape: f32[256,128], index: 9, kind: input, shape index: {}]
  %s10 = inlined_call_operand.vmem [shape: f32[1,128], index: 10, kind: input, shape index: {}]
  %s11 = inlined_call_operand.hbm [shape: f32[2,8,8,128], index: 11, kind: output, shape index: {}]
  %s12 = sld [smem:[#allocation0]]
  $region77: #{psablock_forward.1} parent=0
    _
  %s14 = ssub.s32 1, %s12
  %s15 = scalar_select 0, %s14, %s12
  $region1: #{psablock_forward.1} parent=0
    #allocation3 [shape = 'u8[65536]{0}', space=vmem, size = 0x10000, scoped, tag = 'output window, operand 0']
    #allocation4 [shape = 's32[2]{0}', space=sflag, size = 0x8, scoped, tag = 'scoped memory for psablock_forward.1']
    %16 = vsyncpa [#allocation4], 0
    %s17 = scalar_lea.sflag [#allocation4], 1
    %18 = vsyncpa %s17, 0
    loop: start=0, step=1, limit=4
    $region2: #{psablock_forward.1} parent=1 // loop_pre_header
      _
    $region3: #{psablock_forward.1} parent=1 // loop_header
      %s20 = sphi 0, %s24
      %p21 = scmp.ge.s32.totalorder %s20, 4
      %s30 = sphi 0, %s32
      %s33 = sphi 0, %s30
      %s34 = sphi 0, %s33
      %s50 = sphi 0, %s34
      %s54 = sphi 0, %s54
      %s56 = sphi 0, %s54
      %s57 = sphi 0, %s56
      %s71 = sphi 0, %s57
      %s75 = sphi 0, %s75
      %s77 = sphi 0, %s75
      %s78 = sphi 0, %s77
      %s92 = sphi 0, %s78
      %s96 = sphi 0, %s96
      %s98 = sphi 0, %s96
      %s99 = sphi 0, %s98
      %s113 = sphi 0, %s99
      %s117 = sphi 0, %s117
      %s119 = sphi 0, %s117
      %s120 = sphi 0, %s119
      %s134 = sphi 0, %s120
      %s138 = sphi 0, %s138
      %s140 = sphi 0, %s138
      %s141 = sphi 0, %s140
      %s155 = sphi 0, %s141
      %s159 = sphi 0, %s159
      %s161 = sphi 0, %s159
      %s162 = sphi 0, %s161
      %s176 = sphi 0, %s162
      %s180 = sphi 0, %s180
      %s182 = sphi 0, %s180
      %s183 = sphi 0, %s182
      %s197 = sphi 0, %s183
      %s201 = sphi 0, %s201
      %s203 = sphi 0, %s201
      %s204 = sphi 0, %s203
      %s218 = sphi 0, %s204
      %s222 = sphi 0, %s222
      %s224 = sphi 0, %s222
      %s225 = sphi 0, %s224
      %s239 = sphi 0, %s225
      %s243 = sphi 0, %s243
      %s245 = sphi 0, %s243
      %s246 = sphi 0, %s245
      %s260 = sphi 0, %s246
      %s266 = sphi 0, %s268
      %s269 = sphi 0, %s266
      %s270 = sphi 0, %s269
      %s286 = sphi 0, %s270
    $region4: #{psablock_forward.1} parent=1 // loop_header_branch
      %23 = sbr.rel (%p21) target = $region8
    $region5: #{psablock_forward.1} parent=1 // loop_body
      %s25 = ssub.s32 %s20, 1
      %s26 = ssub.s32 %s20, 2
      %s27 = sadd.s32 %s20, 1
      %s28 = ssub.s32 %s20, %s27
      %p29 = scmp.eq.s32.totalorder %s28, 0
      %s31 = sadd.s32 %s30, 1
      %s32 = scalar_select %p29, %s30, %s31
      %p35 = pneg %p29
      %p36 = scmp.eq.s32.totalorder %s20, 1
      %p37 = por %p35, %p36
      %p38 = scmp.ne.s32.totalorder %s30, %s33
      %p39 = scmp.eq.s32.totalorder %s20, 0
      %p40 = por %p38, %p39
      %p41 = scmp.ne.s32.totalorder %s30, %s33
      %p42 = scmp.eq.s32.totalorder %s25, 1
      %p43 = por %p41, %p42
      %p44 = scmp.ne.s32.totalorder %s33, %s34
      %p45 = scmp.eq.s32.totalorder %s25, 0
      %p46 = por %p44, %p45
      %p47 = scmp.ne.s32.totalorder %s33, %s34
      %p48 = scmp.eq.s32.totalorder %s26, 1
      %p49 = por %p47, %p48
      %p51 = scmp.ne.s32.totalorder %s34, %s50
      %p52 = scmp.eq.s32.totalorder %s26, 0
      %p53 = por %p51, %p52
      %s55 = sadd.s32 %s54, 1
      %p58 = scmp.eq.s32.totalorder %s20, 1
      %p59 = scmp.ne.s32.totalorder %s54, %s56
      %p60 = scmp.eq.s32.totalorder %s20, 0
      %p61 = por %p59, %p60
      %p62 = scmp.ne.s32.totalorder %s54, %s56
      %p63 = scmp.eq.s32.totalorder %s25, 1
      %p64 = por %p62, %p63
      %p65 = scmp.ne.s32.totalorder %s56, %s57
      %p66 = scmp.eq.s32.totalorder %s25, 0
      %p67 = por %p65, %p66
      %p68 = scmp.ne.s32.totalorder %s56, %s57
      %p69 = scmp.eq.s32.totalorder %s26, 1
      %p70 = por %p68, %p69
      %p72 = scmp.ne.s32.totalorder %s57, %s71
      %p73 = scmp.eq.s32.totalorder %s26, 0
      %p74 = por %p72, %p73
      %s76 = sadd.s32 %s75, 1
      %p79 = scmp.eq.s32.totalorder %s20, 1
      %p80 = scmp.ne.s32.totalorder %s75, %s77
      %p81 = scmp.eq.s32.totalorder %s20, 0
      %p82 = por %p80, %p81
      %p83 = scmp.ne.s32.totalorder %s75, %s77
      %p84 = scmp.eq.s32.totalorder %s25, 1
      %p85 = por %p83, %p84
      %p86 = scmp.ne.s32.totalorder %s77, %s78
      %p87 = scmp.eq.s32.totalorder %s25, 0
      %p88 = por %p86, %p87
      %p89 = scmp.ne.s32.totalorder %s77, %s78
      %p90 = scmp.eq.s32.totalorder %s26, 1
      %p91 = por %p89, %p90
      %p93 = scmp.ne.s32.totalorder %s78, %s92
      %p94 = scmp.eq.s32.totalorder %s26, 0
      %p95 = por %p93, %p94
      %s97 = sadd.s32 %s96, 1
      %p100 = scmp.eq.s32.totalorder %s20, 1
      %p101 = scmp.ne.s32.totalorder %s96, %s98
      %p102 = scmp.eq.s32.totalorder %s20, 0
      %p103 = por %p101, %p102
      %p104 = scmp.ne.s32.totalorder %s96, %s98
      %p105 = scmp.eq.s32.totalorder %s25, 1
      %p106 = por %p104, %p105
      %p107 = scmp.ne.s32.totalorder %s98, %s99
      %p108 = scmp.eq.s32.totalorder %s25, 0
      %p109 = por %p107, %p108
      %p110 = scmp.ne.s32.totalorder %s98, %s99
      %p111 = scmp.eq.s32.totalorder %s26, 1
      %p112 = por %p110, %p111
      %p114 = scmp.ne.s32.totalorder %s99, %s113
      %p115 = scmp.eq.s32.totalorder %s26, 0
      %p116 = por %p114, %p115
      %s118 = sadd.s32 %s117, 1
      %p121 = scmp.eq.s32.totalorder %s20, 1
      %p122 = scmp.ne.s32.totalorder %s117, %s119
      %p123 = scmp.eq.s32.totalorder %s20, 0
      %p124 = por %p122, %p123
      %p125 = scmp.ne.s32.totalorder %s117, %s119
      %p126 = scmp.eq.s32.totalorder %s25, 1
      %p127 = por %p125, %p126
      %p128 = scmp.ne.s32.totalorder %s119, %s120
      %p129 = scmp.eq.s32.totalorder %s25, 0
      %p130 = por %p128, %p129
      %p131 = scmp.ne.s32.totalorder %s119, %s120
      %p132 = scmp.eq.s32.totalorder %s26, 1
      %p133 = por %p131, %p132
      %p135 = scmp.ne.s32.totalorder %s120, %s134
      %p136 = scmp.eq.s32.totalorder %s26, 0
      %p137 = por %p135, %p136
      %s139 = sadd.s32 %s138, 1
      %p142 = scmp.eq.s32.totalorder %s20, 1
      %p143 = scmp.ne.s32.totalorder %s138, %s140
      %p144 = scmp.eq.s32.totalorder %s20, 0
      %p145 = por %p143, %p144
      %p146 = scmp.ne.s32.totalorder %s138, %s140
      %p147 = scmp.eq.s32.totalorder %s25, 1
      %p148 = por %p146, %p147
      %p149 = scmp.ne.s32.totalorder %s140, %s141
      %p150 = scmp.eq.s32.totalorder %s25, 0
      %p151 = por %p149, %p150
      %p152 = scmp.ne.s32.totalorder %s140, %s141
      %p153 = scmp.eq.s32.totalorder %s26, 1
      %p154 = por %p152, %p153
      %p156 = scmp.ne.s32.totalorder %s141, %s155
      %p157 = scmp.eq.s32.totalorder %s26, 0
      %p158 = por %p156, %p157
      %s160 = sadd.s32 %s159, 1
      %p163 = scmp.eq.s32.totalorder %s20, 1
      %p164 = scmp.ne.s32.totalorder %s159, %s161
      %p165 = scmp.eq.s32.totalorder %s20, 0
      %p166 = por %p164, %p165
      %p167 = scmp.ne.s32.totalorder %s159, %s161
      %p168 = scmp.eq.s32.totalorder %s25, 1
      %p169 = por %p167, %p168
      %p170 = scmp.ne.s32.totalorder %s161, %s162
      %p171 = scmp.eq.s32.totalorder %s25, 0
      %p172 = por %p170, %p171
      %p173 = scmp.ne.s32.totalorder %s161, %s162
      %p174 = scmp.eq.s32.totalorder %s26, 1
      %p175 = por %p173, %p174
      %p177 = scmp.ne.s32.totalorder %s162, %s176
      %p178 = scmp.eq.s32.totalorder %s26, 0
      %p179 = por %p177, %p178
      %s181 = sadd.s32 %s180, 1
      %p184 = scmp.eq.s32.totalorder %s20, 1
      %p185 = scmp.ne.s32.totalorder %s180, %s182
      %p186 = scmp.eq.s32.totalorder %s20, 0
      %p187 = por %p185, %p186
      %p188 = scmp.ne.s32.totalorder %s180, %s182
      %p189 = scmp.eq.s32.totalorder %s25, 1
      %p190 = por %p188, %p189
      %p191 = scmp.ne.s32.totalorder %s182, %s183
      %p192 = scmp.eq.s32.totalorder %s25, 0
      %p193 = por %p191, %p192
      %p194 = scmp.ne.s32.totalorder %s182, %s183
      %p195 = scmp.eq.s32.totalorder %s26, 1
      %p196 = por %p194, %p195
      %p198 = scmp.ne.s32.totalorder %s183, %s197
      %p199 = scmp.eq.s32.totalorder %s26, 0
      %p200 = por %p198, %p199
      %s202 = sadd.s32 %s201, 1
      %p205 = scmp.eq.s32.totalorder %s20, 1
      %p206 = scmp.ne.s32.totalorder %s201, %s203
      %p207 = scmp.eq.s32.totalorder %s20, 0
      %p208 = por %p206, %p207
      %p209 = scmp.ne.s32.totalorder %s201, %s203
      %p210 = scmp.eq.s32.totalorder %s25, 1
      %p211 = por %p209, %p210
      %p212 = scmp.ne.s32.totalorder %s203, %s204
      %p213 = scmp.eq.s32.totalorder %s25, 0
      %p214 = por %p212, %p213
      %p215 = scmp.ne.s32.totalorder %s203, %s204
      %p216 = scmp.eq.s32.totalorder %s26, 1
      %p217 = por %p215, %p216
      %p219 = scmp.ne.s32.totalorder %s204, %s218
      %p220 = scmp.eq.s32.totalorder %s26, 0
      %p221 = por %p219, %p220
      %s223 = sadd.s32 %s222, 1
      %p226 = scmp.eq.s32.totalorder %s20, 1
      %p227 = scmp.ne.s32.totalorder %s222, %s224
      %p228 = scmp.eq.s32.totalorder %s20, 0
      %p229 = por %p227, %p228
      %p230 = scmp.ne.s32.totalorder %s222, %s224
      %p231 = scmp.eq.s32.totalorder %s25, 1
      %p232 = por %p230, %p231
      %p233 = scmp.ne.s32.totalorder %s224, %s225
      %p234 = scmp.eq.s32.totalorder %s25, 0
      %p235 = por %p233, %p234
      %p236 = scmp.ne.s32.totalorder %s224, %s225
      %p237 = scmp.eq.s32.totalorder %s26, 1
      %p238 = por %p236, %p237
      %p240 = scmp.ne.s32.totalorder %s225, %s239
      %p241 = scmp.eq.s32.totalorder %s26, 0
      %p242 = por %p240, %p241
      %s244 = sadd.s32 %s243, 1
      %p247 = scmp.eq.s32.totalorder %s20, 1
      %p248 = scmp.ne.s32.totalorder %s243, %s245
      %p249 = scmp.eq.s32.totalorder %s20, 0
      %p250 = por %p248, %p249
      %p251 = scmp.ne.s32.totalorder %s243, %s245
      %p252 = scmp.eq.s32.totalorder %s25, 1
      %p253 = por %p251, %p252
      %p254 = scmp.ne.s32.totalorder %s245, %s246
      %p255 = scmp.eq.s32.totalorder %s25, 0
      %p256 = por %p254, %p255
      %p257 = scmp.ne.s32.totalorder %s245, %s246
      %p258 = scmp.eq.s32.totalorder %s26, 1
      %p259 = por %p257, %p258
      %p261 = scmp.ne.s32.totalorder %s246, %s260
      %p262 = scmp.eq.s32.totalorder %s26, 0
      %p263 = por %p261, %p262
      %s264 = ssub.s32 %s20, %s27
      %p265 = scmp.eq.s32.totalorder %s264, 0
      %s267 = sadd.s32 %s266, 1
      %s268 = scalar_select %p265, %s266, %s267
      %p271 = pneg %p265
      %p272 = scmp.eq.s32.totalorder %s20, 1
      %p273 = por %p271, %p272
      %p274 = scmp.ne.s32.totalorder %s266, %s269
      %p275 = scmp.eq.s32.totalorder %s20, 0
      %p276 = por %p274, %p275
      %p277 = scmp.ne.s32.totalorder %s266, %s269
      %p278 = scmp.eq.s32.totalorder %s25, 1
      %p279 = por %p277, %p278
      %p280 = scmp.ne.s32.totalorder %s269, %s270
      %p281 = scmp.eq.s32.totalorder %s25, 0
      %p282 = por %p280, %p281
      %p283 = scmp.ne.s32.totalorder %s269, %s270
      %p284 = scmp.eq.s32.totalorder %s26, 1
      %p285 = por %p283, %p284
      %p287 = scmp.ne.s32.totalorder %s270, %s286
      %p288 = scmp.eq.s32.totalorder %s26, 0
      %p289 = por %p287, %p288
      %p290 = scmp.le.s32.totalorder 1, %s20
      %p291 = scmp.lt.s32.totalorder %s20, 3
      %p292 = pnand %p290, %p291
      %p293 = pneg %p292
      // Predicated region
      $region9: #{psablock_forward.1} parent=5 // pred_check
        _
      $region10: #{psablock_forward.1} parent=5 // pred_check_branch
        %295 = sbr.rel (%p292) target = $region12
      $region11: #{psablock_forward.1} parent=5 // pred_region
        %s296 = ssub.s32 %s20, 1
        // Predicated region
        $region13: #{psablock_forward.1} parent=11 // pred_check
          %p297 = pneg %p67
        $region14: #{psablock_forward.1} parent=11 // pred_check_branch
          %299 = sbr.rel (%p297) target = $region16
        $region15: #{psablock_forward.1} parent=11 // pred_region
          _
        $region16: #{psablock_forward.1} parent=11 // pred_fallthru
          _
        // Predicated region
        $region17: #{psablock_forward.1} parent=11 // pred_check
          %p300 = pneg %p88
        $region18: #{psablock_forward.1} parent=11 // pred_check_branch
          %302 = sbr.rel (%p300) target = $region20
        $region19: #{psablock_forward.1} parent=11 // pred_region
          _
        $region20: #{psablock_forward.1} parent=11 // pred_fallthru
          _
        // Predicated region
        $region21: #{psablock_forward.1} parent=11 // pred_check
          %p303 = pneg %p109
        $region22: #{psablock_forward.1} parent=11 // pred_check_branch
          %305 = sbr.rel (%p303) target = $region24
        $region23: #{psablock_forward.1} parent=11 // pred_region
          _
        $region24: #{psablock_forward.1} parent=11 // pred_fallthru
          _
        // Predicated region
        $region25: #{psablock_forward.1} parent=11 // pred_check
          %p306 = pneg %p130
        $region26: #{psablock_forward.1} parent=11 // pred_check_branch
          %308 = sbr.rel (%p306) target = $region28
        $region27: #{psablock_forward.1} parent=11 // pred_region
          _
        $region28: #{psablock_forward.1} parent=11 // pred_fallthru
          _
        // Predicated region
        $region29: #{psablock_forward.1} parent=11 // pred_check
          %p309 = pneg %p151
        $region30: #{psablock_forward.1} parent=11 // pred_check_branch
          %311 = sbr.rel (%p309) target = $region32
        $region31: #{psablock_forward.1} parent=11 // pred_region
          _
        $region32: #{psablock_forward.1} parent=11 // pred_fallthru
          _
        // Predicated region
        $region33: #{psablock_forward.1} parent=11 // pred_check
          %p312 = pneg %p172
        $region34: #{psablock_forward.1} parent=11 // pred_check_branch
          %314 = sbr.rel (%p312) target = $region36
        $region35: #{psablock_forward.1} parent=11 // pred_region
          _
        $region36: #{psablock_forward.1} parent=11 // pred_fallthru
          _
        // Predicated region
        $region37: #{psablock_forward.1} parent=11 // pred_check
          %p315 = pneg %p193
        $region38: #{psablock_forward.1} parent=11 // pred_check_branch
          %317 = sbr.rel (%p315) target = $region40
        $region39: #{psablock_forward.1} parent=11 // pred_region
          _
        $region40: #{psablock_forward.1} parent=11 // pred_fallthru
          _
        // Predicated region
        $region41: #{psablock_forward.1} parent=11 // pred_check
          %p318 = pneg %p214
        $region42: #{psablock_forward.1} parent=11 // pred_check_branch
          %320 = sbr.rel (%p318) target = $region44
        $region43: #{psablock_forward.1} parent=11 // pred_region
          _
        $region44: #{psablock_forward.1} parent=11 // pred_fallthru
          _
        // Predicated region
        $region45: #{psablock_forward.1} parent=11 // pred_check
          %p321 = pneg %p235
        $region46: #{psablock_forward.1} parent=11 // pred_check_branch
          %323 = sbr.rel (%p321) target = $region48
        $region47: #{psablock_forward.1} parent=11 // pred_region
          _
        $region48: #{psablock_forward.1} parent=11 // pred_fallthru
          _
        // Predicated region
        $region49: #{psablock_forward.1} parent=11 // pred_check
          %p324 = pneg %p256
        $region50: #{psablock_forward.1} parent=11 // pred_check_branch
          %326 = sbr.rel (%p324) target = $region52
        $region51: #{psablock_forward.1} parent=11 // pred_region
          _
        $region52: #{psablock_forward.1} parent=11 // pred_fallthru
          _
      $region12: #{psablock_forward.1} parent=5 // pred_fallthru
        _
      %p327 = scmp.lt.s32.totalorder %s20, 2
      // Predicated region
      $region53: #{psablock_forward.1} parent=5 // pred_check
        %p328 = pneg %p327
      $region54: #{psablock_forward.1} parent=5 // pred_check_branch
        %330 = sbr.rel (%p328) target = $region56
      $region55: #{psablock_forward.1} parent=5 // pred_region
        // Predicated region
        $region57: #{psablock_forward.1} parent=55 // pred_check
          %p331 = pneg %p40
        $region58: #{psablock_forward.1} parent=55 // pred_check_branch
          %333 = sbr.rel (%p331) target = $region60
        $region59: #{psablock_forward.1} parent=55 // pred_region
          %p334 = scmp.lt.s32.totalorder %s20, 1
          %s335 = scalar_select %p334, %s20, 1
          %s336 = smul.addr %s335, 8
          %s337 = smul.addr %s336, 8
          %s338 = scalar_lea.vmem %s0, %s337
        $region60: #{psablock_forward.1} parent=55 // pred_fallthru
          _
      $region56: #{psablock_forward.1} parent=5 // pred_fallthru
        _
      %p339 = scmp.le.s32.totalorder 1, %s20
      %p340 = scmp.lt.s32.totalorder %s20, 3
      %p341 = pnand %p339, %p340
      %p342 = pneg %p341
      // Predicated region
      $region61: #{psablock_forward.1} parent=5 // pred_check
        _
      $region62: #{psablock_forward.1} parent=5 // pred_check_branch
        %344 = sbr.rel (%p341) target = $region64
      $region63: #{psablock_forward.1} parent=5 // pred_region
        %s345 = ssub.s32 %s20, 1
        %p346 = scmp.lt.s32.totalorder %s25, 1
        %s347 = scalar_select %p346, %s25, 1
        %s348 = smul.addr %s347, 8
        %s349 = smul.addr %s348, 8
        %s350 = scalar_lea.vmem %s0, %s349
        %p351 = pneg %p46
        %p352 = pneg %p43
        %p353 = pneg %p67
        %p354 = pneg %p64
        %p355 = pneg %p88
        %p356 = pneg %p85
        %p357 = pneg %p109
        %p358 = pneg %p106
        %p359 = pneg %p130
        %p360 = pneg %p127
        %p361 = pneg %p151
        %p362 = pneg %p148
        %p363 = pneg %p172
        %p364 = pneg %p169
        %p365 = pneg %p193
        %p366 = pneg %p190
        %p367 = pneg %p214
        %p368 = pneg %p211
        %p369 = pneg %p235
        %p370 = pneg %p232
        %p371 = pneg %p256
        %p372 = pneg %p253
        %p373 = pneg %p282
        %p374 = pneg %p279
        %s375 = sand.u32 %s269, 1
        %s376 = scalar_lea.sflag [#allocation4], %s375
        %s377 = sand.u32 %s269, 1
        %s378 = smul.addr %s377, 64
        %s379 = scalar_lea.vmem [#allocation3], %s378
        %p380 = scmp.lt.s32.totalorder %s25, 1
        %s381 = scalar_select %p380, %s25, 1
        %s382 = smul.addr %s381, 8
        %s383 = smul.addr %s382, 8
        %s384 = scalar_lea.vmem %s0, %s383
        %v385 = vld [vmem:[%s384] sm:$0xff]
        %v386 = vld [vmem:[%s384 + $0x8] sm:$0xff]
        %v387 = vld [vmem:[%s384 + $0x10] sm:$0xff]
        %v388 = vld [vmem:[%s384 + $0x18] sm:$0xff]
        %v389 = vld [vmem:[%s384 + $0x20] sm:$0xff]
        %v390 = vld [vmem:[%s384 + $0x28] sm:$0xff]
        %v391 = vld [vmem:[%s384 + $0x30] sm:$0xff]
        %v392 = vld [vmem:[%s384 + $0x38] sm:$0xff]
        %v393 = vld [vmem:[%s1] sm:$0xff]
        %v394 = vld [vmem:[%s1 + $0x8] sm:$0xff]
        %v395 = vld [vmem:[%s1 + $0x10] sm:$0xff]
        %v396 = vld [vmem:[%s1 + $0x18] sm:$0xff]
        %v397 = vld [vmem:[%s1 + $0x20] sm:$0xff]
        %v398 = vld [vmem:[%s1 + $0x28] sm:$0xff]
        %v399 = vld [vmem:[%s1 + $0x30] sm:$0xff]
        %v400 = vld [vmem:[%s1 + $0x38] sm:$0xff]
        %v401 = vld [vmem:[%s1 + $0x40] sm:$0xff]
        %v402 = vld [vmem:[%s1 + $0x48] sm:$0xff]
        %v403 = vld [vmem:[%s1 + $0x50] sm:$0xff]
        %v404 = vld [vmem:[%s1 + $0x58] sm:$0xff]
        %v405 = vld [vmem:[%s1 + $0x60] sm:$0xff]
        %v406 = vld [vmem:[%s1 + $0x68] sm:$0xff]
        %v407 = vld [vmem:[%s1 + $0x70] sm:$0xff]
        %v408 = vld [vmem:[%s1 + $0x78] sm:$0xff]
        %v409 = vld [vmem:[%s1 + $0x80] sm:$0xff]
        %v410 = vld [vmem:[%s1 + $0x88] sm:$0xff]
        %v411 = vld [vmem:[%s1 + $0x90] sm:$0xff]
        %v412 = vld [vmem:[%s1 + $0x98] sm:$0xff]
        %v413 = vld [vmem:[%s1 + $0xa0] sm:$0xff]
        %v414 = vld [vmem:[%s1 + $0xa8] sm:$0xff]
        %v415 = vld [vmem:[%s1 + $0xb0] sm:$0xff]
        %v416 = vld [vmem:[%s1 + $0xb8] sm:$0xff]
        %v417 = vld [vmem:[%s1 + $0xc0] sm:$0xff]
        %v418 = vld [vmem:[%s1 + $0xc8] sm:$0xff]
        %v419 = vld [vmem:[%s1 + $0xd0] sm:$0xff]
        %v420 = vld [vmem:[%s1 + $0xd8] sm:$0xff]
        %v421 = vld [vmem:[%s1 + $0xe0] sm:$0xff]
        %v422 = vld [vmem:[%s1 + $0xe8] sm:$0xff]
        %v423 = vld [vmem:[%s1 + $0xf0] sm:$0xff]
        %v424 = vld [vmem:[%s1 + $0xf8] sm:$0xff]
        %v425 = vld [vmem:[%s2] sm:$0x3]
        %v427 = vlaneseq
        %v428 = vshrl.u32 %v427, 7
        %v429 = vsub.s32 0, %v428
        %v430 = vrot.slane %v425, %v429
        %v431 = vlaneseq
        %v432 = vshrl.u32 %v431, 7
        %v433 = vsub.s32 1, %v432
        %v434 = vrot.slane %v425, %v433
        %437 = vmatprep.subr.mxu0 %v394
        %438 = vmatpush1.msra.mxu0 %v393
        %439 = vmatprep.subr.mxu0 %v396
        %440 = vmatpush1.msra.mxu0 %v395
        %441 = vmatprep.subr.mxu0 %v398
        %442 = vmatpush1.msra.mxu0 %v397
        %443 = vmatprep.subr.mxu0 %v400
        %444 = vmatpush1.msra.mxu0 %v399
        %445 = vmatprep.subr.mxu0 %v402
        %446 = vmatpush1.msra.mxu0 %v401
        %447 = vmatprep.subr.mxu0 %v404
        %448 = vmatpush1.msra.mxu0 %v403
        %449 = vmatprep.subr.mxu0 %v406
        %450 = vmatpush1.msra.mxu0 %v405
        %451 = vmatprep.subr.mxu0 %v408
        %452 = vmatpush1.msra.mxu0 %v407
        %453 = vmatprep.subr.mxu0 %v410
        %454 = vmatpush1.msra.mxu0 %v409
        %455 = vmatprep.subr.mxu0 %v412
        %456 = vmatpush1.msra.mxu0 %v411
        %457 = vmatprep.subr.mxu0 %v414
        %458 = vmatpush1.msra.mxu0 %v413
        %459 = vmatprep.subr.mxu0 %v416
        %460 = vmatpush1.msra.mxu0 %v415
        %461 = vmatprep.subr.mxu0 %v418
        %462 = vmatpush1.msra.mxu0 %v417
        %463 = vmatprep.subr.mxu0 %v420
        %464 = vmatpush1.msra.mxu0 %v419
        %465 = vmatprep.subr.mxu0 %v422
        %466 = vmatpush1.msra.mxu0 %v421
        %467 = vmatprep.subr.mxu0 %v424
        %468 = vmatpush1.msra.mxu0 %v423
        %469 = vmatprep.subr.mxu0 0.0
        %470 = vmatpush1.msra.mxu0 0.0
        %471 = vmatprep.subr.mxu0 0.0
        %472 = vmatpush1.msra.mxu0 0.0
        %473 = vmatprep.subr.mxu0 0.0
        %474 = vmatpush1.msra.mxu0 0.0
        %475 = vmatprep.subr.mxu0 0.0
        %476 = vmatpush1.msra.mxu0 0.0
        %477 = vmatprep.subr.mxu0 0.0
        %478 = vmatpush1.msra.mxu0 0.0
        %479 = vmatprep.subr.mxu0 0.0
        %480 = vmatpush1.msra.mxu0 0.0
        %481 = vmatprep.subr.mxu0 0.0
        %482 = vmatpush1.msra.mxu0 0.0
        %483 = vmatprep.subr.mxu0 0.0
        %484 = vmatpush1.msra.mxu0 0.0
        %485 = vmatprep.subr.mxu0 0.0
        %486 = vmatpush1.msra.mxu0 0.0
        %487 = vmatprep.subr.mxu0 0.0
        %488 = vmatpush1.msra.mxu0 0.0
        %489 = vmatprep.subr.mxu0 0.0
        %490 = vmatpush1.msra.mxu0 0.0
        %491 = vmatprep.subr.mxu0 0.0
        %492 = vmatpush1.msra.mxu0 0.0
        %493 = vmatprep.subr.mxu0 0.0
        %494 = vmatpush1.msra.mxu0 0.0
        %495 = vmatprep.subr.mxu0 0.0
        %496 = vmatpush1.msra.mxu0 0.0
        %497 = vmatprep.subr.mxu0 0.0
        %498 = vmatpush1.msra.mxu0 0.0
        %499 = vmatprep.subr.mxu0 0.0
        %500 = vmatpush1.msra.mxu0 0.0
        %501 = vmatprep.mubr.f32.mxu0 0.0
        %502 = vmatmul.mubr.f32.gmra.mrb[0].mxu0 %v385
        %v503 = vpop.f32.mrb[0].mxu0
        %v504 = vadd.f32 %v430, %v503
        %v505 = vpop.f32.mrb[0].mxu0
        %v506 = vadd.f32 %v434, %v505
        %507 = vmatprep.mubr.f32.mxu0 0.0
        %508 = vmatmul.mubr.f32.gmra.mrb[0].mxu0 %v386
        %v509 = vpop.f32.mrb[0].mxu0
        %v510 = vadd.f32 %v430, %v509
        %v511 = vpop.f32.mrb[0].mxu0
        %v512 = vadd.f32 %v434, %v511
        %513 = vmatprep.mubr.f32.mxu0 0.0
        %514 = vmatmul.mubr.f32.gmra.mrb[0].mxu0 %v387
        %v515 = vpop.f32.mrb[0].mxu0
        %v516 = vadd.f32 %v430, %v515
        %v517 = vpop.f32.mrb[0].mxu0
        %v518 = vadd.f32 %v434, %v517
        %519 = vmatprep.mubr.f32.mxu0 0.0
        %520 = vmatmul.mubr.f32.gmra.mrb[0].mxu0 %v388
        %v521 = vpop.f32.mrb[0].mxu0
        %v522 = vadd.f32 %v430, %v521
        %v523 = vpop.f32.mrb[0].mxu0
        %v524 = vadd.f32 %v434, %v523
        %525 = vmatprep.mubr.f32.mxu0 0.0
        %526 = vmatmul.mubr.f32.gmra.mrb[0].mxu0 %v389
        %v527 = vpop.f32.mrb[0].mxu0
        %v528 = vadd.f32 %v430, %v527
        %v529 = vpop.f32.mrb[0].mxu0
        %v530 = vadd.f32 %v434, %v529
        %531 = vmatprep.mubr.f32.mxu0 0.0
        %532 = vmatmul.mubr.f32.gmra.mrb[0].mxu0 %v390
        %v533 = vpop.f32.mrb[0].mxu0
        %v534 = vadd.f32 %v430, %v533
        %v535 = vpop.f32.mrb[0].mxu0
        %v536 = vadd.f32 %v434, %v535
        %537 = vmatprep.mubr.f32.mxu0 0.0
        %538 = vmatmul.mubr.f32.gmra.mrb[0].mxu0 %v391
        %v539 = vpop.f32.mrb[0].mxu0
        %v540 = vadd.f32 %v430, %v539
        %v541 = vpop.f32.mrb[0].mxu0
        %v542 = vadd.f32 %v434, %v541
        %543 = vmatprep.mubr.f32.mxu0 0.0
        %544 = vmatmul.mubr.f32.gmra.mrb[0].mxu0 %v392
        %v545 = vpop.f32.mrb[0].mxu0
        %v546 = vadd.f32 %v430, %v545
        %v547 = vpop.f32.mrb[0].mxu0
        %v548 = vadd.f32 %v434, %v547
        %549 = vdwg.mxu0
        %558 = vrot.lane.b32.xlu0 %v504, 64
        %v559 = vpop.permute.xlu0 %558
        %560 = vrot.lane.b32.xlu0 %v510, 64
        %v561 = vpop.permute.xlu0 %560
        %562 = vrot.lane.b32.xlu0 %v516, 64
        %v563 = vpop.permute.xlu0 %562
        %564 = vrot.lane.b32.xlu0 %v522, 64
        %v565 = vpop.permute.xlu0 %564
        %566 = vrot.lane.b32.xlu0 %v528, 64
        %v567 = vpop.permute.xlu0 %566
        %568 = vrot.lane.b32.xlu0 %v534, 64
        %v569 = vpop.permute.xlu0 %568
        %570 = vrot.lane.b32.xlu0 %v540, 64
        %v571 = vpop.permute.xlu0 %570
        %572 = vrot.lane.b32.xlu0 %v546, 64
        %v573 = vpop.permute.xlu0 %572
        %vm574 = vcmask 130048
        %v575 = vsel %vm574, %v504, 0
        %v577 = vsel %vm574, %v510, 0
        %v579 = vsel %vm574, %v516, 0
        %v581 = vsel %vm574, %v522, 0
        %v583 = vsel %vm574, %v528, 0
        %v585 = vsel %vm574, %v534, 0
        %v587 = vsel %vm574, %v540, 0
        %v589 = vsel %vm574, %v546, 0
        %v591 = vsel %vm574, %v559, 0
        %v593 = vsel %vm574, %v561, 0
        %v595 = vsel %vm574, %v563, 0
        %v597 = vsel %vm574, %v565, 0
        %v599 = vsel %vm574, %v567, 0
        %v601 = vsel %vm574, %v569, 0
        %v603 = vsel %vm574, %v571, 0
        %v605 = vsel %vm574, %v573, 0
        %607 = vmatprep.subr.mxu0 0.0
        %608 = vmatpush1.xpose.msra.mxu0 %v591
        %609 = vmatprep.subr.mxu0 0.0
        %610 = vmatpush1.xpose.msra.mxu0 %v593
        %611 = vmatprep.subr.mxu0 0.0
        %612 = vmatpush1.xpose.msra.mxu0 %v595
        %613 = vmatprep.subr.mxu0 0.0
        %614 = vmatpush1.xpose.msra.mxu0 %v597
        %615 = vmatprep.subr.mxu0 0.0
        %616 = vmatpush1.xpose.msra.mxu0 %v599
        %617 = vmatprep.subr.mxu0 0.0
        %618 = vmatpush1.xpose.msra.mxu0 %v601
        %619 = vmatprep.subr.mxu0 0.0
        %620 = vmatpush1.xpose.msra.mxu0 %v603
        %621 = vmatprep.subr.mxu0 0.0
        %622 = vmatpush1.xpose.msra.mxu0 %v605
        %623 = vmatprep.subr.mxu0 0.0
        %624 = vmatpush1.xpose.msra.mxu0 0.0
        %625 = vmatprep.subr.mxu0 0.0
        %626 = vmatpush1.xpose.msra.mxu0 0.0
        %627 = vmatprep.subr.mxu0 0.0
        %628 = vmatpush1.xpose.msra.mxu0 0.0
        %629 = vmatprep.subr.mxu0 0.0
        %630 = vmatpush1.xpose.msra.mxu0 0.0
        %631 = vmatprep.subr.mxu0 0.0
        %632 = vmatpush1.xpose.msra.mxu0 0.0
        %633 = vmatprep.subr.mxu0 0.0
        %634 = vmatpush1.xpose.msra.mxu0 0.0
        %635 = vmatprep.subr.mxu0 0.0
        %636 = vmatpush1.xpose.msra.mxu0 0.0
        %637 = vmatprep.subr.mxu0 0.0
        %638 = vmatpush1.xpose.msra.mxu0 0.0
        %639 = vmatprep.subr.mxu0 0.0
        %640 = vmatpush1.xpose.msra.mxu0 0.0
        %641 = vmatprep.subr.mxu0 0.0
        %642 = vmatpush1.xpose.msra.mxu0 0.0
        %643 = vmatprep.subr.mxu0 0.0
        %644 = vmatpush1.xpose.msra.mxu0 0.0
        %645 = vmatprep.subr.mxu0 0.0
        %646 = vmatpush1.xpose.msra.mxu0 0.0
        %647 = vmatprep.subr.mxu0 0.0
        %648 = vmatpush1.xpose.msra.mxu0 0.0
        %649 = vmatprep.subr.mxu0 0.0
        %650 = vmatpush1.xpose.msra.mxu0 0.0
        %651 = vmatprep.subr.mxu0 0.0
        %652 = vmatpush1.xpose.msra.mxu0 0.0
        %653 = vmatprep.subr.mxu0 0.0
        %654 = vmatpush1.xpose.msra.mxu0 0.0
        %655 = vmatprep.subr.mxu0 0.0
        %656 = vmatpush1.xpose.msra.mxu0 0.0
        %657 = vmatprep.subr.mxu0 0.0
        %658 = vmatpush1.xpose.msra.mxu0 0.0
        %659 = vmatprep.subr.mxu0 0.0
        %660 = vmatpush1.xpose.msra.mxu0 0.0
        %661 = vmatprep.subr.mxu0 0.0
        %662 = vmatpush1.xpose.msra.mxu0 0.0
        %663 = vmatprep.subr.mxu0 0.0
        %664 = vmatpush1.xpose.msra.mxu0 0.0
        %665 = vmatprep.subr.mxu0 0.0
        %666 = vmatpush1.xpose.msra.mxu0 0.0
        %667 = vmatprep.subr.mxu0 0.0
        %668 = vmatpush1.xpose.msra.mxu0 0.0
        %669 = vmatprep.subr.mxu0 0.0
        %670 = vmatpush1.xpose.msra.mxu0 0.0
        %671 = vmatprep.mubr.f32.mxu0 0.0
        %672 = vmatmul.mubr.f32.gmra.mrb[0].mxu0 %v575
        %v673 = vpop.f32.mrb[0].mxu0
        %v674 = vadd.f32 0.0, %v673
        %v675 = vpop.f32.mrb[0].mxu0
        %676 = vmatprep.mubr.f32.mxu0 0.0
        %677 = vmatmul.mubr.f32.gmra.mrb[0].mxu0 %v577
        %v678 = vpop.f32.mrb[0].mxu0
        %v679 = vadd.f32 0.0, %v678
        %v680 = vpop.f32.mrb[0].mxu0
        %681 = vmatprep.mubr.f32.mxu0 0.0
        %682 = vmatmul.mubr.f32.gmra.mrb[0].mxu0 %v579
        %v683 = vpop.f32.mrb[0].mxu0
        %v684 = vadd.f32 0.0, %v683
        %v685 = vpop.f32.mrb[0].mxu0
        %686 = vmatprep.mubr.f32.mxu0 0.0
        %687 = vmatmul.mubr.f32.gmra.mrb[0].mxu0 %v581
        %v688 = vpop.f32.mrb[0].mxu0
        %v689 = vadd.f32 0.0, %v688
        %v690 = vpop.f32.mrb[0].mxu0
        %691 = vmatprep.mubr.f32.mxu0 0.0
        %692 = vmatmul.mubr.f32.gmra.mrb[0].mxu0 %v583
        %v693 = vpop.f32.mrb[0].mxu0
        %v694 = vadd.f32 0.0, %v693
        %v695 = vpop.f32.mrb[0].mxu0
        %696 = vmatprep.mubr.f32.mxu0 0.0
        %697 = vmatmul.mubr.f32.gmra.mrb[0].mxu0 %v585
        %v698 = vpop.f32.mrb[0].mxu0
        %v699 = vadd.f32 0.0, %v698
        %v700 = vpop.f32.mrb[0].mxu0
        %701 = vmatprep.mubr.f32.mxu0 0.0
        %702 = vmatmul.mubr.f32.gmra.mrb[0].mxu0 %v587
        %v703 = vpop.f32.mrb[0].mxu0
        %v704 = vadd.f32 0.0, %v703
        %v705 = vpop.f32.mrb[0].mxu0
        %706 = vmatprep.mubr.f32.mxu0 0.0
        %707 = vmatmul.mubr.f32.gmra.mrb[0].mxu0 %v589
        %v708 = vpop.f32.mrb[0].mxu0
        %v709 = vadd.f32 0.0, %v708
        %v710 = vpop.f32.mrb[0].mxu0
        %711 = vdwg.mxu0
        %v712 = vmul.f32 %v674, 0.25
        %v713 = vmul.f32 %v679, 0.25
        %v714 = vmul.f32 %v684, 0.25
        %v715 = vmul.f32 %v689, 0.25
        %v716 = vmul.f32 %v694, 0.25
        %v717 = vmul.f32 %v699, 0.25
        %v718 = vmul.f32 %v704, 0.25
        %v719 = vmul.f32 %v709, 0.25
        %vm720 = vcmask 523264
        %v721 = vsel %vm720, %v712, -inf
        %722 = vmax.xlane.f32.xlu0 %v721
        %v723 = vpop.xlane.xlu0 %722
        %v724 = vsel %vm720, %v713, -inf
        %725 = vmax.xlane.f32.xlu0 %v724
        %v726 = vpop.xlane.xlu0 %725
        %v727 = vsel %vm720, %v714, -inf
        %728 = vmax.xlane.f32.xlu0 %v727
        %v729 = vpop.xlane.xlu0 %728
        %v730 = vsel %vm720, %v715, -inf
        %731 = vmax.xlane.f32.xlu0 %v730
        %v732 = vpop.xlane.xlu0 %731
        %v733 = vsel %vm720, %v716, -inf
        %734 = vmax.xlane.f32.xlu0 %v733
        %v735 = vpop.xlane.xlu0 %734
        %v736 = vsel %vm720, %v717, -inf
        %737 = vmax.xlane.f32.xlu0 %v736
        %v738 = vpop.xlane.xlu0 %737
        %v739 = vsel %vm720, %v718, -inf
        %740 = vmax.xlane.f32.xlu0 %v739
        %v741 = vpop.xlane.xlu0 %740
        %v742 = vsel %vm720, %v719, -inf
        %743 = vmax.xlane.f32.xlu0 %v742
        %v744 = vpop.xlane.xlu0 %743
        %v745 = vsub.f32 %v712, %v723
        %v746 = vsub.f32 %v713, %v726
        %v747 = vsub.f32 %v714, %v729
        %v748 = vsub.f32 %v715, %v732
        %v749 = vsub.f32 %v716, %v735
        %v750 = vsub.f32 %v717, %v738
        %v751 = vsub.f32 %v718, %v741
        %v752 = vsub.f32 %v719, %v744
        %v753 = vmul.f32 %v745, 1.442695
        %v754 = vpow.pop %v753
        %v755 = vmul.f32 %v746, 1.442695
        %v756 = vpow.pop %v755
        %v757 = vmul.f32 %v747, 1.442695
        %v758 = vpow.pop %v757
        %v759 = vmul.f32 %v748, 1.442695
        %v760 = vpow.pop %v759
        %v761 = vmul.f32 %v749, 1.442695
        %v762 = vpow.pop %v761
        %v763 = vmul.f32 %v750, 1.442695
        %v764 = vpow.pop %v763
        %v765 = vmul.f32 %v751, 1.442695
        %v766 = vpow.pop %v765
        %v767 = vmul.f32 %v752, 1.442695
        %v768 = vpow.pop %v767
        %v769 = vsel %vm720, %v754, 0.0
        %770 = vadd.xlane.f32.xlu0 %v769
        %v771 = vpop.xlane.xlu0 %770
        %v772 = vsel %vm720, %v756, 0.0
        %773 = vadd.xlane.f32.xlu0 %v772
        %v774 = vpop.xlane.xlu0 %773
        %v775 = vsel %vm720, %v758, 0.0
        %776 = vadd.xlane.f32.xlu0 %v775
        %v777 = vpop.xlane.xlu0 %776
        %v778 = vsel %vm720, %v760, 0.0
        %779 = vadd.xlane.f32.xlu0 %v778
        %v780 = vpop.xlane.xlu0 %779
        %v781 = vsel %vm720, %v762, 0.0
        %782 = vadd.xlane.f32.xlu0 %v781
        %v783 = vpop.xlane.xlu0 %782
        %v784 = vsel %vm720, %v764, 0.0
        %785 = vadd.xlane.f32.xlu0 %v784
        %v786 = vpop.xlane.xlu0 %785
        %v787 = vsel %vm720, %v766, 0.0
        %788 = vadd.xlane.f32.xlu0 %v787
        %v789 = vpop.xlane.xlu0 %788
        %v790 = vsel %vm720, %v768, 0.0
        %791 = vadd.xlane.f32.xlu0 %v790
        %v792 = vpop.xlane.xlu0 %791
        %v793 = vrcp.pop %v771
        %v794 = vmul.f32 %v754, %v793
        %v795 = vrcp.pop %v774
        %v796 = vmul.f32 %v756, %v795
        %v797 = vrcp.pop %v777
        %v798 = vmul.f32 %v758, %v797
        %v799 = vrcp.pop %v780
        %v800 = vmul.f32 %v760, %v799
        %v801 = vrcp.pop %v783
        %v802 = vmul.f32 %v762, %v801
        %v803 = vrcp.pop %v786
        %v804 = vmul.f32 %v764, %v803
        %v805 = vrcp.pop %v789
        %v806 = vmul.f32 %v766, %v805
        %v807 = vrcp.pop %v792
        %v808 = vmul.f32 %v768, %v807
        %v810 = vsel %vm720, %v794, 0
        %v813 = vsel %vm720, %v796, 0
        %v816 = vsel %vm720, %v798, 0
        %v819 = vsel %vm720, %v800, 0
        %v822 = vsel %vm720, %v802, 0
        %v825 = vsel %vm720, %v804, 0
        %v828 = vsel %vm720, %v806, 0
        %v831 = vsel %vm720, %v808, 0
        %833 = vmatprep.subr.mxu0 0.0
        %834 = vmatpush1.msra.mxu0 %v506
        %835 = vmatprep.subr.mxu0 0.0
        %836 = vmatpush1.msra.mxu0 %v512
        %837 = vmatprep.subr.mxu0 0.0
        %838 = vmatpush1.msra.mxu0 %v518
        %839 = vmatprep.subr.mxu0 0.0
        %840 = vmatpush1.msra.mxu0 %v524
        %841 = vmatprep.subr.mxu0 0.0
        %842 = vmatpush1.msra.mxu0 %v530
        %843 = vmatprep.subr.mxu0 0.0
        %844 = vmatpush1.msra.mxu0 %v536
        %845 = vmatprep.subr.mxu0 0.0
        %846 = vmatpush1.msra.mxu0 %v542
        %847 = vmatprep.subr.mxu0 0.0
        %848 = vmatpush1.msra.mxu0 %v548
        %849 = vmatprep.subr.mxu0 0.0
        %850 = vmatpush1.msra.mxu0 0.0
        %851 = vmatprep.subr.mxu0 0.0
        %852 = vmatpush1.msra.mxu0 0.0
        %853 = vmatprep.subr.mxu0 0.0
        %854 = vmatpush1.msra.mxu0 0.0
        %855 = vmatprep.subr.mxu0 0.0
        %856 = vmatpush1.msra.mxu0 0.0
        %857 = vmatprep.subr.mxu0 0.0
        %858 = vmatpush1.msra.mxu0 0.0
        %859 = vmatprep.subr.mxu0 0.0
        %860 = vmatpush1.msra.mxu0 0.0
        %861 = vmatprep.subr.mxu0 0.0
        %862 = vmatpush1.msra.mxu0 0.0
        %863 = vmatprep.subr.mxu0 0.0
        %864 = vmatpush1.msra.mxu0 0.0
        %865 = vmatprep.subr.mxu0 0.0
        %866 = vmatpush1.msra.mxu0 0.0
        %867 = vmatprep.subr.mxu0 0.0
        %868 = vmatpush1.msra.mxu0 0.0
        %869 = vmatprep.subr.mxu0 0.0
        %870 = vmatpush1.msra.mxu0 0.0
        %871 = vmatprep.subr.mxu0 0.0
        %872 = vmatpush1.msra.mxu0 0.0
        %873 = vmatprep.subr.mxu0 0.0
        %874 = vmatpush1.msra.mxu0 0.0
        %875 = vmatprep.subr.mxu0 0.0
        %876 = vmatpush1.msra.mxu0 0.0
        %877 = vmatprep.subr.mxu0 0.0
        %878 = vmatpush1.msra.mxu0 0.0
        %879 = vmatprep.subr.mxu0 0.0
        %880 = vmatpush1.msra.mxu0 0.0
        %881 = vmatprep.subr.mxu0 0.0
        %882 = vmatpush1.msra.mxu0 0.0
        %883 = vmatprep.subr.mxu0 0.0
        %884 = vmatpush1.msra.mxu0 0.0
        %885 = vmatprep.subr.mxu0 0.0
        %886 = vmatpush1.msra.mxu0 0.0
        %887 = vmatprep.subr.mxu0 0.0
        %888 = vmatpush1.msra.mxu0 0.0
        %889 = vmatprep.subr.mxu0 0.0
        %890 = vmatpush1.msra.mxu0 0.0
        %891 = vmatprep.subr.mxu0 0.0
        %892 = vmatpush1.msra.mxu0 0.0
        %893 = vmatprep.subr.mxu0 0.0
        %894 = vmatpush1.msra.mxu0 0.0
        %895 = vmatprep.subr.mxu0 0.0
        %896 = vmatpush1.msra.mxu0 0.0
        %897 = vmatprep.mubr.f32.mxu0 0.0
        %898 = vmatmul.mubr.f32.gmra.mrb[0].mxu0 %v810
        %v899 = vpop.f32.mrb[0].mxu0
        %v900 = vadd.f32 0.0, %v899
        %v901 = vpop.f32.mrb[0].mxu0
        %902 = vmatprep.mubr.f32.mxu0 0.0
        %903 = vmatmul.mubr.f32.gmra.mrb[0].mxu0 %v813
        %v904 = vpop.f32.mrb[0].mxu0
        %v905 = vadd.f32 0.0, %v904
        %v906 = vpop.f32.mrb[0].mxu0
        %907 = vmatprep.mubr.f32.mxu0 0.0
        %908 = vmatmul.mubr.f32.gmra.mrb[0].mxu0 %v816
        %v909 = vpop.f32.mrb[0].mxu0
        %v910 = vadd.f32 0.0, %v909
        %v911 = vpop.f32.mrb[0].mxu0
        %912 = vmatprep.mubr.f32.mxu0 0.0
        %913 = vmatmul.mubr.f32.gmra.mrb[0].mxu0 %v819
        %v914 = vpop.f32.mrb[0].mxu0
        %v915 = vadd.f32 0.0, %v914
        %v916 = vpop.f32.mrb[0].mxu0
        %917 = vmatprep.mubr.f32.mxu0 0.0
        %918 = vmatmul.mubr.f32.gmra.mrb[0].mxu0 %v822
        %v919 = vpop.f32.mrb[0].mxu0
        %v920 = vadd.f32 0.0, %v919
        %v921 = vpop.f32.mrb[0].mxu0
        %922 = vmatprep.mubr.f32.mxu0 0.0
        %923 = vmatmul.mubr.f32.gmra.mrb[0].mxu0 %v825
        %v924 = vpop.f32.mrb[0].mxu0
        %v925 = vadd.f32 0.0, %v924
        %v926 = vpop.f32.mrb[0].mxu0
        %927 = vmatprep.mubr.f32.mxu0 0.0
        %928 = vmatmul.mubr.f32.gmra.mrb[0].mxu0 %v828
        %v929 = vpop.f32.mrb[0].mxu0
        %v930 = vadd.f32 0.0, %v929
        %v931 = vpop.f32.mrb[0].mxu0
        %932 = vmatprep.mubr.f32.mxu0 0.0
        %933 = vmatmul.mubr.f32.gmra.mrb[0].mxu0 %v831
        %v934 = vpop.f32.mrb[0].mxu0
        %v935 = vadd.f32 0.0, %v934
        %v936 = vpop.f32.mrb[0].mxu0
        %937 = vdwg.mxu0
        %938 = vrot.lane.b32.xlu0 %v504, 112
        %v939 = vpop.permute.xlu0 %938
        %940 = vrot.lane.b32.xlu0 %v510, 112
        %v941 = vpop.permute.xlu0 %940
        %942 = vrot.lane.b32.xlu0 %v516, 112
        %v943 = vpop.permute.xlu0 %942
        %944 = vrot.lane.b32.xlu0 %v522, 112
        %v945 = vpop.permute.xlu0 %944
        %946 = vrot.lane.b32.xlu0 %v528, 112
        %v947 = vpop.permute.xlu0 %946
        %948 = vrot.lane.b32.xlu0 %v534, 112
        %v949 = vpop.permute.xlu0 %948
        %950 = vrot.lane.b32.xlu0 %v540, 112
        %v951 = vpop.permute.xlu0 %950
        %952 = vrot.lane.b32.xlu0 %v546, 112
        %v953 = vpop.permute.xlu0 %952
        %954 = vrot.lane.b32.xlu0 %v504, 48
        %v955 = vpop.permute.xlu0 %954
        %956 = vrot.lane.b32.xlu0 %v510, 48
        %v957 = vpop.permute.xlu0 %956
        %958 = vrot.lane.b32.xlu0 %v516, 48
        %v959 = vpop.permute.xlu0 %958
        %960 = vrot.lane.b32.xlu0 %v522, 48
        %v961 = vpop.permute.xlu0 %960
        %962 = vrot.lane.b32.xlu0 %v528, 48
        %v963 = vpop.permute.xlu0 %962
        %964 = vrot.lane.b32.xlu0 %v534, 48
        %v965 = vpop.permute.xlu0 %964
        %966 = vrot.lane.b32.xlu0 %v540, 48
        %v967 = vpop.permute.xlu0 %966
        %968 = vrot.lane.b32.xlu0 %v546, 48
        %v969 = vpop.permute.xlu0 %968
        %v970 = vsel %vm574, %v939, 0
        %v972 = vsel %vm574, %v941, 0
        %v974 = vsel %vm574, %v943, 0
        %v976 = vsel %vm574, %v945, 0
        %v978 = vsel %vm574, %v947, 0
        %v980 = vsel %vm574, %v949, 0
        %v982 = vsel %vm574, %v951, 0
        %v984 = vsel %vm574, %v953, 0
        %v986 = vsel %vm574, %v955, 0
        %v988 = vsel %vm574, %v957, 0
        %v990 = vsel %vm574, %v959, 0
        %v992 = vsel %vm574, %v961, 0
        %v994 = vsel %vm574, %v963, 0
        %v996 = vsel %vm574, %v965, 0
        %v998 = vsel %vm574, %v967, 0
        %v1000 = vsel %vm574, %v969, 0
        %1002 = vmatprep.subr.mxu0 0.0
        %1003 = vmatpush1.xpose.msra.mxu0 %v986
        %1004 = vmatprep.subr.mxu0 0.0
        %1005 = vmatpush1.xpose.msra.mxu0 %v988
        %1006 = vmatprep.subr.mxu0 0.0
        %1007 = vmatpush1.xpose.msra.mxu0 %v990
        %1008 = vmatprep.subr.mxu0 0.0
        %1009 = vmatpush1.xpose.msra.mxu0 %v992
        %1010 = vmatprep.subr.mxu0 0.0
        %1011 = vmatpush1.xpose.msra.mxu0 %v994
        %1012 = vmatprep.subr.mxu0 0.0
        %1013 = vmatpush1.xpose.msra.mxu0 %v996
        %1014 = vmatprep.subr.mxu0 0.0
        %1015 = vmatpush1.xpose.msra.mxu0 %v998
        %1016 = vmatprep.subr.mxu0 0.0
        %1017 = vmatpush1.xpose.msra.mxu0 %v1000
        %1018 = vmatprep.subr.mxu0 0.0
        %1019 = vmatpush1.xpose.msra.mxu0 0.0
        %1020 = vmatprep.subr.mxu0 0.0
        %1021 = vmatpush1.xpose.msra.mxu0 0.0
        %1022 = vmatprep.subr.mxu0 0.0
        %1023 = vmatpush1.xpose.msra.mxu0 0.0
        %1024 = vmatprep.subr.mxu0 0.0
        %1025 = vmatpush1.xpose.msra.mxu0 0.0
        %1026 = vmatprep.subr.mxu0 0.0
        %1027 = vmatpush1.xpose.msra.mxu0 0.0
        %1028 = vmatprep.subr.mxu0 0.0
        %1029 = vmatpush1.xpose.msra.mxu0 0.0
        %1030 = vmatprep.subr.mxu0 0.0
        %1031 = vmatpush1.xpose.msra.mxu0 0.0
        %1032 = vmatprep.subr.mxu0 0.0
        %1033 = vmatpush1.xpose.msra.mxu0 0.0
        %1034 = vmatprep.subr.mxu0 0.0
        %1035 = vmatpush1.xpose.msra.mxu0 0.0
        %1036 = vmatprep.subr.mxu0 0.0
        %1037 = vmatpush1.xpose.msra.mxu0 0.0
        %1038 = vmatprep.subr.mxu0 0.0
        %1039 = vmatpush1.xpose.msra.mxu0 0.0
        %1040 = vmatprep.subr.mxu0 0.0
        %1041 = vmatpush1.xpose.msra.mxu0 0.0
        %1042 = vmatprep.subr.mxu0 0.0
        %1043 = vmatpush1.xpose.msra.mxu0 0.0
        %1044 = vmatprep.subr.mxu0 0.0
        %1045 = vmatpush1.xpose.msra.mxu0 0.0
        %1046 = vmatprep.subr.mxu0 0.0
        %1047 = vmatpush1.xpose.msra.mxu0 0.0
        %1048 = vmatprep.subr.mxu0 0.0
        %1049 = vmatpush1.xpose.msra.mxu0 0.0
        %1050 = vmatprep.subr.mxu0 0.0
        %1051 = vmatpush1.xpose.msra.mxu0 0.0
        %1052 = vmatprep.subr.mxu0 0.0
        %1053 = vmatpush1.xpose.msra.mxu0 0.0
        %1054 = vmatprep.subr.mxu0 0.0
        %1055 = vmatpush1.xpose.msra.mxu0 0.0
        %1056 = vmatprep.subr.mxu0 0.0
        %1057 = vmatpush1.xpose.msra.mxu0 0.0
        %1058 = vmatprep.subr.mxu0 0.0
        %1059 = vmatpush1.xpose.msra.mxu0 0.0
        %1060 = vmatprep.subr.mxu0 0.0
        %1061 = vmatpush1.xpose.msra.mxu0 0.0
        %1062 = vmatprep.subr.mxu0 0.0
        %1063 = vmatpush1.xpose.msra.mxu0 0.0
        %1064 = vmatprep.subr.mxu0 0.0
        %1065 = vmatpush1.xpose.msra.mxu0 0.0
        %1066 = vmatprep.mubr.f32.mxu0 0.0
        %1067 = vmatmul.mubr.f32.gmra.mrb[0].mxu0 %v970
        %v1068 = vpop.f32.mrb[0].mxu0
        %v1069 = vadd.f32 0.0, %v1068
        %v1070 = vpop.f32.mrb[0].mxu0
        %1071 = vmatprep.mubr.f32.mxu0 0.0
        %1072 = vmatmul.mubr.f32.gmra.mrb[0].mxu0 %v972
        %v1073 = vpop.f32.mrb[0].mxu0
        %v1074 = vadd.f32 0.0, %v1073
        %v1075 = vpop.f32.mrb[0].mxu0
        %1076 = vmatprep.mubr.f32.mxu0 0.0
        %1077 = vmatmul.mubr.f32.gmra.mrb[0].mxu0 %v974
        %v1078 = vpop.f32.mrb[0].mxu0
        %v1079 = vadd.f32 0.0, %v1078
        %v1080 = vpop.f32.mrb[0].mxu0
        %1081 = vmatprep.mubr.f32.mxu0 0.0
        %1082 = vmatmul.mubr.f32.gmra.mrb[0].mxu0 %v976
        %v1083 = vpop.f32.mrb[0].mxu0
        %v1084 = vadd.f32 0.0, %v1083
        %v1085 = vpop.f32.mrb[0].mxu0
        %1086 = vmatprep.mubr.f32.mxu0 0.0
        %1087 = vmatmul.mubr.f32.gmra.mrb[0].mxu0 %v978
        %v1088 = vpop.f32.mrb[0].mxu0
        %v1089 = vadd.f32 0.0, %v1088
        %v1090 = vpop.f32.mrb[0].mxu0
        %1091 = vmatprep.mubr.f32.mxu0 0.0
        %1092 = vmatmul.mubr.f32.gmra.mrb[0].mxu0 %v980
        %v1093 = vpop.f32.mrb[0].mxu0
        %v1094 = vadd.f32 0.0, %v1093
        %v1095 = vpop.f32.mrb[0].mxu0
        %1096 = vmatprep.mubr.f32.mxu0 0.0
        %1097 = vmatmul.mubr.f32.gmra.mrb[0].mxu0 %v982
        %v1098 = vpop.f32.mrb[0].mxu0
        %v1099 = vadd.f32 0.0, %v1098
        %v1100 = vpop.f32.mrb[0].mxu0
        %1101 = vmatprep.mubr.f32.mxu0 0.0
        %1102 = vmatmul.mubr.f32.gmra.mrb[0].mxu0 %v984
        %v1103 = vpop.f32.mrb[0].mxu0
        %v1104 = vadd.f32 0.0, %v1103
        %v1105 = vpop.f32.mrb[0].mxu0
        %1106 = vdwg.mxu0
        %v1107 = vmul.f32 %v1069, 0.25
        %v1108 = vmul.f32 %v1074, 0.25
        %v1109 = vmul.f32 %v1079, 0.25
        %v1110 = vmul.f32 %v1084, 0.25
        %v1111 = vmul.f32 %v1089, 0.25
        %v1112 = vmul.f32 %v1094, 0.25
        %v1113 = vmul.f32 %v1099, 0.25
        %v1114 = vmul.f32 %v1104, 0.25
        %v1115 = vsel %vm720, %v1107, -inf
        %1116 = vmax.xlane.f32.xlu0 %v1115
        %v1117 = vpop.xlane.xlu0 %1116
        %v1118 = vsel %vm720, %v1108, -inf
        %1119 = vmax.xlane.f32.xlu0 %v1118
        %v1120 = vpop.xlane.xlu0 %1119
        %v1121 = vsel %vm720, %v1109, -inf
        %1122 = vmax.xlane.f32.xlu0 %v1121
        %v1123 = vpop.xlane.xlu0 %1122
        %v1124 = vsel %vm720, %v1110, -inf
        %1125 = vmax.xlane.f32.xlu0 %v1124
        %v1126 = vpop.xlane.xlu0 %1125
        %v1127 = vsel %vm720, %v1111, -inf
        %1128 = vmax.xlane.f32.xlu0 %v1127
        %v1129 = vpop.xlane.xlu0 %1128
        %v1130 = vsel %vm720, %v1112, -inf
        %1131 = vmax.xlane.f32.xlu0 %v1130
        %v1132 = vpop.xlane.xlu0 %1131
        %v1133 = vsel %vm720, %v1113, -inf
        %1134 = vmax.xlane.f32.xlu0 %v1133
        %v1135 = vpop.xlane.xlu0 %1134
        %v1136 = vsel %vm720, %v1114, -inf
        %1137 = vmax.xlane.f32.xlu0 %v1136
        %v1138 = vpop.xlane.xlu0 %1137
        %v1139 = vsub.f32 %v1107, %v1117
        %v1140 = vsub.f32 %v1108, %v1120
        %v1141 = vsub.f32 %v1109, %v1123
        %v1142 = vsub.f32 %v1110, %v1126
        %v1143 = vsub.f32 %v1111, %v1129
        %v1144 = vsub.f32 %v1112, %v1132
        %v1145 = vsub.f32 %v1113, %v1135
        %v1146 = vsub.f32 %v1114, %v1138
        %v1147 = vmul.f32 %v1139, 1.442695
        %v1148 = vpow.pop %v1147
        %v1149 = vmul.f32 %v1140, 1.442695
        %v1150 = vpow.pop %v1149
        %v1151 = vmul.f32 %v1141, 1.442695
        %v1152 = vpow.pop %v1151
        %v1153 = vmul.f32 %v1142, 1.442695
        %v1154 = vpow.pop %v1153
        %v1155 = vmul.f32 %v1143, 1.442695
        %v1156 = vpow.pop %v1155
        %v1157 = vmul.f32 %v1144, 1.442695
        %v1158 = vpow.pop %v1157
        %v1159 = vmul.f32 %v1145, 1.442695
        %v1160 = vpow.pop %v1159
        %v1161 = vmul.f32 %v1146, 1.442695
        %v1162 = vpow.pop %v1161
        %v1163 = vsel %vm720, %v1148, 0.0
        %1164 = vadd.xlane.f32.xlu0 %v1163
        %v1165 = vpop.xlane.xlu0 %1164
        %v1166 = vsel %vm720, %v1150, 0.0
        %1167 = vadd.xlane.f32.xlu0 %v1166
        %v1168 = vpop.xlane.xlu0 %1167
        %v1169 = vsel %vm720, %v1152, 0.0
        %1170 = vadd.xlane.f32.xlu0 %v1169
        %v1171 = vpop.xlane.xlu0 %1170
        %v1172 = vsel %vm720, %v1154, 0.0
        %1173 = vadd.xlane.f32.xlu0 %v1172
        %v1174 = vpop.xlane.xlu0 %1173
        %v1175 = vsel %vm720, %v1156, 0.0
        %1176 = vadd.xlane.f32.xlu0 %v1175
        %v1177 = vpop.xlane.xlu0 %1176
        %v1178 = vsel %vm720, %v1158, 0.0
        %1179 = vadd.xlane.f32.xlu0 %v1178
        %v1180 = vpop.xlane.xlu0 %1179
        %v1181 = vsel %vm720, %v1160, 0.0
        %1182 = vadd.xlane.f32.xlu0 %v1181
        %v1183 = vpop.xlane.xlu0 %1182
        %v1184 = vsel %vm720, %v1162, 0.0
        %1185 = vadd.xlane.f32.xlu0 %v1184
        %v1186 = vpop.xlane.xlu0 %1185
        %v1187 = vrcp.pop %v1165
        %v1188 = vmul.f32 %v1148, %v1187
        %v1189 = vrcp.pop %v1168
        %v1190 = vmul.f32 %v1150, %v1189
        %v1191 = vrcp.pop %v1171
        %v1192 = vmul.f32 %v1152, %v1191
        %v1193 = vrcp.pop %v1174
        %v1194 = vmul.f32 %v1154, %v1193
        %v1195 = vrcp.pop %v1177
        %v1196 = vmul.f32 %v1156, %v1195
        %v1197 = vrcp.pop %v1180
        %v1198 = vmul.f32 %v1158, %v1197
        %v1199 = vrcp.pop %v1183
        %v1200 = vmul.f32 %v1160, %v1199
        %v1201 = vrcp.pop %v1186
        %v1202 = vmul.f32 %v1162, %v1201
        %1211 = vrot.lane.b32.xlu0 %v506, 96
        %v1212 = vpop.permute.xlu0 %1211
        %1213 = vrot.lane.b32.xlu0 %v512, 96
        %v1214 = vpop.permute.xlu0 %1213
        %1215 = vrot.lane.b32.xlu0 %v518, 96
        %v1216 = vpop.permute.xlu0 %1215
        %1217 = vrot.lane.b32.xlu0 %v524, 96
        %v1218 = vpop.permute.xlu0 %1217
        %1219 = vrot.lane.b32.xlu0 %v530, 96
        %v1220 = vpop.permute.xlu0 %1219
        %1221 = vrot.lane.b32.xlu0 %v536, 96
        %v1222 = vpop.permute.xlu0 %1221
        %1223 = vrot.lane.b32.xlu0 %v542, 96
        %v1224 = vpop.permute.xlu0 %1223
        %1225 = vrot.lane.b32.xlu0 %v548, 96
        %v1226 = vpop.permute.xlu0 %1225
        %v1236 = vsel %vm720, %v1188, 0
        %v1239 = vsel %vm720, %v1190, 0
        %v1242 = vsel %vm720, %v1192, 0
        %v1245 = vsel %vm720, %v1194, 0
        %v1248 = vsel %vm720, %v1196, 0
        %v1251 = vsel %vm720, %v1198, 0
        %v1254 = vsel %vm720, %v1200, 0
        %v1257 = vsel %vm720, %v1202, 0
        %1259 = vmatprep.subr.mxu0 0.0
        %1260 = vmatpush1.msra.mxu0 %v1212
        %1261 = vmatprep.subr.mxu0 0.0
        %1262 = vmatpush1.msra.mxu0 %v1214
        %1263 = vmatprep.subr.mxu0 0.0
        %1264 = vmatpush1.msra.mxu0 %v1216
        %1265 = vmatprep.subr.mxu0 0.0
        %1266 = vmatpush1.msra.mxu0 %v1218
        %1267 = vmatprep.subr.mxu0 0.0
        %1268 = vmatpush1.msra.mxu0 %v1220
        %1269 = vmatprep.subr.mxu0 0.0
        %1270 = vmatpush1.msra.mxu0 %v1222
        %1271 = vmatprep.subr.mxu0 0.0
        %1272 = vmatpush1.msra.mxu0 %v1224
        %1273 = vmatprep.subr.mxu0 0.0
        %1274 = vmatpush1.msra.mxu0 %v1226
        %1275 = vmatprep.subr.mxu0 0.0
        %1276 = vmatpush1.msra.mxu0 0.0
        %1277 = vmatprep.subr.mxu0 0.0
        %1278 = vmatpush1.msra.mxu0 0.0
        %1279 = vmatprep.subr.mxu0 0.0
        %1280 = vmatpush1.msra.mxu0 0.0
        %1281 = vmatprep.subr.mxu0 0.0
        %1282 = vmatpush1.msra.mxu0 0.0
        %1283 = vmatprep.subr.mxu0 0.0
        %1284 = vmatpush1.msra.mxu0 0.0
        %1285 = vmatprep.subr.mxu0 0.0
        %1286 = vmatpush1.msra.mxu0 0.0
        %1287 = vmatprep.subr.mxu0 0.0
        %1288 = vmatpush1.msra.mxu0 0.0
        %1289 = vmatprep.subr.mxu0 0.0
        %1290 = vmatpush1.msra.mxu0 0.0
        %1291 = vmatprep.subr.mxu0 0.0
        %1292 = vmatpush1.msra.mxu0 0.0
        %1293 = vmatprep.subr.mxu0 0.0
        %1294 = vmatpush1.msra.mxu0 0.0
        %1295 = vmatprep.subr.mxu0 0.0
        %1296 = vmatpush1.msra.mxu0 0.0
        %1297 = vmatprep.subr.mxu0 0.0
        %1298 = vmatpush1.msra.mxu0 0.0
        %1299 = vmatprep.subr.mxu0 0.0
        %1300 = vmatpush1.msra.mxu0 0.0
        %1301 = vmatprep.subr.mxu0 0.0
        %1302 = vmatpush1.msra.mxu0 0.0
        %1303 = vmatprep.subr.mxu0 0.0
        %1304 = vmatpush1.msra.mxu0 0.0
        %1305 = vmatprep.subr.mxu0 0.0
        %1306 = vmatpush1.msra.mxu0 0.0
        %1307 = vmatprep.subr.mxu0 0.0
        %1308 = vmatpush1.msra.mxu0 0.0
        %1309 = vmatprep.subr.mxu0 0.0
        %1310 = vmatpush1.msra.mxu0 0.0
        %1311 = vmatprep.subr.mxu0 0.0
        %1312 = vmatpush1.msra.mxu0 0.0
        %1313 = vmatprep.subr.mxu0 0.0
        %1314 = vmatpush1.msra.mxu0 0.0
        %1315 = vmatprep.subr.mxu0 0.0
        %1316 = vmatpush1.msra.mxu0 0.0
        %1317 = vmatprep.subr.mxu0 0.0
        %1318 = vmatpush1.msra.mxu0 0.0
        %1319 = vmatprep.subr.mxu0 0.0
        %1320 = vmatpush1.msra.mxu0 0.0
        %1321 = vmatprep.subr.mxu0 0.0
        %1322 = vmatpush1.msra.mxu0 0.0
        %1323 = vmatprep.mubr.f32.mxu0 0.0
        %1324 = vmatmul.mubr.f32.gmra.mrb[0].mxu0 %v1236
        %v1325 = vpop.f32.mrb[0].mxu0
        %v1326 = vadd.f32 0.0, %v1325
        %v1327 = vpop.f32.mrb[0].mxu0
        %1328 = vmatprep.mubr.f32.mxu0 0.0
        %1329 = vmatmul.mubr.f32.gmra.mrb[0].mxu0 %v1239
        %v1330 = vpop.f32.mrb[0].mxu0
        %v1331 = vadd.f32 0.0, %v1330
        %v1332 = vpop.f32.mrb[0].mxu0
        %1333 = vmatprep.mubr.f32.mxu0 0.0
        %1334 = vmatmul.mubr.f32.gmra.mrb[0].mxu0 %v1242
        %v1335 = vpop.f32.mrb[0].mxu0
        %v1336 = vadd.f32 0.0, %v1335
        %v1337 = vpop.f32.mrb[0].mxu0
        %1338 = vmatprep.mubr.f32.mxu0 0.0
        %1339 = vmatmul.mubr.f32.gmra.mrb[0].mxu0 %v1245
        %v1340 = vpop.f32.mrb[0].mxu0
        %v1341 = vadd.f32 0.0, %v1340
        %v1342 = vpop.f32.mrb[0].mxu0
        %1343 = vmatprep.mubr.f32.mxu0 0.0
        %1344 = vmatmul.mubr.f32.gmra.mrb[0].mxu0 %v1248
        %v1345 = vpop.f32.mrb[0].mxu0
        %v1346 = vadd.f32 0.0, %v1345
        %v1347 = vpop.f32.mrb[0].mxu0
        %1348 = vmatprep.mubr.f32.mxu0 0.0
        %1349 = vmatmul.mubr.f32.gmra.mrb[0].mxu0 %v1251
        %v1350 = vpop.f32.mrb[0].mxu0
        %v1351 = vadd.f32 0.0, %v1350
        %v1352 = vpop.f32.mrb[0].mxu0
        %1353 = vmatprep.mubr.f32.mxu0 0.0
        %1354 = vmatmul.mubr.f32.gmra.mrb[0].mxu0 %v1254
        %v1355 = vpop.f32.mrb[0].mxu0
        %v1356 = vadd.f32 0.0, %v1355
        %v1357 = vpop.f32.mrb[0].mxu0
        %1358 = vmatprep.mubr.f32.mxu0 0.0
        %1359 = vmatmul.mubr.f32.gmra.mrb[0].mxu0 %v1257
        %v1360 = vpop.f32.mrb[0].mxu0
        %v1361 = vadd.f32 0.0, %v1360
        %v1362 = vpop.f32.mrb[0].mxu0
        %1363 = vdwg.mxu0
        %1364 = vrot.lane.b32.xlu0 %v504, 96
        %v1365 = vpop.permute.xlu0 %1364
        %1366 = vrot.lane.b32.xlu0 %v510, 96
        %v1367 = vpop.permute.xlu0 %1366
        %1368 = vrot.lane.b32.xlu0 %v516, 96
        %v1369 = vpop.permute.xlu0 %1368
        %1370 = vrot.lane.b32.xlu0 %v522, 96
        %v1371 = vpop.permute.xlu0 %1370
        %1372 = vrot.lane.b32.xlu0 %v528, 96
        %v1373 = vpop.permute.xlu0 %1372
        %1374 = vrot.lane.b32.xlu0 %v534, 96
        %v1375 = vpop.permute.xlu0 %1374
        %1376 = vrot.lane.b32.xlu0 %v540, 96
        %v1377 = vpop.permute.xlu0 %1376
        %1378 = vrot.lane.b32.xlu0 %v546, 96
        %v1379 = vpop.permute.xlu0 %1378
        %1380 = vrot.lane.b32.xlu0 %v504, 32
        %v1381 = vpop.permute.xlu0 %1380
        %1382 = vrot.lane.b32.xlu0 %v510, 32
        %v1383 = vpop.permute.xlu0 %1382
        %1384 = vrot.lane.b32.xlu0 %v516, 32
        %v1385 = vpop.permute.xlu0 %1384
        %1386 = vrot.lane.b32.xlu0 %v522, 32
        %v1387 = vpop.permute.xlu0 %1386
        %1388 = vrot.lane.b32.xlu0 %v528, 32
        %v1389 = vpop.permute.xlu0 %1388
        %1390 = vrot.lane.b32.xlu0 %v534, 32
        %v1391 = vpop.permute.xlu0 %1390
        %1392 = vrot.lane.b32.xlu0 %v540, 32
        %v1393 = vpop.permute.xlu0 %1392
        %1394 = vrot.lane.b32.xlu0 %v546, 32
        %v1395 = vpop.permute.xlu0 %1394
        %v1396 = vsel %vm574, %v1365, 0
        %v1398 = vsel %vm574, %v1367, 0
        %v1400 = vsel %vm574, %v1369, 0
        %v1402 = vsel %vm574, %v1371, 0
        %v1404 = vsel %vm574, %v1373, 0
        %v1406 = vsel %vm574, %v1375, 0
        %v1408 = vsel %vm574, %v1377, 0
        %v1410 = vsel %vm574, %v1379, 0
        %v1412 = vsel %vm574, %v1381, 0
        %v1414 = vsel %vm574, %v1383, 0
        %v1416 = vsel %vm574, %v1385, 0
        %v1418 = vsel %vm574, %v1387, 0
        %v1420 = vsel %vm574, %v1389, 0
        %v1422 = vsel %vm574, %v1391, 0
        %v1424 = vsel %vm574, %v1393, 0
        %v1426 = vsel %vm574, %v1395, 0
        %1428 = vmatprep.subr.mxu0 0.0
        %1429 = vmatpush1.xpose.msra.mxu0 %v1412
        %1430 = vmatprep.subr.mxu0 0.0
        %1431 = vmatpush1.xpose.msra.mxu0 %v1414
        %1432 = vmatprep.subr.mxu0 0.0
        %1433 = vmatpush1.xpose.msra.mxu0 %v1416
        %1434 = vmatprep.subr.mxu0 0.0
        %1435 = vmatpush1.xpose.msra.mxu0 %v1418
        %1436 = vmatprep.subr.mxu0 0.0
        %1437 = vmatpush1.xpose.msra.mxu0 %v1420
        %1438 = vmatprep.subr.mxu0 0.0
        %1439 = vmatpush1.xpose.msra.mxu0 %v1422
        %1440 = vmatprep.subr.mxu0 0.0
        %1441 = vmatpush1.xpose.msra.mxu0 %v1424
        %1442 = vmatprep.subr.mxu0 0.0
        %1443 = vmatpush1.xpose.msra.mxu0 %v1426
        %1444 = vmatprep.subr.mxu0 0.0
        %1445 = vmatpush1.xpose.msra.mxu0 0.0
        %1446 = vmatprep.subr.mxu0 0.0
        %1447 = vmatpush1.xpose.msra.mxu0 0.0
        %1448 = vmatprep.subr.mxu0 0.0
        %1449 = vmatpush1.xpose.msra.mxu0 0.0
        %1450 = vmatprep.subr.mxu0 0.0
        %1451 = vmatpush1.xpose.msra.mxu0 0.0
        %1452 = vmatprep.subr.mxu0 0.0
        %1453 = vmatpush1.xpose.msra.mxu0 0.0
        %1454 = vmatprep.subr.mxu0 0.0
        %1455 = vmatpush1.xpose.msra.mxu0 0.0
        %1456 = vmatprep.subr.mxu0 0.0
        %1457 = vmatpush1.xpose.msra.mxu0 0.0
        %1458 = vmatprep.subr.mxu0 0.0
        %1459 = vmatpush1.xpose.msra.mxu0 0.0
        %1460 = vmatprep.subr.mxu0 0.0
        %1461 = vmatpush1.xpose.msra.mxu0 0.0
        %1462 = vmatprep.subr.mxu0 0.0
        %1463 = vmatpush1.xpose.msra.mxu0 0.0
        %1464 = vmatprep.subr.mxu0 0.0
        %1465 = vmatpush1.xpose.msra.mxu0 0.0
        %1466 = vmatprep.subr.mxu0 0.0
        %1467 = vmatpush1.xpose.msra.mxu0 0.0
        %1468 = vmatprep.subr.mxu0 0.0
        %1469 = vmatpush1.xpose.msra.mxu0 0.0
        %1470 = vmatprep.subr.mxu0 0.0
        %1471 = vmatpush1.xpose.msra.mxu0 0.0
        %1472 = vmatprep.subr.mxu0 0.0
        %1473 = vmatpush1.xpose.msra.mxu0 0.0
        %1474 = vmatprep.subr.mxu0 0.0
        %1475 = vmatpush1.xpose.msra.mxu0 0.0
        %1476 = vmatprep.subr.mxu0 0.0
        %1477 = vmatpush1.xpose.msra.mxu0 0.0
        %1478 = vmatprep.subr.mxu0 0.0
        %1479 = vmatpush1.xpose.msra.mxu0 0.0
        %1480 = vmatprep.subr.mxu0 0.0
        %1481 = vmatpush1.xpose.msra.mxu0 0.0
        %1482 = vmatprep.subr.mxu0 0.0
        %1483 = vmatpush1.xpose.msra.mxu0 0.0
        %1484 = vmatprep.subr.mxu0 0.0
        %1485 = vmatpush1.xpose.msra.mxu0 0.0
        %1486 = vmatprep.subr.mxu0 0.0
        %1487 = vmatpush1.xpose.msra.mxu0 0.0
        %1488 = vmatprep.subr.mxu0 0.0
        %1489 = vmatpush1.xpose.msra.mxu0 0.0
        %1490 = vmatprep.subr.mxu0 0.0
        %1491 = vmatpush1.xpose.msra.mxu0 0.0
        %1492 = vmatprep.mubr.f32.mxu0 0.0
        %1493 = vmatmul.mubr.f32.gmra.mrb[0].mxu0 %v1396
        %v1494 = vpop.f32.mrb[0].mxu0
        %v1495 = vadd.f32 0.0, %v1494
        %v1496 = vpop.f32.mrb[0].mxu0
        %1497 = vmatprep.mubr.f32.mxu0 0.0
        %1498 = vmatmul.mubr.f32.gmra.mrb[0].mxu0 %v1398
        %v1499 = vpop.f32.mrb[0].mxu0
        %v1500 = vadd.f32 0.0, %v1499
        %v1501 = vpop.f32.mrb[0].mxu0
        %1502 = vmatprep.mubr.f32.mxu0 0.0
        %1503 = vmatmul.mubr.f32.gmra.mrb[0].mxu0 %v1400
        %v1504 = vpop.f32.mrb[0].mxu0
        %v1505 = vadd.f32 0.0, %v1504
        %v1506 = vpop.f32.mrb[0].mxu0
        %1507 = vmatprep.mubr.f32.mxu0 0.0
        %1508 = vmatmul.mubr.f32.gmra.mrb[0].mxu0 %v1402
        %v1509 = vpop.f32.mrb[0].mxu0
        %v1510 = vadd.f32 0.0, %v1509
        %v1511 = vpop.f32.mrb[0].mxu0
        %1512 = vmatprep.mubr.f32.mxu0 0.0
        %1513 = vmatmul.mubr.f32.gmra.mrb[0].mxu0 %v1404
        %v1514 = vpop.f32.mrb[0].mxu0
        %v1515 = vadd.f32 0.0, %v1514
        %v1516 = vpop.f32.mrb[0].mxu0
        %1517 = vmatprep.mubr.f32.mxu0 0.0
        %1518 = vmatmul.mubr.f32.gmra.mrb[0].mxu0 %v1406
        %v1519 = vpop.f32.mrb[0].mxu0
        %v1520 = vadd.f32 0.0, %v1519
        %v1521 = vpop.f32.mrb[0].mxu0
        %1522 = vmatprep.mubr.f32.mxu0 0.0
        %1523 = vmatmul.mubr.f32.gmra.mrb[0].mxu0 %v1408
        %v1524 = vpop.f32.mrb[0].mxu0
        %v1525 = vadd.f32 0.0, %v1524
        %v1526 = vpop.f32.mrb[0].mxu0
        %1527 = vmatprep.mubr.f32.mxu0 0.0
        %1528 = vmatmul.mubr.f32.gmra.mrb[0].mxu0 %v1410
        %v1529 = vpop.f32.mrb[0].mxu0
        %v1530 = vadd.f32 0.0, %v1529
        %v1531 = vpop.f32.mrb[0].mxu0
        %1532 = vdwg.mxu0
        %v1533 = vmul.f32 %v1495, 0.25
        %v1534 = vmul.f32 %v1500, 0.25
        %v1535 = vmul.f32 %v1505, 0.25
        %v1536 = vmul.f32 %v1510, 0.25
        %v1537 = vmul.f32 %v1515, 0.25
        %v1538 = vmul.f32 %v1520, 0.25
        %v1539 = vmul.f32 %v1525, 0.25
        %v1540 = vmul.f32 %v1530, 0.25
        %v1541 = vsel %vm720, %v1533, -inf
        %1542 = vmax.xlane.f32.xlu0 %v1541
        %v1543 = vpop.xlane.xlu0 %1542
        %v1544 = vsel %vm720, %v1534, -inf
        %1545 = vmax.xlane.f32.xlu0 %v1544
        %v1546 = vpop.xlane.xlu0 %1545
        %v1547 = vsel %vm720, %v1535, -inf
        %1548 = vmax.xlane.f32.xlu0 %v1547
        %v1549 = vpop.xlane.xlu0 %1548
        %v1550 = vsel %vm720, %v1536, -inf
        %1551 = vmax.xlane.f32.xlu0 %v1550
        %v1552 = vpop.xlane.xlu0 %1551
        %v1553 = vsel %vm720, %v1537, -inf
        %1554 = vmax.xlane.f32.xlu0 %v1553
        %v1555 = vpop.xlane.xlu0 %1554
        %v1556 = vsel %vm720, %v1538, -inf
        %1557 = vmax.xlane.f32.xlu0 %v1556
        %v1558 = vpop.xlane.xlu0 %1557
        %v1559 = vsel %vm720, %v1539, -inf
        %1560 = vmax.xlane.f32.xlu0 %v1559
        %v1561 = vpop.xlane.xlu0 %1560
        %v1562 = vsel %vm720, %v1540, -inf
        %1563 = vmax.xlane.f32.xlu0 %v1562
        %v1564 = vpop.xlane.xlu0 %1563
        %v1565 = vsub.f32 %v1533, %v1543
        %v1566 = vsub.f32 %v1534, %v1546
        %v1567 = vsub.f32 %v1535, %v1549
        %v1568 = vsub.f32 %v1536, %v1552
        %v1569 = vsub.f32 %v1537, %v1555
        %v1570 = vsub.f32 %v1538, %v1558
        %v1571 = vsub.f32 %v1539, %v1561
        %v1572 = vsub.f32 %v1540, %v1564
        %v1573 = vmul.f32 %v1565, 1.442695
        %v1574 = vpow.pop %v1573
        %v1575 = vmul.f32 %v1566, 1.442695
        %v1576 = vpow.pop %v1575
        %v1577 = vmul.f32 %v1567, 1.442695
        %v1578 = vpow.pop %v1577
        %v1579 = vmul.f32 %v1568, 1.442695
        %v1580 = vpow.pop %v1579
        %v1581 = vmul.f32 %v1569, 1.442695
        %v1582 = vpow.pop %v1581
        %v1583 = vmul.f32 %v1570, 1.442695
        %v1584 = vpow.pop %v1583
        %v1585 = vmul.f32 %v1571, 1.442695
        %v1586 = vpow.pop %v1585
        %v1587 = vmul.f32 %v1572, 1.442695
        %v1588 = vpow.pop %v1587
        %v1589 = vsel %vm720, %v1574, 0.0
        %1590 = vadd.xlane.f32.xlu0 %v1589
        %v1591 = vpop.xlane.xlu0 %1590
        %v1592 = vsel %vm720, %v1576, 0.0
        %1593 = vadd.xlane.f32.xlu0 %v1592
        %v1594 = vpop.xlane.xlu0 %1593
        %v1595 = vsel %vm720, %v1578, 0.0
        %1596 = vadd.xlane.f32.xlu0 %v1595
        %v1597 = vpop.xlane.xlu0 %1596
        %v1598 = vsel %vm720, %v1580, 0.0
        %1599 = vadd.xlane.f32.xlu0 %v1598
        %v1600 = vpop.xlane.xlu0 %1599
        %v1601 = vsel %vm720, %v1582, 0.0
        %1602 = vadd.xlane.f32.xlu0 %v1601
        %v1603 = vpop.xlane.xlu0 %1602
        %v1604 = vsel %vm720, %v1584, 0.0
        %1605 = vadd.xlane.f32.xlu0 %v1604
        %v1606 = vpop.xlane.xlu0 %1605
        %v1607 = vsel %vm720, %v1586, 0.0
        %1608 = vadd.xlane.f32.xlu0 %v1607
        %v1609 = vpop.xlane.xlu0 %1608
        %v1610 = vsel %vm720, %v1588, 0.0
        %1611 = vadd.xlane.f32.xlu0 %v1610
        %v1612 = vpop.xlane.xlu0 %1611
        %v1613 = vrcp.pop %v1591
        %v1614 = vmul.f32 %v1574, %v1613
        %v1615 = vrcp.pop %v1594
        %v1616 = vmul.f32 %v1576, %v1615
        %v1617 = vrcp.pop %v1597
        %v1618 = vmul.f32 %v1578, %v1617
        %v1619 = vrcp.pop %v1600
        %v1620 = vmul.f32 %v1580, %v1619
        %v1621 = vrcp.pop %v1603
        %v1622 = vmul.f32 %v1582, %v1621
        %v1623 = vrcp.pop %v1606
        %v1624 = vmul.f32 %v1584, %v1623
        %v1625 = vrcp.pop %v1609
        %v1626 = vmul.f32 %v1586, %v1625
        %v1627 = vrcp.pop %v1612
        %v1628 = vmul.f32 %v1588, %v1627
        %1629 = vrot.lane.b32.xlu0 %v506, 64
        %v1630 = vpop.permute.xlu0 %1629
        %1631 = vrot.lane.b32.xlu0 %v512, 64
        %v1632 = vpop.permute.xlu0 %1631
        %1633 = vrot.lane.b32.xlu0 %v518, 64
        %v1634 = vpop.permute.xlu0 %1633
        %1635 = vrot.lane.b32.xlu0 %v524, 64
        %v1636 = vpop.permute.xlu0 %1635
        %1637 = vrot.lane.b32.xlu0 %v530, 64
        %v1638 = vpop.permute.xlu0 %1637
        %1639 = vrot.lane.b32.xlu0 %v536, 64
        %v1640 = vpop.permute.xlu0 %1639
        %1641 = vrot.lane.b32.xlu0 %v542, 64
        %v1642 = vpop.permute.xlu0 %1641
        %1643 = vrot.lane.b32.xlu0 %v548, 64
        %v1644 = vpop.permute.xlu0 %1643
        %v1654 = vsel %vm720, %v1614, 0
        %v1657 = vsel %vm720, %v1616, 0
        %v1660 = vsel %vm720, %v1618, 0
        %v1663 = vsel %vm720, %v1620, 0
        %v1666 = vsel %vm720, %v1622, 0
        %v1669 = vsel %vm720, %v1624, 0
        %v1672 = vsel %vm720, %v1626, 0
        %v1675 = vsel %vm720, %v1628, 0
        %1677 = vmatprep.subr.mxu0 0.0
        %1678 = vmatpush1.msra.mxu0 %v1630
        %1679 = vmatprep.subr.mxu0 0.0
        %1680 = vmatpush1.msra.mxu0 %v1632
        %1681 = vmatprep.subr.mxu0 0.0
        %1682 = vmatpush1.msra.mxu0 %v1634
        %1683 = vmatprep.subr.mxu0 0.0
        %1684 = vmatpush1.msra.mxu0 %v1636
        %1685 = vmatprep.subr.mxu0 0.0
        %1686 = vmatpush1.msra.mxu0 %v1638
        %1687 = vmatprep.subr.mxu0 0.0
        %1688 = vmatpush1.msra.mxu0 %v1640
        %1689 = vmatprep.subr.mxu0 0.0
        %1690 = vmatpush1.msra.mxu0 %v1642
        %1691 = vmatprep.subr.mxu0 0.0
        %1692 = vmatpush1.msra.mxu0 %v1644
        %1693 = vmatprep.subr.mxu0 0.0
        %1694 = vmatpush1.msra.mxu0 0.0
        %1695 = vmatprep.subr.mxu0 0.0
        %1696 = vmatpush1.msra.mxu0 0.0
        %1697 = vmatprep.subr.mxu0 0.0
        %1698 = vmatpush1.msra.mxu0 0.0
        %1699 = vmatprep.subr.mxu0 0.0
        %1700 = vmatpush1.msra.mxu0 0.0
        %1701 = vmatprep.subr.mxu0 0.0
        %1702 = vmatpush1.msra.mxu0 0.0
        %1703 = vmatprep.subr.mxu0 0.0
        %1704 = vmatpush1.msra.mxu0 0.0
        %1705 = vmatprep.subr.mxu0 0.0
        %1706 = vmatpush1.msra.mxu0 0.0
        %1707 = vmatprep.subr.mxu0 0.0
        %1708 = vmatpush1.msra.mxu0 0.0
        %1709 = vmatprep.subr.mxu0 0.0
        %1710 = vmatpush1.msra.mxu0 0.0
        %1711 = vmatprep.subr.mxu0 0.0
        %1712 = vmatpush1.msra.mxu0 0.0
        %1713 = vmatprep.subr.mxu0 0.0
        %1714 = vmatpush1.msra.mxu0 0.0
        %1715 = vmatprep.subr.mxu0 0.0
        %1716 = vmatpush1.msra.mxu0 0.0
        %1717 = vmatprep.subr.mxu0 0.0
        %1718 = vmatpush1.msra.mxu0 0.0
        %1719 = vmatprep.subr.mxu0 0.0
        %1720 = vmatpush1.msra.mxu0 0.0
        %1721 = vmatprep.subr.mxu0 0.0
        %1722 = vmatpush1.msra.mxu0 0.0
        %1723 = vmatprep.subr.mxu0 0.0
        %1724 = vmatpush1.msra.mxu0 0.0
        %1725 = vmatprep.subr.mxu0 0.0
        %1726 = vmatpush1.msra.mxu0 0.0
        %1727 = vmatprep.subr.mxu0 0.0
        %1728 = vmatpush1.msra.mxu0 0.0
        %1729 = vmatprep.subr.mxu0 0.0
        %1730 = vmatpush1.msra.mxu0 0.0
        %1731 = vmatprep.subr.mxu0 0.0
        %1732 = vmatpush1.msra.mxu0 0.0
        %1733 = vmatprep.subr.mxu0 0.0
        %1734 = vmatpush1.msra.mxu0 0.0
        %1735 = vmatprep.subr.mxu0 0.0
        %1736 = vmatpush1.msra.mxu0 0.0
        %1737 = vmatprep.subr.mxu0 0.0
        %1738 = vmatpush1.msra.mxu0 0.0
        %1739 = vmatprep.subr.mxu0 0.0
        %1740 = vmatpush1.msra.mxu0 0.0
        %1741 = vmatprep.mubr.f32.mxu0 0.0
        %1742 = vmatmul.mubr.f32.gmra.mrb[0].mxu0 %v1654
        %v1743 = vpop.f32.mrb[0].mxu0
        %v1744 = vadd.f32 0.0, %v1743
        %v1745 = vpop.f32.mrb[0].mxu0
        %1746 = vmatprep.mubr.f32.mxu0 0.0
        %1747 = vmatmul.mubr.f32.gmra.mrb[0].mxu0 %v1657
        %v1748 = vpop.f32.mrb[0].mxu0
        %v1749 = vadd.f32 0.0, %v1748
        %v1750 = vpop.f32.mrb[0].mxu0
        %1751 = vmatprep.mubr.f32.mxu0 0.0
        %1752 = vmatmul.mubr.f32.gmra.mrb[0].mxu0 %v1660
        %v1753 = vpop.f32.mrb[0].mxu0
        %v1754 = vadd.f32 0.0, %v1753
        %v1755 = vpop.f32.mrb[0].mxu0
        %1756 = vmatprep.mubr.f32.mxu0 0.0
        %1757 = vmatmul.mubr.f32.gmra.mrb[0].mxu0 %v1663
        %v1758 = vpop.f32.mrb[0].mxu0
        %v1759 = vadd.f32 0.0, %v1758
        %v1760 = vpop.f32.mrb[0].mxu0
        %1761 = vmatprep.mubr.f32.mxu0 0.0
        %1762 = vmatmul.mubr.f32.gmra.mrb[0].mxu0 %v1666
        %v1763 = vpop.f32.mrb[0].mxu0
        %v1764 = vadd.f32 0.0, %v1763
        %v1765 = vpop.f32.mrb[0].mxu0
        %1766 = vmatprep.mubr.f32.mxu0 0.0
        %1767 = vmatmul.mubr.f32.gmra.mrb[0].mxu0 %v1669
        %v1768 = vpop.f32.mrb[0].mxu0
        %v1769 = vadd.f32 0.0, %v1768
        %v1770 = vpop.f32.mrb[0].mxu0
        %1771 = vmatprep.mubr.f32.mxu0 0.0
        %1772 = vmatmul.mubr.f32.gmra.mrb[0].mxu0 %v1672
        %v1773 = vpop.f32.mrb[0].mxu0
        %v1774 = vadd.f32 0.0, %v1773
        %v1775 = vpop.f32.mrb[0].mxu0
        %1776 = vmatprep.mubr.f32.mxu0 0.0
        %1777 = vmatmul.mubr.f32.gmra.mrb[0].mxu0 %v1675
        %v1778 = vpop.f32.mrb[0].mxu0
        %v1779 = vadd.f32 0.0, %v1778
        %v1780 = vpop.f32.mrb[0].mxu0
        %1781 = vdwg.mxu0
        %1782 = vrot.lane.b32.xlu0 %v504, 80
        %v1783 = vpop.permute.xlu0 %1782
        %1784 = vrot.lane.b32.xlu0 %v510, 80
        %v1785 = vpop.permute.xlu0 %1784
        %1786 = vrot.lane.b32.xlu0 %v516, 80
        %v1787 = vpop.permute.xlu0 %1786
        %1788 = vrot.lane.b32.xlu0 %v522, 80
        %v1789 = vpop.permute.xlu0 %1788
        %1790 = vrot.lane.b32.xlu0 %v528, 80
        %v1791 = vpop.permute.xlu0 %1790
        %1792 = vrot.lane.b32.xlu0 %v534, 80
        %v1793 = vpop.permute.xlu0 %1792
        %1794 = vrot.lane.b32.xlu0 %v540, 80
        %v1795 = vpop.permute.xlu0 %1794
        %1796 = vrot.lane.b32.xlu0 %v546, 80
        %v1797 = vpop.permute.xlu0 %1796
        %1798 = vrot.lane.b32.xlu0 %v504, 16
        %v1799 = vpop.permute.xlu0 %1798
        %1800 = vrot.lane.b32.xlu0 %v510, 16
        %v1801 = vpop.permute.xlu0 %1800
        %1802 = vrot.lane.b32.xlu0 %v516, 16
        %v1803 = vpop.permute.xlu0 %1802
        %1804 = vrot.lane.b32.xlu0 %v522, 16
        %v1805 = vpop.permute.xlu0 %1804
        %1806 = vrot.lane.b32.xlu0 %v528, 16
        %v1807 = vpop.permute.xlu0 %1806
        %1808 = vrot.lane.b32.xlu0 %v534, 16
        %v1809 = vpop.permute.xlu0 %1808
        %1810 = vrot.lane.b32.xlu0 %v540, 16
        %v1811 = vpop.permute.xlu0 %1810
        %1812 = vrot.lane.b32.xlu0 %v546, 16
        %v1813 = vpop.permute.xlu0 %1812
        %v1814 = vsel %vm574, %v1783, 0
        %v1816 = vsel %vm574, %v1785, 0
        %v1818 = vsel %vm574, %v1787, 0
        %v1820 = vsel %vm574, %v1789, 0
        %v1822 = vsel %vm574, %v1791, 0
        %v1824 = vsel %vm574, %v1793, 0
        %v1826 = vsel %vm574, %v1795, 0
        %v1828 = vsel %vm574, %v1797, 0
        %v1830 = vsel %vm574, %v1799, 0
        %v1832 = vsel %vm574, %v1801, 0
        %v1834 = vsel %vm574, %v1803, 0
        %v1836 = vsel %vm574, %v1805, 0
        %v1838 = vsel %vm574, %v1807, 0
        %v1840 = vsel %vm574, %v1809, 0
        %v1842 = vsel %vm574, %v1811, 0
        %v1844 = vsel %vm574, %v1813, 0
        %1846 = vmatprep.subr.mxu0 0.0
        %1847 = vmatpush1.xpose.msra.mxu0 %v1830
        %1848 = vmatprep.subr.mxu0 0.0
        %1849 = vmatpush1.xpose.msra.mxu0 %v1832
        %1850 = vmatprep.subr.mxu0 0.0
        %1851 = vmatpush1.xpose.msra.mxu0 %v1834
        %1852 = vmatprep.subr.mxu0 0.0
        %1853 = vmatpush1.xpose.msra.mxu0 %v1836
        %1854 = vmatprep.subr.mxu0 0.0
        %1855 = vmatpush1.xpose.msra.mxu0 %v1838
        %1856 = vmatprep.subr.mxu0 0.0
        %1857 = vmatpush1.xpose.msra.mxu0 %v1840
        %1858 = vmatprep.subr.mxu0 0.0
        %1859 = vmatpush1.xpose.msra.mxu0 %v1842
        %1860 = vmatprep.subr.mxu0 0.0
        %1861 = vmatpush1.xpose.msra.mxu0 %v1844
        %1862 = vmatprep.subr.mxu0 0.0
        %1863 = vmatpush1.xpose.msra.mxu0 0.0
        %1864 = vmatprep.subr.mxu0 0.0
        %1865 = vmatpush1.xpose.msra.mxu0 0.0
        %1866 = vmatprep.subr.mxu0 0.0
        %1867 = vmatpush1.xpose.msra.mxu0 0.0
        %1868 = vmatprep.subr.mxu0 0.0
        %1869 = vmatpush1.xpose.msra.mxu0 0.0
        %1870 = vmatprep.subr.mxu0 0.0
        %1871 = vmatpush1.xpose.msra.mxu0 0.0
        %1872 = vmatprep.subr.mxu0 0.0
        %1873 = vmatpush1.xpose.msra.mxu0 0.0
        %1874 = vmatprep.subr.mxu0 0.0
        %1875 = vmatpush1.xpose.msra.mxu0 0.0
        %1876 = vmatprep.subr.mxu0 0.0
        %1877 = vmatpush1.xpose.msra.mxu0 0.0
        %1878 = vmatprep.subr.mxu0 0.0
        %1879 = vmatpush1.xpose.msra.mxu0 0.0
        %1880 = vmatprep.subr.mxu0 0.0
        %1881 = vmatpush1.xpose.msra.mxu0 0.0
        %1882 = vmatprep.subr.mxu0 0.0
        %1883 = vmatpush1.xpose.msra.mxu0 0.0
        %1884 = vmatprep.subr.mxu0 0.0
        %1885 = vmatpush1.xpose.msra.mxu0 0.0
        %1886 = vmatprep.subr.mxu0 0.0
        %1887 = vmatpush1.xpose.msra.mxu0 0.0
        %1888 = vmatprep.subr.mxu0 0.0
        %1889 = vmatpush1.xpose.msra.mxu0 0.0
        %1890 = vmatprep.subr.mxu0 0.0
        %1891 = vmatpush1.xpose.msra.mxu0 0.0
        %1892 = vmatprep.subr.mxu0 0.0
        %1893 = vmatpush1.xpose.msra.mxu0 0.0
        %1894 = vmatprep.subr.mxu0 0.0
        %1895 = vmatpush1.xpose.msra.mxu0 0.0
        %1896 = vmatprep.subr.mxu0 0.0
        %1897 = vmatpush1.xpose.msra.mxu0 0.0
        %1898 = vmatprep.subr.mxu0 0.0
        %1899 = vmatpush1.xpose.msra.mxu0 0.0
        %1900 = vmatprep.subr.mxu0 0.0
        %1901 = vmatpush1.xpose.msra.mxu0 0.0
        %1902 = vmatprep.subr.mxu0 0.0
        %1903 = vmatpush1.xpose.msra.mxu0 0.0
        %1904 = vmatprep.subr.mxu0 0.0
        %1905 = vmatpush1.xpose.msra.mxu0 0.0
        %1906 = vmatprep.subr.mxu0 0.0
        %1907 = vmatpush1.xpose.msra.mxu0 0.0
        %1908 = vmatprep.subr.mxu0 0.0
        %1909 = vmatpush1.xpose.msra.mxu0 0.0
        %1910 = vmatprep.mubr.f32.mxu0 0.0
        %1911 = vmatmul.mubr.f32.gmra.mrb[0].mxu0 %v1814
        %v1912 = vpop.f32.mrb[0].mxu0
        %v1913 = vadd.f32 0.0, %v1912
        %v1914 = vpop.f32.mrb[0].mxu0
        %1915 = vmatprep.mubr.f32.mxu0 0.0
        %1916 = vmatmul.mubr.f32.gmra.mrb[0].mxu0 %v1816
        %v1917 = vpop.f32.mrb[0].mxu0
        %v1918 = vadd.f32 0.0, %v1917
        %v1919 = vpop.f32.mrb[0].mxu0
        %1920 = vmatprep.mubr.f32.mxu0 0.0
        %1921 = vmatmul.mubr.f32.gmra.mrb[0].mxu0 %v1818
        %v1922 = vpop.f32.mrb[0].mxu0
        %v1923 = vadd.f32 0.0, %v1922
        %v1924 = vpop.f32.mrb[0].mxu0
        %1925 = vmatprep.mubr.f32.mxu0 0.0
        %1926 = vmatmul.mubr.f32.gmra.mrb[0].mxu0 %v1820
        %v1927 = vpop.f32.mrb[0].mxu0
        %v1928 = vadd.f32 0.0, %v1927
        %v1929 = vpop.f32.mrb[0].mxu0
        %1930 = vmatprep.mubr.f32.mxu0 0.0
        %1931 = vmatmul.mubr.f32.gmra.mrb[0].mxu0 %v1822
        %v1932 = vpop.f32.mrb[0].mxu0
        %v1933 = vadd.f32 0.0, %v1932
        %v1934 = vpop.f32.mrb[0].mxu0
        %1935 = vmatprep.mubr.f32.mxu0 0.0
        %1936 = vmatmul.mubr.f32.gmra.mrb[0].mxu0 %v1824
        %v1937 = vpop.f32.mrb[0].mxu0
        %v1938 = vadd.f32 0.0, %v1937
        %v1939 = vpop.f32.mrb[0].mxu0
        %1940 = vmatprep.mubr.f32.mxu0 0.0
        %1941 = vmatmul.mubr.f32.gmra.mrb[0].mxu0 %v1826
        %v1942 = vpop.f32.mrb[0].mxu0
        %v1943 = vadd.f32 0.0, %v1942
        %v1944 = vpop.f32.mrb[0].mxu0
        %1945 = vmatprep.mubr.f32.mxu0 0.0
        %1946 = vmatmul.mubr.f32.gmra.mrb[0].mxu0 %v1828
        %v1947 = vpop.f32.mrb[0].mxu0
        %v1948 = vadd.f32 0.0, %v1947
        %v1949 = vpop.f32.mrb[0].mxu0
        %1950 = vdwg.mxu0
        %v1951 = vmul.f32 %v1913, 0.25
        %v1952 = vmul.f32 %v1918, 0.25
        %v1953 = vmul.f32 %v1923, 0.25
        %v1954 = vmul.f32 %v1928, 0.25
        %v1955 = vmul.f32 %v1933, 0.25
        %v1956 = vmul.f32 %v1938, 0.25
        %v1957 = vmul.f32 %v1943, 0.25
        %v1958 = vmul.f32 %v1948, 0.25
        %v1959 = vsel %vm720, %v1951, -inf
        %1960 = vmax.xlane.f32.xlu0 %v1959
        %v1961 = vpop.xlane.xlu0 %1960
        %v1962 = vsel %vm720, %v1952, -inf
        %1963 = vmax.xlane.f32.xlu0 %v1962
        %v1964 = vpop.xlane.xlu0 %1963
        %v1965 = vsel %vm720, %v1953, -inf
        %1966 = vmax.xlane.f32.xlu0 %v1965
        %v1967 = vpop.xlane.xlu0 %1966
        %v1968 = vsel %vm720, %v1954, -inf
        %1969 = vmax.xlane.f32.xlu0 %v1968
        %v1970 = vpop.xlane.xlu0 %1969
        %v1971 = vsel %vm720, %v1955, -inf
        %1972 = vmax.xlane.f32.xlu0 %v1971
        %v1973 = vpop.xlane.xlu0 %1972
        %v1974 = vsel %vm720, %v1956, -inf
        %1975 = vmax.xlane.f32.xlu0 %v1974
        %v1976 = vpop.xlane.xlu0 %1975
        %v1977 = vsel %vm720, %v1957, -inf
        %1978 = vmax.xlane.f32.xlu0 %v1977
        %v1979 = vpop.xlane.xlu0 %1978
        %v1980 = vsel %vm720, %v1958, -inf
        %1981 = vmax.xlane.f32.xlu0 %v1980
        %v1982 = vpop.xlane.xlu0 %1981
        %v1983 = vsub.f32 %v1951, %v1961
        %v1984 = vsub.f32 %v1952, %v1964
        %v1985 = vsub.f32 %v1953, %v1967
        %v1986 = vsub.f32 %v1954, %v1970
        %v1987 = vsub.f32 %v1955, %v1973
        %v1988 = vsub.f32 %v1956, %v1976
        %v1989 = vsub.f32 %v1957, %v1979
        %v1990 = vsub.f32 %v1958, %v1982
        %v1991 = vmul.f32 %v1983, 1.442695
        %v1992 = vpow.pop %v1991
        %v1993 = vmul.f32 %v1984, 1.442695
        %v1994 = vpow.pop %v1993
        %v1995 = vmul.f32 %v1985, 1.442695
        %v1996 = vpow.pop %v1995
        %v1997 = vmul.f32 %v1986, 1.442695
        %v1998 = vpow.pop %v1997
        %v1999 = vmul.f32 %v1987, 1.442695
        %v2000 = vpow.pop %v1999
        %v2001 = vmul.f32 %v1988, 1.442695
        %v2002 = vpow.pop %v2001
        %v2003 = vmul.f32 %v1989, 1.442695
        %v2004 = vpow.pop %v2003
        %v2005 = vmul.f32 %v1990, 1.442695
        %v2006 = vpow.pop %v2005
        %v2007 = vsel %vm720, %v1992, 0.0
        %2008 = vadd.xlane.f32.xlu0 %v2007
        %v2009 = vpop.xlane.xlu0 %2008
        %v2010 = vsel %vm720, %v1994, 0.0
        %2011 = vadd.xlane.f32.xlu0 %v2010
        %v2012 = vpop.xlane.xlu0 %2011
        %v2013 = vsel %vm720, %v1996, 0.0
        %2014 = vadd.xlane.f32.xlu0 %v2013
        %v2015 = vpop.xlane.xlu0 %2014
        %v2016 = vsel %vm720, %v1998, 0.0
        %2017 = vadd.xlane.f32.xlu0 %v2016
        %v2018 = vpop.xlane.xlu0 %2017
        %v2019 = vsel %vm720, %v2000, 0.0
        %2020 = vadd.xlane.f32.xlu0 %v2019
        %v2021 = vpop.xlane.xlu0 %2020
        %v2022 = vsel %vm720, %v2002, 0.0
        %2023 = vadd.xlane.f32.xlu0 %v2022
        %v2024 = vpop.xlane.xlu0 %2023
        %v2025 = vsel %vm720, %v2004, 0.0
        %2026 = vadd.xlane.f32.xlu0 %v2025
        %v2027 = vpop.xlane.xlu0 %2026
        %v2028 = vsel %vm720, %v2006, 0.0
        %2029 = vadd.xlane.f32.xlu0 %v2028
        %v2030 = vpop.xlane.xlu0 %2029
        %v2031 = vrcp.pop %v2009
        %v2032 = vmul.f32 %v1992, %v2031
        %v2033 = vrcp.pop %v2012
        %v2034 = vmul.f32 %v1994, %v2033
        %v2035 = vrcp.pop %v2015
        %v2036 = vmul.f32 %v1996, %v2035
        %v2037 = vrcp.pop %v2018
        %v2038 = vmul.f32 %v1998, %v2037
        %v2039 = vrcp.pop %v2021
        %v2040 = vmul.f32 %v2000, %v2039
        %v2041 = vrcp.pop %v2024
        %v2042 = vmul.f32 %v2002, %v2041
        %v2043 = vrcp.pop %v2027
        %v2044 = vmul.f32 %v2004, %v2043
        %v2045 = vrcp.pop %v2030
        %v2046 = vmul.f32 %v2006, %v2045
        %2047 = vrot.lane.b32.xlu0 %v506, 32
        %v2048 = vpop.permute.xlu0 %2047
        %2049 = vrot.lane.b32.xlu0 %v512, 32
        %v2050 = vpop.permute.xlu0 %2049
        %2051 = vrot.lane.b32.xlu0 %v518, 32
        %v2052 = vpop.permute.xlu0 %2051
        %2053 = vrot.lane.b32.xlu0 %v524, 32
        %v2054 = vpop.permute.xlu0 %2053
        %2055 = vrot.lane.b32.xlu0 %v530, 32
        %v2056 = vpop.permute.xlu0 %2055
        %2057 = vrot.lane.b32.xlu0 %v536, 32
        %v2058 = vpop.permute.xlu0 %2057
        %2059 = vrot.lane.b32.xlu0 %v542, 32
        %v2060 = vpop.permute.xlu0 %2059
        %2061 = vrot.lane.b32.xlu0 %v548, 32
        %v2062 = vpop.permute.xlu0 %2061
        %v2072 = vsel %vm720, %v2032, 0
        %v2075 = vsel %vm720, %v2034, 0
        %v2078 = vsel %vm720, %v2036, 0
        %v2081 = vsel %vm720, %v2038, 0
        %v2084 = vsel %vm720, %v2040, 0
        %v2087 = vsel %vm720, %v2042, 0
        %v2090 = vsel %vm720, %v2044, 0
        %v2093 = vsel %vm720, %v2046, 0
        %2095 = vmatprep.subr.mxu0 0.0
        %2096 = vmatpush1.msra.mxu0 %v2048
        %2097 = vmatprep.subr.mxu0 0.0
        %2098 = vmatpush1.msra.mxu0 %v2050
        %2099 = vmatprep.subr.mxu0 0.0
        %2100 = vmatpush1.msra.mxu0 %v2052
        %2101 = vmatprep.subr.mxu0 0.0
        %2102 = vmatpush1.msra.mxu0 %v2054
        %2103 = vmatprep.subr.mxu0 0.0
        %2104 = vmatpush1.msra.mxu0 %v2056
        %2105 = vmatprep.subr.mxu0 0.0
        %2106 = vmatpush1.msra.mxu0 %v2058
        %2107 = vmatprep.subr.mxu0 0.0
        %2108 = vmatpush1.msra.mxu0 %v2060
        %2109 = vmatprep.subr.mxu0 0.0
        %2110 = vmatpush1.msra.mxu0 %v2062
        %2111 = vmatprep.subr.mxu0 0.0
        %2112 = vmatpush1.msra.mxu0 0.0
        %2113 = vmatprep.subr.mxu0 0.0
        %2114 = vmatpush1.msra.mxu0 0.0
        %2115 = vmatprep.subr.mxu0 0.0
        %2116 = vmatpush1.msra.mxu0 0.0
        %2117 = vmatprep.subr.mxu0 0.0
        %2118 = vmatpush1.msra.mxu0 0.0
        %2119 = vmatprep.subr.mxu0 0.0
        %2120 = vmatpush1.msra.mxu0 0.0
        %2121 = vmatprep.subr.mxu0 0.0
        %2122 = vmatpush1.msra.mxu0 0.0
        %2123 = vmatprep.subr.mxu0 0.0
        %2124 = vmatpush1.msra.mxu0 0.0
        %2125 = vmatprep.subr.mxu0 0.0
        %2126 = vmatpush1.msra.mxu0 0.0
        %2127 = vmatprep.subr.mxu0 0.0
        %2128 = vmatpush1.msra.mxu0 0.0
        %2129 = vmatprep.subr.mxu0 0.0
        %2130 = vmatpush1.msra.mxu0 0.0
        %2131 = vmatprep.subr.mxu0 0.0
        %2132 = vmatpush1.msra.mxu0 0.0
        %2133 = vmatprep.subr.mxu0 0.0
        %2134 = vmatpush1.msra.mxu0 0.0
        %2135 = vmatprep.subr.mxu0 0.0
        %2136 = vmatpush1.msra.mxu0 0.0
        %2137 = vmatprep.subr.mxu0 0.0
        %2138 = vmatpush1.msra.mxu0 0.0
        %2139 = vmatprep.subr.mxu0 0.0
        %2140 = vmatpush1.msra.mxu0 0.0
        %2141 = vmatprep.subr.mxu0 0.0
        %2142 = vmatpush1.msra.mxu0 0.0
        %2143 = vmatprep.subr.mxu0 0.0
        %2144 = vmatpush1.msra.mxu0 0.0
        %2145 = vmatprep.subr.mxu0 0.0
        %2146 = vmatpush1.msra.mxu0 0.0
        %2147 = vmatprep.subr.mxu0 0.0
        %2148 = vmatpush1.msra.mxu0 0.0
        %2149 = vmatprep.subr.mxu0 0.0
        %2150 = vmatpush1.msra.mxu0 0.0
        %2151 = vmatprep.subr.mxu0 0.0
        %2152 = vmatpush1.msra.mxu0 0.0
        %2153 = vmatprep.subr.mxu0 0.0
        %2154 = vmatpush1.msra.mxu0 0.0
        %2155 = vmatprep.subr.mxu0 0.0
        %2156 = vmatpush1.msra.mxu0 0.0
        %2157 = vmatprep.subr.mxu0 0.0
        %2158 = vmatpush1.msra.mxu0 0.0
        %2159 = vmatprep.mubr.f32.mxu0 0.0
        %2160 = vmatmul.mubr.f32.gmra.mrb[0].mxu0 %v2072
        %v2161 = vpop.f32.mrb[0].mxu0
        %v2162 = vadd.f32 0.0, %v2161
        %v2163 = vpop.f32.mrb[0].mxu0
        %2164 = vmatprep.mubr.f32.mxu0 0.0
        %2165 = vmatmul.mubr.f32.gmra.mrb[0].mxu0 %v2075
        %v2166 = vpop.f32.mrb[0].mxu0
        %v2167 = vadd.f32 0.0, %v2166
        %v2168 = vpop.f32.mrb[0].mxu0
        %2169 = vmatprep.mubr.f32.mxu0 0.0
        %2170 = vmatmul.mubr.f32.gmra.mrb[0].mxu0 %v2078
        %v2171 = vpop.f32.mrb[0].mxu0
        %v2172 = vadd.f32 0.0, %v2171
        %v2173 = vpop.f32.mrb[0].mxu0
        %2174 = vmatprep.mubr.f32.mxu0 0.0
        %2175 = vmatmul.mubr.f32.gmra.mrb[0].mxu0 %v2081
        %v2176 = vpop.f32.mrb[0].mxu0
        %v2177 = vadd.f32 0.0, %v2176
        %v2178 = vpop.f32.mrb[0].mxu0
        %2179 = vmatprep.mubr.f32.mxu0 0.0
        %2180 = vmatmul.mubr.f32.gmra.mrb[0].mxu0 %v2084
        %v2181 = vpop.f32.mrb[0].mxu0
        %v2182 = vadd.f32 0.0, %v2181
        %v2183 = vpop.f32.mrb[0].mxu0
        %2184 = vmatprep.mubr.f32.mxu0 0.0
        %2185 = vmatmul.mubr.f32.gmra.mrb[0].mxu0 %v2087
        %v2186 = vpop.f32.mrb[0].mxu0
        %v2187 = vadd.f32 0.0, %v2186
        %v2188 = vpop.f32.mrb[0].mxu0
        %2189 = vmatprep.mubr.f32.mxu0 0.0
        %2190 = vmatmul.mubr.f32.gmra.mrb[0].mxu0 %v2090
        %v2191 = vpop.f32.mrb[0].mxu0
        %v2192 = vadd.f32 0.0, %v2191
        %v2193 = vpop.f32.mrb[0].mxu0
        %2194 = vmatprep.mubr.f32.mxu0 0.0
        %2195 = vmatmul.mubr.f32.gmra.mrb[0].mxu0 %v2093
        %v2196 = vpop.f32.mrb[0].mxu0
        %v2197 = vadd.f32 0.0, %v2196
        %v2198 = vpop.f32.mrb[0].mxu0
        %2199 = vdwg.mxu0
        %2208 = vrot.lane.b32.xlu0 %v1326, 32
        %v2209 = vpop.permute.xlu0 %2208
        %2210 = vrot.lane.b32.xlu0 %v1331, 32
        %v2211 = vpop.permute.xlu0 %2210
        %2212 = vrot.lane.b32.xlu0 %v1336, 32
        %v2213 = vpop.permute.xlu0 %2212
        %2214 = vrot.lane.b32.xlu0 %v1341, 32
        %v2215 = vpop.permute.xlu0 %2214
        %2216 = vrot.lane.b32.xlu0 %v1346, 32
        %v2217 = vpop.permute.xlu0 %2216
        %2218 = vrot.lane.b32.xlu0 %v1351, 32
        %v2219 = vpop.permute.xlu0 %2218
        %2220 = vrot.lane.b32.xlu0 %v1356, 32
        %v2221 = vpop.permute.xlu0 %2220
        %2222 = vrot.lane.b32.xlu0 %v1361, 32
        %v2223 = vpop.permute.xlu0 %2222
        %2240 = vrot.lane.b32.xlu0 %v1744, 64
        %v2241 = vpop.permute.xlu0 %2240
        %2242 = vrot.lane.b32.xlu0 %v1749, 64
        %v2243 = vpop.permute.xlu0 %2242
        %2244 = vrot.lane.b32.xlu0 %v1754, 64
        %v2245 = vpop.permute.xlu0 %2244
        %2246 = vrot.lane.b32.xlu0 %v1759, 64
        %v2247 = vpop.permute.xlu0 %2246
        %2248 = vrot.lane.b32.xlu0 %v1764, 64
        %v2249 = vpop.permute.xlu0 %2248
        %2250 = vrot.lane.b32.xlu0 %v1769, 64
        %v2251 = vpop.permute.xlu0 %2250
        %2252 = vrot.lane.b32.xlu0 %v1774, 64
        %v2253 = vpop.permute.xlu0 %2252
        %2254 = vrot.lane.b32.xlu0 %v1779, 64
        %v2255 = vpop.permute.xlu0 %2254
        %2272 = vrot.lane.b32.xlu0 %v2162, 96
        %v2273 = vpop.permute.xlu0 %2272
        %2274 = vrot.lane.b32.xlu0 %v2167, 96
        %v2275 = vpop.permute.xlu0 %2274
        %2276 = vrot.lane.b32.xlu0 %v2172, 96
        %v2277 = vpop.permute.xlu0 %2276
        %2278 = vrot.lane.b32.xlu0 %v2177, 96
        %v2279 = vpop.permute.xlu0 %2278
        %2280 = vrot.lane.b32.xlu0 %v2182, 96
        %v2281 = vpop.permute.xlu0 %2280
        %2282 = vrot.lane.b32.xlu0 %v2187, 96
        %v2283 = vpop.permute.xlu0 %2282
        %2284 = vrot.lane.b32.xlu0 %v2192, 96
        %v2285 = vpop.permute.xlu0 %2284
        %2286 = vrot.lane.b32.xlu0 %v2197, 96
        %v2287 = vpop.permute.xlu0 %2286
        %vm2296 = vcmask 261120
        %v2297 = vsel %vm2296, %v900, %v2209
        %v2298 = vsel %vm2296, %v905, %v2211
        %v2299 = vsel %vm2296, %v910, %v2213
        %v2300 = vsel %vm2296, %v915, %v2215
        %v2301 = vsel %vm2296, %v920, %v2217
        %v2302 = vsel %vm2296, %v925, %v2219
        %v2303 = vsel %vm2296, %v930, %v2221
        %v2304 = vsel %vm2296, %v935, %v2223
        %v2305 = vsel %vm720, %v2297, %v2241
        %v2306 = vsel %vm720, %v2298, %v2243
        %v2307 = vsel %vm720, %v2299, %v2245
        %v2308 = vsel %vm720, %v2300, %v2247
        %v2309 = vsel %vm720, %v2301, %v2249
        %v2310 = vsel %vm720, %v2302, %v2251
        %v2311 = vsel %vm720, %v2303, %v2253
        %v2312 = vsel %vm720, %v2304, %v2255
        %vm2313 = vcmask 785408
        %v2314 = vsel %vm2313, %v2305, %v2273
        %v2315 = vsel %vm2313, %v2306, %v2275
        %v2316 = vsel %vm2313, %v2307, %v2277
        %v2317 = vsel %vm2313, %v2308, %v2279
        %v2318 = vsel %vm2313, %v2309, %v2281
        %v2319 = vsel %vm2313, %v2310, %v2283
        %v2320 = vsel %vm2313, %v2311, %v2285
        %v2321 = vsel %vm2313, %v2312, %v2287
        %2322 = vst [vmem:[#allocation2] sm:$0xff] 0.0
        %2323 = vst [vmem:[#allocation2 + $0x8] sm:$0x3] 0.0
        %2324 = vst [vmem:[#allocation2 + $0x10] sm:$0xff] 0.0
        %2325 = vst [vmem:[#allocation2 + $0x18] sm:$0x3] 0.0
        %2326 = vst [vmem:[#allocation2 + $0x20] sm:$0xff] 0.0
        %2327 = vst [vmem:[#allocation2 + $0x28] sm:$0x3] 0.0
        %2328 = vst [vmem:[#allocation2 + $0x30] sm:$0xff] 0.0
        %2329 = vst [vmem:[#allocation2 + $0x38] sm:$0x3] 0.0
        %2330 = vst [vmem:[#allocation2 + $0x40] sm:$0xff] 0.0
        %2331 = vst [vmem:[#allocation2 + $0x48] sm:$0x3] 0.0
        %2332 = vst [vmem:[#allocation2 + $0x50] sm:$0xff] 0.0
        %2333 = vst [vmem:[#allocation2 + $0x58] sm:$0x3] 0.0
        %2334 = vst [vmem:[#allocation2 + $0x60] sm:$0xff] 0.0
        %2335 = vst [vmem:[#allocation2 + $0x68] sm:$0x3] 0.0
        %2336 = vst [vmem:[#allocation2 + $0x70] sm:$0xff] 0.0
        %2337 = vst [vmem:[#allocation2 + $0x78] sm:$0x3] 0.0
        %2338 = vst [vmem:[#allocation2 + $0x80] sm:$0xff] 0.0
        %2339 = vst [vmem:[#allocation2 + $0x88] sm:$0x3] 0.0
        %2340 = vst [vmem:[#allocation2 + $0x90] sm:$0xff] 0.0
        %2341 = vst [vmem:[#allocation2 + $0x98] sm:$0x3] 0.0
        %s2342 = scalar_lea.vmem [#allocation2], 16
        %2343 = vst [vmem:[%s2342 + $0x1] sm:$0xff] %v506
        %2344 = vst [vmem:[%s2342 + $0x11] sm:$0xff] %v512
        %2345 = vst [vmem:[%s2342 + $0x21] sm:$0xff] %v518
        %2346 = vst [vmem:[%s2342 + $0x31] sm:$0xff] %v524
        %2347 = vst [vmem:[%s2342 + $0x41] sm:$0xff] %v530
        %2348 = vst [vmem:[%s2342 + $0x51] sm:$0xff] %v536
        %2349 = vst [vmem:[%s2342 + $0x61] sm:$0xff] %v542
        %2350 = vst [vmem:[%s2342 + $0x71] sm:$0xff] %v548
        %v2351 = vld [vmem:[%s3] sm:$0x1]
        %v2352 = vld [vmem:[#allocation2] sm:$0xff]
        %v2353 = vld [vmem:[#allocation2 + $0x10] sm:$0xff]
        %v2354 = vld [vmem:[#allocation2 + $0x20] sm:$0xff]
        %v2355 = vld [vmem:[#allocation2 + $0x30] sm:$0xff]
        %v2356 = vld [vmem:[#allocation2 + $0x40] sm:$0xff]
        %v2357 = vld [vmem:[#allocation2 + $0x50] sm:$0xff]
        %v2358 = vld [vmem:[#allocation2 + $0x60] sm:$0xff]
        %v2359 = vld [vmem:[#allocation2 + $0x70] sm:$0xff]
        %v2360 = vlaneseq
        %v2361 = vshrl.u32 %v2360, 7
        %v2362 = vsub.s32 0, %v2361
        %v2363 = vrot.slane %v2351, %v2362
        %v2364 = vmul.f32 %v2352, %v2363
        %v2365 = vmul.f32 %v2353, %v2363
        %v2366 = vmul.f32 %v2354, %v2363
        %v2367 = vmul.f32 %v2355, %v2363
        %v2368 = vmul.f32 %v2356, %v2363
        %v2369 = vmul.f32 %v2357, %v2363
        %v2370 = vmul.f32 %v2358, %v2363
        %v2371 = vmul.f32 %v2359, %v2363
        %v2372 = vadd.f32 %v2364, 0.0
        %v2373 = vadd.f32 %v2365, 0.0
        %v2374 = vadd.f32 %v2366, 0.0
        %v2375 = vadd.f32 %v2367, 0.0
        %v2376 = vadd.f32 %v2368, 0.0
        %v2377 = vadd.f32 %v2369, 0.0
        %v2378 = vadd.f32 %v2370, 0.0
        %v2379 = vadd.f32 %v2371, 0.0
        %v2380 = vld [vmem:[%s3 + $0x1] sm:$0x1]
        %v2381 = vld [vmem:[#allocation2 + $0x1] sm:$0xff]
        %v2382 = vld [vmem:[#allocation2 + $0x11] sm:$0xff]
        %v2383 = vld [vmem:[#allocation2 + $0x21] sm:$0xff]
        %v2384 = vld [vmem:[#allocation2 + $0x31] sm:$0xff]
        %v2385 = vld [vmem:[#allocation2 + $0x41] sm:$0xff]
        %v2386 = vld [vmem:[#allocation2 + $0x51] sm:$0xff]
        %v2387 = vld [vmem:[#allocation2 + $0x61] sm:$0xff]
        %v2388 = vld [vmem:[#allocation2 + $0x71] sm:$0xff]
        %v2389 = vlaneseq
        %v2390 = vshrl.u32 %v2389, 7
        %v2391 = vsub.s32 0, %v2390
        %v2392 = vrot.slane %v2380, %v2391
        %v2393 = vmul.f32 %v2381, %v2392
        %v2394 = vmul.f32 %v2382, %v2392
        %v2395 = vmul.f32 %v2383, %v2392
        %v2396 = vmul.f32 %v2384, %v2392
        %v2397 = vmul.f32 %v2385, %v2392
        %v2398 = vmul.f32 %v2386, %v2392
        %v2399 = vmul.f32 %v2387, %v2392
        %v2400 = vmul.f32 %v2388, %v2392
        %v2401 = vadd.f32 %v2372, %v2393
        %v2402 = vadd.f32 %v2373, %v2394
        %v2403 = vadd.f32 %v2374, %v2395
        %v2404 = vadd.f32 %v2375, %v2396
        %v2405 = vadd.f32 %v2376, %v2397
        %v2406 = vadd.f32 %v2377, %v2398
        %v2407 = vadd.f32 %v2378, %v2399
        %v2408 = vadd.f32 %v2379, %v2400
        %v2409 = vld [vmem:[%s3 + $0x2] sm:$0x1]
        %v2410 = vld [vmem:[#allocation2 + $0x2] sm:$0xff]
        %v2411 = vld [vmem:[#allocation2 + $0x12] sm:$0xff]
        %v2412 = vld [vmem:[#allocation2 + $0x22] sm:$0xff]
        %v2413 = vld [vmem:[#allocation2 + $0x32] sm:$0xff]
        %v2414 = vld [vmem:[#allocation2 + $0x42] sm:$0xff]
        %v2415 = vld [vmem:[#allocation2 + $0x52] sm:$0xff]
        %v2416 = vld [vmem:[#allocation2 + $0x62] sm:$0xff]
        %v2417 = vld [vmem:[#allocation2 + $0x72] sm:$0xff]
        %v2418 = vlaneseq
        %v2419 = vshrl.u32 %v2418, 7
        %v2420 = vsub.s32 0, %v2419
        %v2421 = vrot.slane %v2409, %v2420
        %v2422 = vmul.f32 %v2410, %v2421
        %v2423 = vmul.f32 %v2411, %v2421
        %v2424 = vmul.f32 %v2412, %v2421
        %v2425 = vmul.f32 %v2413, %v2421
        %v2426 = vmul.f32 %v2414, %v2421
        %v2427 = vmul.f32 %v2415, %v2421
        %v2428 = vmul.f32 %v2416, %v2421
        %v2429 = vmul.f32 %v2417, %v2421
        %v2430 = vadd.f32 %v2401, %v2422
        %v2431 = vadd.f32 %v2402, %v2423
        %v2432 = vadd.f32 %v2403, %v2424
        %v2433 = vadd.f32 %v2404, %v2425
        %v2434 = vadd.f32 %v2405, %v2426
        %v2435 = vadd.f32 %v2406, %v2427
        %v2436 = vadd.f32 %v2407, %v2428
        %v2437 = vadd.f32 %v2408, %v2429
        %v2438 = vld [vmem:[%s3 + $0x3] sm:$0x1]
        %v2439 = vld [vmem:[%s2342] sm:$0xff]
        %v2440 = vld [vmem:[%s2342 + $0x10] sm:$0xff]
        %v2441 = vld [vmem:[%s2342 + $0x20] sm:$0xff]
        %v2442 = vld [vmem:[%s2342 + $0x30] sm:$0xff]
        %v2443 = vld [vmem:[%s2342 + $0x40] sm:$0xff]
        %v2444 = vld [vmem:[%s2342 + $0x50] sm:$0xff]
        %v2445 = vld [vmem:[%s2342 + $0x60] sm:$0xff]
        %v2446 = vld [vmem:[%s2342 + $0x70] sm:$0xff]
        %v2447 = vlaneseq
        %v2448 = vshrl.u32 %v2447, 7
        %v2449 = vsub.s32 0, %v2448
        %v2450 = vrot.slane %v2438, %v2449
        %v2451 = vmul.f32 %v2439, %v2450
        %v2452 = vmul.f32 %v2440, %v2450
        %v2453 = vmul.f32 %v2441, %v2450
        %v2454 = vmul.f32 %v2442, %v2450
        %v2455 = vmul.f32 %v2443, %v2450
        %v2456 = vmul.f32 %v2444, %v2450
        %v2457 = vmul.f32 %v2445, %v2450
        %v2458 = vmul.f32 %v2446, %v2450
        %v2459 = vadd.f32 %v2430, %v2451
        %v2460 = vadd.f32 %v2431, %v2452
        %v2461 = vadd.f32 %v2432, %v2453
        %v2462 = vadd.f32 %v2433, %v2454
        %v2463 = vadd.f32 %v2434, %v2455
        %v2464 = vadd.f32 %v2435, %v2456
        %v2465 = vadd.f32 %v2436, %v2457
        %v2466 = vadd.f32 %v2437, %v2458
        %v2467 = vld [vmem:[%s3 + $0x4] sm:$0x1]
        %v2468 = vld [vmem:[%s2342 + $0x1] sm:$0xff]
        %v2469 = vld [vmem:[%s2342 + $0x11] sm:$0xff]
        %v2470 = vld [vmem:[%s2342 + $0x21] sm:$0xff]
        %v2471 = vld [vmem:[%s2342 + $0x31] sm:$0xff]
        %v2472 = vld [vmem:[%s2342 + $0x41] sm:$0xff]
        %v2473 = vld [vmem:[%s2342 + $0x51] sm:$0xff]
        %v2474 = vld [vmem:[%s2342 + $0x61] sm:$0xff]
        %v2475 = vld [vmem:[%s2342 + $0x71] sm:$0xff]
        %v2476 = vlaneseq
        %v2477 = vshrl.u32 %v2476, 7
        %v2478 = vsub.s32 0, %v2477
        %v2479 = vrot.slane %v2467, %v2478
        %v2480 = vmul.f32 %v2468, %v2479
        %v2481 = vmul.f32 %v2469, %v2479
        %v2482 = vmul.f32 %v2470, %v2479
        %v2483 = vmul.f32 %v2471, %v2479
        %v2484 = vmul.f32 %v2472, %v2479
        %v2485 = vmul.f32 %v2473, %v2479
        %v2486 = vmul.f32 %v2474, %v2479
        %v2487 = vmul.f32 %v2475, %v2479
        %v2488 = vadd.f32 %v2459, %v2480
        %v2489 = vadd.f32 %v2460, %v2481
        %v2490 = vadd.f32 %v2461, %v2482
        %v2491 = vadd.f32 %v2462, %v2483
        %v2492 = vadd.f32 %v2463, %v2484
        %v2493 = vadd.f32 %v2464, %v2485
        %v2494 = vadd.f32 %v2465, %v2486
        %v2495 = vadd.f32 %v2466, %v2487
        %v2496 = vld [vmem:[%s3 + $0x5] sm:$0x1]
        %v2497 = vld [vmem:[%s2342 + $0x2] sm:$0xff]
        %v2498 = vld [vmem:[%s2342 + $0x12] sm:$0xff]
        %v2499 = vld [vmem:[%s2342 + $0x22] sm:$0xff]
        %v2500 = vld [vmem:[%s2342 + $0x32] sm:$0xff]
        %v2501 = vld [vmem:[%s2342 + $0x42] sm:$0xff]
        %v2502 = vld [vmem:[%s2342 + $0x52] sm:$0xff]
        %v2503 = vld [vmem:[%s2342 + $0x62] sm:$0xff]
        %v2504 = vld [vmem:[%s2342 + $0x72] sm:$0xff]
        %v2505 = vlaneseq
        %v2506 = vshrl.u32 %v2505, 7
        %v2507 = vsub.s32 0, %v2506
        %v2508 = vrot.slane %v2496, %v2507
        %v2509 = vmul.f32 %v2497, %v2508
        %v2510 = vmul.f32 %v2498, %v2508
        %v2511 = vmul.f32 %v2499, %v2508
        %v2512 = vmul.f32 %v2500, %v2508
        %v2513 = vmul.f32 %v2501, %v2508
        %v2514 = vmul.f32 %v2502, %v2508
        %v2515 = vmul.f32 %v2503, %v2508
        %v2516 = vmul.f32 %v2504, %v2508
        %v2517 = vadd.f32 %v2488, %v2509
        %v2518 = vadd.f32 %v2489, %v2510
        %v2519 = vadd.f32 %v2490, %v2511
        %v2520 = vadd.f32 %v2491, %v2512
        %v2521 = vadd.f32 %v2492, %v2513
        %v2522 = vadd.f32 %v2493, %v2514
        %v2523 = vadd.f32 %v2494, %v2515
        %v2524 = vadd.f32 %v2495, %v2516
        %v2525 = vld [vmem:[%s3 + $0x6] sm:$0x1]
        %s2526 = scalar_lea.vmem [#allocation2], 32
        %v2527 = vld [vmem:[%s2526] sm:$0xff]
        %v2528 = vld [vmem:[%s2526 + $0x10] sm:$0xff]
        %v2529 = vld [vmem:[%s2526 + $0x20] sm:$0xff]
        %v2530 = vld [vmem:[%s2526 + $0x30] sm:$0xff]
        %v2531 = vld [vmem:[%s2526 + $0x40] sm:$0xff]
        %v2532 = vld [vmem:[%s2526 + $0x50] sm:$0xff]
        %v2533 = vld [vmem:[%s2526 + $0x60] sm:$0xff]
        %v2534 = vld [vmem:[%s2526 + $0x70] sm:$0xff]
        %v2535 = vlaneseq
        %v2536 = vshrl.u32 %v2535, 7
        %v2537 = vsub.s32 0, %v2536
        %v2538 = vrot.slane %v2525, %v2537
        %v2539 = vmul.f32 %v2527, %v2538
        %v2540 = vmul.f32 %v2528, %v2538
        %v2541 = vmul.f32 %v2529, %v2538
        %v2542 = vmul.f32 %v2530, %v2538
        %v2543 = vmul.f32 %v2531, %v2538
        %v2544 = vmul.f32 %v2532, %v2538
        %v2545 = vmul.f32 %v2533, %v2538
        %v2546 = vmul.f32 %v2534, %v2538
        %v2547 = vadd.f32 %v2517, %v2539
        %v2548 = vadd.f32 %v2518, %v2540
        %v2549 = vadd.f32 %v2519, %v2541
        %v2550 = vadd.f32 %v2520, %v2542
        %v2551 = vadd.f32 %v2521, %v2543
        %v2552 = vadd.f32 %v2522, %v2544
        %v2553 = vadd.f32 %v2523, %v2545
        %v2554 = vadd.f32 %v2524, %v2546
        %v2555 = vld [vmem:[%s3 + $0x7] sm:$0x1]
        %v2556 = vld [vmem:[%s2526 + $0x1] sm:$0xff]
        %v2557 = vld [vmem:[%s2526 + $0x11] sm:$0xff]
        %v2558 = vld [vmem:[%s2526 + $0x21] sm:$0xff]
        %v2559 = vld [vmem:[%s2526 + $0x31] sm:$0xff]
        %v2560 = vld [vmem:[%s2526 + $0x41] sm:$0xff]
        %v2561 = vld [vmem:[%s2526 + $0x51] sm:$0xff]
        %v2562 = vld [vmem:[%s2526 + $0x61] sm:$0xff]
        %v2563 = vld [vmem:[%s2526 + $0x71] sm:$0xff]
        %v2564 = vlaneseq
        %v2565 = vshrl.u32 %v2564, 7
        %v2566 = vsub.s32 0, %v2565
        %v2567 = vrot.slane %v2555, %v2566
        %v2568 = vmul.f32 %v2556, %v2567
        %v2569 = vmul.f32 %v2557, %v2567
        %v2570 = vmul.f32 %v2558, %v2567
        %v2571 = vmul.f32 %v2559, %v2567
        %v2572 = vmul.f32 %v2560, %v2567
        %v2573 = vmul.f32 %v2561, %v2567
        %v2574 = vmul.f32 %v2562, %v2567
        %v2575 = vmul.f32 %v2563, %v2567
        %v2576 = vadd.f32 %v2547, %v2568
        %v2577 = vadd.f32 %v2548, %v2569
        %v2578 = vadd.f32 %v2549, %v2570
        %v2579 = vadd.f32 %v2550, %v2571
        %v2580 = vadd.f32 %v2551, %v2572
        %v2581 = vadd.f32 %v2552, %v2573
        %v2582 = vadd.f32 %v2553, %v2574
        %v2583 = vadd.f32 %v2554, %v2575
        %v2584 = vld [vmem:[%s3 + $0x8] sm:$0x1]
        %v2585 = vld [vmem:[%s2526 + $0x2] sm:$0xff]
        %v2586 = vld [vmem:[%s2526 + $0x12] sm:$0xff]
        %v2587 = vld [vmem:[%s2526 + $0x22] sm:$0xff]
        %v2588 = vld [vmem:[%s2526 + $0x32] sm:$0xff]
        %v2589 = vld [vmem:[%s2526 + $0x42] sm:$0xff]
        %v2590 = vld [vmem:[%s2526 + $0x52] sm:$0xff]
        %v2591 = vld [vmem:[%s2526 + $0x62] sm:$0xff]
        %v2592 = vld [vmem:[%s2526 + $0x72] sm:$0xff]
        %v2593 = vlaneseq
        %v2594 = vshrl.u32 %v2593, 7
        %v2595 = vsub.s32 0, %v2594
        %v2596 = vrot.slane %v2584, %v2595
        %v2597 = vmul.f32 %v2585, %v2596
        %v2598 = vmul.f32 %v2586, %v2596
        %v2599 = vmul.f32 %v2587, %v2596
        %v2600 = vmul.f32 %v2588, %v2596
        %v2601 = vmul.f32 %v2589, %v2596
        %v2602 = vmul.f32 %v2590, %v2596
        %v2603 = vmul.f32 %v2591, %v2596
        %v2604 = vmul.f32 %v2592, %v2596
        %v2605 = vadd.f32 %v2576, %v2597
        %v2606 = vadd.f32 %v2577, %v2598
        %v2607 = vadd.f32 %v2578, %v2599
        %v2608 = vadd.f32 %v2579, %v2600
        %v2609 = vadd.f32 %v2580, %v2601
        %v2610 = vadd.f32 %v2581, %v2602
        %v2611 = vadd.f32 %v2582, %v2603
        %v2612 = vadd.f32 %v2583, %v2604
        %v2613 = vadd.f32 %v2314, %v2605
        %v2614 = vadd.f32 %v2315, %v2606
        %v2615 = vadd.f32 %v2316, %v2607
        %v2616 = vadd.f32 %v2317, %v2608
        %v2617 = vadd.f32 %v2318, %v2609
        %v2618 = vadd.f32 %v2319, %v2610
        %v2619 = vadd.f32 %v2320, %v2611
        %v2620 = vadd.f32 %v2321, %v2612
        %v2621 = vld [vmem:[%s4] sm:$0x1]
        %v2623 = vlaneseq
        %v2624 = vshrl.u32 %v2623, 7
        %v2625 = vsub.s32 0, %v2624
        %v2626 = vrot.slane %v2621, %v2625
        %v2628 = vadd.f32 %v2613, %v2626
        %v2629 = vadd.f32 %v2614, %v2626
        %v2630 = vadd.f32 %v2615, %v2626
        %v2631 = vadd.f32 %v2616, %v2626
        %v2632 = vadd.f32 %v2617, %v2626
        %v2633 = vadd.f32 %v2618, %v2626
        %v2634 = vadd.f32 %v2619, %v2626
        %v2635 = vadd.f32 %v2620, %v2626
        %v2636 = vld [vmem:[%s5] sm:$0xff]
        %v2637 = vld [vmem:[%s5 + $0x8] sm:$0xff]
        %v2638 = vld [vmem:[%s5 + $0x10] sm:$0xff]
        %v2639 = vld [vmem:[%s5 + $0x18] sm:$0xff]
        %v2640 = vld [vmem:[%s5 + $0x20] sm:$0xff]
        %v2641 = vld [vmem:[%s5 + $0x28] sm:$0xff]
        %v2642 = vld [vmem:[%s5 + $0x30] sm:$0xff]
        %v2643 = vld [vmem:[%s5 + $0x38] sm:$0xff]
        %v2644 = vld [vmem:[%s5 + $0x40] sm:$0xff]
        %v2645 = vld [vmem:[%s5 + $0x48] sm:$0xff]
        %v2646 = vld [vmem:[%s5 + $0x50] sm:$0xff]
        %v2647 = vld [vmem:[%s5 + $0x58] sm:$0xff]
        %v2648 = vld [vmem:[%s5 + $0x60] sm:$0xff]
        %v2649 = vld [vmem:[%s5 + $0x68] sm:$0xff]
        %v2650 = vld [vmem:[%s5 + $0x70] sm:$0xff]
        %v2651 = vld [vmem:[%s5 + $0x78] sm:$0xff]
        %v2652 = vld [vmem:[%s6] sm:$0x1]
        %v2654 = vlaneseq
        %v2655 = vshrl.u32 %v2654, 7
        %v2656 = vsub.s32 0, %v2655
        %v2657 = vrot.slane %v2652, %v2656
        %2659 = vmatprep.subr.mxu0 0.0
        %2660 = vmatpush1.msra.mxu0 %v2636
        %2661 = vmatprep.subr.mxu0 0.0
        %2662 = vmatpush1.msra.mxu0 %v2637
        %2663 = vmatprep.subr.mxu0 0.0
        %2664 = vmatpush1.msra.mxu0 %v2638
        %2665 = vmatprep.subr.mxu0 0.0
        %2666 = vmatpush1.msra.mxu0 %v2639
        %2667 = vmatprep.subr.mxu0 0.0
        %2668 = vmatpush1.msra.mxu0 %v2640
        %2669 = vmatprep.subr.mxu0 0.0
        %2670 = vmatpush1.msra.mxu0 %v2641
        %2671 = vmatprep.subr.mxu0 0.0
        %2672 = vmatpush1.msra.mxu0 %v2642
        %2673 = vmatprep.subr.mxu0 0.0
        %2674 = vmatpush1.msra.mxu0 %v2643
        %2675 = vmatprep.subr.mxu0 0.0
        %2676 = vmatpush1.msra.mxu0 %v2644
        %2677 = vmatprep.subr.mxu0 0.0
        %2678 = vmatpush1.msra.mxu0 %v2645
        %2679 = vmatprep.subr.mxu0 0.0
        %2680 = vmatpush1.msra.mxu0 %v2646
        %2681 = vmatprep.subr.mxu0 0.0
        %2682 = vmatpush1.msra.mxu0 %v2647
        %2683 = vmatprep.subr.mxu0 0.0
        %2684 = vmatpush1.msra.mxu0 %v2648
        %2685 = vmatprep.subr.mxu0 0.0
        %2686 = vmatpush1.msra.mxu0 %v2649
        %2687 = vmatprep.subr.mxu0 0.0
        %2688 = vmatpush1.msra.mxu0 %v2650
        %2689 = vmatprep.subr.mxu0 0.0
        %2690 = vmatpush1.msra.mxu0 %v2651
        %2691 = vmatprep.subr.mxu0 0.0
        %2692 = vmatpush1.msra.mxu0 0.0
        %2693 = vmatprep.subr.mxu0 0.0
        %2694 = vmatpush1.msra.mxu0 0.0
        %2695 = vmatprep.subr.mxu0 0.0
        %2696 = vmatpush1.msra.mxu0 0.0
        %2697 = vmatprep.subr.mxu0 0.0
        %2698 = vmatpush1.msra.mxu0 0.0
        %2699 = vmatprep.subr.mxu0 0.0
        %2700 = vmatpush1.msra.mxu0 0.0
        %2701 = vmatprep.subr.mxu0 0.0
        %2702 = vmatpush1.msra.mxu0 0.0
        %2703 = vmatprep.subr.mxu0 0.0
        %2704 = vmatpush1.msra.mxu0 0.0
        %2705 = vmatprep.subr.mxu0 0.0
        %2706 = vmatpush1.msra.mxu0 0.0
        %2707 = vmatprep.subr.mxu0 0.0
        %2708 = vmatpush1.msra.mxu0 0.0
        %2709 = vmatprep.subr.mxu0 0.0
        %2710 = vmatpush1.msra.mxu0 0.0
        %2711 = vmatprep.subr.mxu0 0.0
        %2712 = vmatpush1.msra.mxu0 0.0
        %2713 = vmatprep.subr.mxu0 0.0
        %2714 = vmatpush1.msra.mxu0 0.0
        %2715 = vmatprep.subr.mxu0 0.0
        %2716 = vmatpush1.msra.mxu0 0.0
        %2717 = vmatprep.subr.mxu0 0.0
        %2718 = vmatpush1.msra.mxu0 0.0
        %2719 = vmatprep.subr.mxu0 0.0
        %2720 = vmatpush1.msra.mxu0 0.0
        %2721 = vmatprep.subr.mxu0 0.0
        %2722 = vmatpush1.msra.mxu0 0.0
        %2723 = vmatprep.mubr.f32.mxu0 0.0
        %2724 = vmatmul.mubr.f32.gmra.mrb[0].mxu0 %v2628
        %v2725 = vpop.f32.mrb[0].mxu0
        %v2726 = vadd.f32 %v2657, %v2725
        %v2727 = vpop.f32.mrb[0].mxu0
        %2728 = vmatprep.mubr.f32.mxu0 0.0
        %2729 = vmatmul.mubr.f32.gmra.mrb[0].mxu0 %v2629
        %v2730 = vpop.f32.mrb[0].mxu0
        %v2731 = vadd.f32 %v2657, %v2730
        %v2732 = vpop.f32.mrb[0].mxu0
        %2733 = vmatprep.mubr.f32.mxu0 0.0
        %2734 = vmatmul.mubr.f32.gmra.mrb[0].mxu0 %v2630
        %v2735 = vpop.f32.mrb[0].mxu0
        %v2736 = vadd.f32 %v2657, %v2735
        %v2737 = vpop.f32.mrb[0].mxu0
        %2738 = vmatprep.mubr.f32.mxu0 0.0
        %2739 = vmatmul.mubr.f32.gmra.mrb[0].mxu0 %v2631
        %v2740 = vpop.f32.mrb[0].mxu0
        %v2741 = vadd.f32 %v2657, %v2740
        %v2742 = vpop.f32.mrb[0].mxu0
        %2743 = vmatprep.mubr.f32.mxu0 0.0
        %2744 = vmatmul.mubr.f32.gmra.mrb[0].mxu0 %v2632
        %v2745 = vpop.f32.mrb[0].mxu0
        %v2746 = vadd.f32 %v2657, %v2745
        %v2747 = vpop.f32.mrb[0].mxu0
        %2748 = vmatprep.mubr.f32.mxu0 0.0
        %2749 = vmatmul.mubr.f32.gmra.mrb[0].mxu0 %v2633
        %v2750 = vpop.f32.mrb[0].mxu0
        %v2751 = vadd.f32 %v2657, %v2750
        %v2752 = vpop.f32.mrb[0].mxu0
        %2753 = vmatprep.mubr.f32.mxu0 0.0
        %2754 = vmatmul.mubr.f32.gmra.mrb[0].mxu0 %v2634
        %v2755 = vpop.f32.mrb[0].mxu0
        %v2756 = vadd.f32 %v2657, %v2755
        %v2757 = vpop.f32.mrb[0].mxu0
        %2758 = vmatprep.mubr.f32.mxu0 0.0
        %2759 = vmatmul.mubr.f32.gmra.mrb[0].mxu0 %v2635
        %v2760 = vpop.f32.mrb[0].mxu0
        %v2761 = vadd.f32 %v2657, %v2760
        %v2762 = vpop.f32.mrb[0].mxu0
        %2763 = vdwg.mxu0
        %v2764 = vadd.f32 %v385, %v2726
        %v2765 = vadd.f32 %v386, %v2731
        %v2766 = vadd.f32 %v387, %v2736
        %v2767 = vadd.f32 %v388, %v2741
        %v2768 = vadd.f32 %v389, %v2746
        %v2769 = vadd.f32 %v390, %v2751
        %v2770 = vadd.f32 %v391, %v2756
        %v2771 = vadd.f32 %v392, %v2761
        %v2772 = vld [vmem:[%s7] sm:$0xff]
        %v2773 = vld [vmem:[%s7 + $0x8] sm:$0xff]
        %v2774 = vld [vmem:[%s7 + $0x10] sm:$0xff]
        %v2775 = vld [vmem:[%s7 + $0x18] sm:$0xff]
        %v2776 = vld [vmem:[%s7 + $0x20] sm:$0xff]
        %v2777 = vld [vmem:[%s7 + $0x28] sm:$0xff]
        %v2778 = vld [vmem:[%s7 + $0x30] sm:$0xff]
        %v2779 = vld [vmem:[%s7 + $0x38] sm:$0xff]
        %v2780 = vld [vmem:[%s7 + $0x40] sm:$0xff]
        %v2781 = vld [vmem:[%s7 + $0x48] sm:$0xff]
        %v2782 = vld [vmem:[%s7 + $0x50] sm:$0xff]
        %v2783 = vld [vmem:[%s7 + $0x58] sm:$0xff]
        %v2784 = vld [vmem:[%s7 + $0x60] sm:$0xff]
        %v2785 = vld [vmem:[%s7 + $0x68] sm:$0xff]
        %v2786 = vld [vmem:[%s7 + $0x70] sm:$0xff]
        %v2787 = vld [vmem:[%s7 + $0x78] sm:$0xff]
        %v2788 = vld [vmem:[%s7 + $0x80] sm:$0xff]
        %v2789 = vld [vmem:[%s7 + $0x88] sm:$0xff]
        %v2790 = vld [vmem:[%s7 + $0x90] sm:$0xff]
        %v2791 = vld [vmem:[%s7 + $0x98] sm:$0xff]
        %v2792 = vld [vmem:[%s7 + $0xa0] sm:$0xff]
        %v2793 = vld [vmem:[%s7 + $0xa8] sm:$0xff]
        %v2794 = vld [vmem:[%s7 + $0xb0] sm:$0xff]
        %v2795 = vld [vmem:[%s7 + $0xb8] sm:$0xff]
        %v2796 = vld [vmem:[%s7 + $0xc0] sm:$0xff]
        %v2797 = vld [vmem:[%s7 + $0xc8] sm:$0xff]
        %v2798 = vld [vmem:[%s7 + $0xd0] sm:$0xff]
        %v2799 = vld [vmem:[%s7 + $0xd8] sm:$0xff]
        %v2800 = vld [vmem:[%s7 + $0xe0] sm:$0xff]
        %v2801 = vld [vmem:[%s7 + $0xe8] sm:$0xff]
        %v2802 = vld [vmem:[%s7 + $0xf0] sm:$0xff]
        %v2803 = vld [vmem:[%s7 + $0xf8] sm:$0xff]
        %v2804 = vld [vmem:[%s8] sm:$0x3]
        %v2806 = vlaneseq
        %v2807 = vshrl.u32 %v2806, 7
        %v2808 = vsub.s32 0, %v2807
        %v2809 = vrot.slane %v2804, %v2808
        %v2810 = vlaneseq
        %v2811 = vshrl.u32 %v2810, 7
        %v2812 = vsub.s32 1, %v2811
        %v2813 = vrot.slane %v2804, %v2812
        %2816 = vmatprep.subr.mxu0 %v2773
        %2817 = vmatpush1.msra.mxu0 %v2772
        %2818 = vmatprep.subr.mxu0 %v2775
        %2819 = vmatpush1.msra.mxu0 %v2774
        %2820 = vmatprep.subr.mxu0 %v2777
        %2821 = vmatpush1.msra.mxu0 %v2776
        %2822 = vmatprep.subr.mxu0 %v2779
        %2823 = vmatpush1.msra.mxu0 %v2778
        %2824 = vmatprep.subr.mxu0 %v2781
        %2825 = vmatpush1.msra.mxu0 %v2780
        %2826 = vmatprep.subr.mxu0 %v2783
        %2827 = vmatpush1.msra.mxu0 %v2782
        %2828 = vmatprep.subr.mxu0 %v2785
        %2829 = vmatpush1.msra.mxu0 %v2784
        %2830 = vmatprep.subr.mxu0 %v2787
        %2831 = vmatpush1.msra.mxu0 %v2786
        %2832 = vmatprep.subr.mxu0 %v2789
        %2833 = vmatpush1.msra.mxu0 %v2788
        %2834 = vmatprep.subr.mxu0 %v2791
        %2835 = vmatpush1.msra.mxu0 %v2790
        %2836 = vmatprep.subr.mxu0 %v2793
        %2837 = vmatpush1.msra.mxu0 %v2792
        %2838 = vmatprep.subr.mxu0 %v2795
        %2839 = vmatpush1.msra.mxu0 %v2794
        %2840 = vmatprep.subr.mxu0 %v2797
        %2841 = vmatpush1.msra.mxu0 %v2796
        %2842 = vmatprep.subr.mxu0 %v2799
        %2843 = vmatpush1.msra.mxu0 %v2798
        %2844 = vmatprep.subr.mxu0 %v2801
        %2845 = vmatpush1.msra.mxu0 %v2800
        %2846 = vmatprep.subr.mxu0 %v2803
        %2847 = vmatpush1.msra.mxu0 %v2802
        %2848 = vmatprep.subr.mxu0 0.0
        %2849 = vmatpush1.msra.mxu0 0.0
        %2850 = vmatprep.subr.mxu0 0.0
        %2851 = vmatpush1.msra.mxu0 0.0
        %2852 = vmatprep.subr.mxu0 0.0
        %2853 = vmatpush1.msra.mxu0 0.0
        %2854 = vmatprep.subr.mxu0 0.0
        %2855 = vmatpush1.msra.mxu0 0.0
        %2856 = vmatprep.subr.mxu0 0.0
        %2857 = vmatpush1.msra.mxu0 0.0
        %2858 = vmatprep.subr.mxu0 0.0
        %2859 = vmatpush1.msra.mxu0 0.0
        %2860 = vmatprep.subr.mxu0 0.0
        %2861 = vmatpush1.msra.mxu0 0.0
        %2862 = vmatprep.subr.mxu0 0.0
        %2863 = vmatpush1.msra.mxu0 0.0
        %2864 = vmatprep.subr.mxu0 0.0
        %2865 = vmatpush1.msra.mxu0 0.0
        %2866 = vmatprep.subr.mxu0 0.0
        %2867 = vmatpush1.msra.mxu0 0.0
        %2868 = vmatprep.subr.mxu0 0.0
        %2869 = vmatpush1.msra.mxu0 0.0
        %2870 = vmatprep.subr.mxu0 0.0
        %2871 = vmatpush1.msra.mxu0 0.0
        %2872 = vmatprep.subr.mxu0 0.0
        %2873 = vmatpush1.msra.mxu0 0.0
        %2874 = vmatprep.subr.mxu0 0.0
        %2875 = vmatpush1.msra.mxu0 0.0
        %2876 = vmatprep.subr.mxu0 0.0
        %2877 = vmatpush1.msra.mxu0 0.0
        %2878 = vmatprep.subr.mxu0 0.0
        %2879 = vmatpush1.msra.mxu0 0.0
        %2880 = vmatprep.mubr.f32.mxu0 0.0
        %2881 = vmatmul.mubr.f32.gmra.mrb[0].mxu0 %v2764
        %v2882 = vpop.f32.mrb[0].mxu0
        %v2883 = vadd.f32 %v2809, %v2882
        %v2884 = vpop.f32.mrb[0].mxu0
        %v2885 = vadd.f32 %v2813, %v2884
        %2886 = vmatprep.mubr.f32.mxu0 0.0
        %2887 = vmatmul.mubr.f32.gmra.mrb[0].mxu0 %v2765
        %v2888 = vpop.f32.mrb[0].mxu0
        %v2889 = vadd.f32 %v2809, %v2888
        %v2890 = vpop.f32.mrb[0].mxu0
        %v2891 = vadd.f32 %v2813, %v2890
        %2892 = vmatprep.mubr.f32.mxu0 0.0
        %2893 = vmatmul.mubr.f32.gmra.mrb[0].mxu0 %v2766
        %v2894 = vpop.f32.mrb[0].mxu0
        %v2895 = vadd.f32 %v2809, %v2894
        %v2896 = vpop.f32.mrb[0].mxu0
        %v2897 = vadd.f32 %v2813, %v2896
        %2898 = vmatprep.mubr.f32.mxu0 0.0
        %2899 = vmatmul.mubr.f32.gmra.mrb[0].mxu0 %v2767
        %v2900 = vpop.f32.mrb[0].mxu0
        %v2901 = vadd.f32 %v2809, %v2900
        %v2902 = vpop.f32.mrb[0].mxu0
        %v2903 = vadd.f32 %v2813, %v2902
        %2904 = vmatprep.mubr.f32.mxu0 0.0
        %2905 = vmatmul.mubr.f32.gmra.mrb[0].mxu0 %v2768
        %v2906 = vpop.f32.mrb[0].mxu0
        %v2907 = vadd.f32 %v2809, %v2906
        %v2908 = vpop.f32.mrb[0].mxu0
        %v2909 = vadd.f32 %v2813, %v2908
        %2910 = vmatprep.mubr.f32.mxu0 0.0
        %2911 = vmatmul.mubr.f32.gmra.mrb[0].mxu0 %v2769
        %v2912 = vpop.f32.mrb[0].mxu0
        %v2913 = vadd.f32 %v2809, %v2912
        %v2914 = vpop.f32.mrb[0].mxu0
        %v2915 = vadd.f32 %v2813, %v2914
        %2916 = vmatprep.mubr.f32.mxu0 0.0
        %2917 = vmatmul.mubr.f32.gmra.mrb[0].mxu0 %v2770
        %v2918 = vpop.f32.mrb[0].mxu0
        %v2919 = vadd.f32 %v2809, %v2918
        %v2920 = vpop.f32.mrb[0].mxu0
        %v2921 = vadd.f32 %v2813, %v2920
        %2922 = vmatprep.mubr.f32.mxu0 0.0
        %2923 = vmatmul.mubr.f32.gmra.mrb[0].mxu0 %v2771
        %v2924 = vpop.f32.mrb[0].mxu0
        %v2925 = vadd.f32 %v2809, %v2924
        %v2926 = vpop.f32.mrb[0].mxu0
        %v2927 = vadd.f32 %v2813, %v2926
        %2928 = vdwg.mxu0
        %v2929 = vxor.u32 %v2883, 2147483648
        %v2930 = vxor.u32 %v2885, 2147483648
        %v2931 = vxor.u32 %v2889, 2147483648
        %v2932 = vxor.u32 %v2891, 2147483648
        %v2933 = vxor.u32 %v2895, 2147483648
        %v2934 = vxor.u32 %v2897, 2147483648
        %v2935 = vxor.u32 %v2901, 2147483648
        %v2936 = vxor.u32 %v2903, 2147483648
        %v2937 = vxor.u32 %v2907, 2147483648
        %v2938 = vxor.u32 %v2909, 2147483648
        %v2939 = vxor.u32 %v2913, 2147483648
        %v2940 = vxor.u32 %v2915, 2147483648
        %v2941 = vxor.u32 %v2919, 2147483648
        %v2942 = vxor.u32 %v2921, 2147483648
        %v2943 = vxor.u32 %v2925, 2147483648
        %v2944 = vxor.u32 %v2927, 2147483648
        %v2945 = vmul.f32 %v2929, 1.442695
        %v2946 = vpow.pop %v2945
        %v2947 = vmul.f32 %v2930, 1.442695
        %v2948 = vpow.pop %v2947
        %v2949 = vmul.f32 %v2931, 1.442695
        %v2950 = vpow.pop %v2949
        %v2951 = vmul.f32 %v2932, 1.442695
        %v2952 = vpow.pop %v2951
        %v2953 = vmul.f32 %v2933, 1.442695
        %v2954 = vpow.pop %v2953
        %v2955 = vmul.f32 %v2934, 1.442695
        %v2956 = vpow.pop %v2955
        %v2957 = vmul.f32 %v2935, 1.442695
        %v2958 = vpow.pop %v2957
        %v2959 = vmul.f32 %v2936, 1.442695
        %v2960 = vpow.pop %v2959
        %v2961 = vmul.f32 %v2937, 1.442695
        %v2962 = vpow.pop %v2961
        %v2963 = vmul.f32 %v2938, 1.442695
        %v2964 = vpow.pop %v2963
        %v2965 = vmul.f32 %v2939, 1.442695
        %v2966 = vpow.pop %v2965
        %v2967 = vmul.f32 %v2940, 1.442695
        %v2968 = vpow.pop %v2967
        %v2969 = vmul.f32 %v2941, 1.442695
        %v2970 = vpow.pop %v2969
        %v2971 = vmul.f32 %v2942, 1.442695
        %v2972 = vpow.pop %v2971
        %v2973 = vmul.f32 %v2943, 1.442695
        %v2974 = vpow.pop %v2973
        %v2975 = vmul.f32 %v2944, 1.442695
        %v2976 = vpow.pop %v2975
        %v2977 = vadd.f32 %v2946, 1.0
        %v2978 = vadd.f32 %v2948, 1.0
        %v2979 = vadd.f32 %v2950, 1.0
        %v2980 = vadd.f32 %v2952, 1.0
        %v2981 = vadd.f32 %v2954, 1.0
        %v2982 = vadd.f32 %v2956, 1.0
        %v2983 = vadd.f32 %v2958, 1.0
        %v2984 = vadd.f32 %v2960, 1.0
        %v2985 = vadd.f32 %v2962, 1.0
        %v2986 = vadd.f32 %v2964, 1.0
        %v2987 = vadd.f32 %v2966, 1.0
        %v2988 = vadd.f32 %v2968, 1.0
        %v2989 = vadd.f32 %v2970, 1.0
        %v2990 = vadd.f32 %v2972, 1.0
        %v2991 = vadd.f32 %v2974, 1.0
        %v2992 = vadd.f32 %v2976, 1.0
        %v2993 = vrcp.pop %v2977
        %v2994 = vmul.f32 1.0, %v2993
        %v2995 = vrcp.pop %v2978
        %v2996 = vmul.f32 1.0, %v2995
        %v2997 = vrcp.pop %v2979
        %v2998 = vmul.f32 1.0, %v2997
        %v2999 = vrcp.pop %v2980
        %v3000 = vmul.f32 1.0, %v2999
        %v3001 = vrcp.pop %v2981
        %v3002 = vmul.f32 1.0, %v3001
        %v3003 = vrcp.pop %v2982
        %v3004 = vmul.f32 1.0, %v3003
        %v3005 = vrcp.pop %v2983
        %v3006 = vmul.f32 1.0, %v3005
        %v3007 = vrcp.pop %v2984
        %v3008 = vmul.f32 1.0, %v3007
        %v3009 = vrcp.pop %v2985
        %v3010 = vmul.f32 1.0, %v3009
        %v3011 = vrcp.pop %v2986
        %v3012 = vmul.f32 1.0, %v3011
        %v3013 = vrcp.pop %v2987
        %v3014 = vmul.f32 1.0, %v3013
        %v3015 = vrcp.pop %v2988
        %v3016 = vmul.f32 1.0, %v3015
        %v3017 = vrcp.pop %v2989
        %v3018 = vmul.f32 1.0, %v3017
        %v3019 = vrcp.pop %v2990
        %v3020 = vmul.f32 1.0, %v3019
        %v3021 = vrcp.pop %v2991
        %v3022 = vmul.f32 1.0, %v3021
        %v3023 = vrcp.pop %v2992
        %v3024 = vmul.f32 1.0, %v3023
        %v3025 = vmul.f32 %v2883, %v2994
        %v3026 = vmul.f32 %v2885, %v2996
        %v3027 = vmul.f32 %v2889, %v2998
        %v3028 = vmul.f32 %v2891, %v3000
        %v3029 = vmul.f32 %v2895, %v3002
        %v3030 = vmul.f32 %v2897, %v3004
        %v3031 = vmul.f32 %v2901, %v3006
        %v3032 = vmul.f32 %v2903, %v3008
        %v3033 = vmul.f32 %v2907, %v3010
        %v3034 = vmul.f32 %v2909, %v3012
        %v3035 = vmul.f32 %v2913, %v3014
        %v3036 = vmul.f32 %v2915, %v3016
        %v3037 = vmul.f32 %v2919, %v3018
        %v3038 = vmul.f32 %v2921, %v3020
        %v3039 = vmul.f32 %v2925, %v3022
        %v3040 = vmul.f32 %v2927, %v3024
        %v3041 = vld [vmem:[%s9] sm:$0xff]
        %v3042 = vld [vmem:[%s9 + $0x8] sm:$0xff]
        %v3043 = vld [vmem:[%s9 + $0x10] sm:$0xff]
        %v3044 = vld [vmem:[%s9 + $0x18] sm:$0xff]
        %v3045 = vld [vmem:[%s9 + $0x20] sm:$0xff]
        %v3046 = vld [vmem:[%s9 + $0x28] sm:$0xff]
        %v3047 = vld [vmem:[%s9 + $0x30] sm:$0xff]
        %v3048 = vld [vmem:[%s9 + $0x38] sm:$0xff]
        %v3049 = vld [vmem:[%s9 + $0x40] sm:$0xff]
        %v3050 = vld [vmem:[%s9 + $0x48] sm:$0xff]
        %v3051 = vld [vmem:[%s9 + $0x50] sm:$0xff]
        %v3052 = vld [vmem:[%s9 + $0x58] sm:$0xff]
        %v3053 = vld [vmem:[%s9 + $0x60] sm:$0xff]
        %v3054 = vld [vmem:[%s9 + $0x68] sm:$0xff]
        %v3055 = vld [vmem:[%s9 + $0x70] sm:$0xff]
        %v3056 = vld [vmem:[%s9 + $0x78] sm:$0xff]
        %v3057 = vld [vmem:[%s9 + $0x80] sm:$0xff]
        %v3058 = vld [vmem:[%s9 + $0x88] sm:$0xff]
        %v3059 = vld [vmem:[%s9 + $0x90] sm:$0xff]
        %v3060 = vld [vmem:[%s9 + $0x98] sm:$0xff]
        %v3061 = vld [vmem:[%s9 + $0xa0] sm:$0xff]
        %v3062 = vld [vmem:[%s9 + $0xa8] sm:$0xff]
        %v3063 = vld [vmem:[%s9 + $0xb0] sm:$0xff]
        %v3064 = vld [vmem:[%s9 + $0xb8] sm:$0xff]
        %v3065 = vld [vmem:[%s9 + $0xc0] sm:$0xff]
        %v3066 = vld [vmem:[%s9 + $0xc8] sm:$0xff]
        %v3067 = vld [vmem:[%s9 + $0xd0] sm:$0xff]
        %v3068 = vld [vmem:[%s9 + $0xd8] sm:$0xff]
        %v3069 = vld [vmem:[%s9 + $0xe0] sm:$0xff]
        %v3070 = vld [vmem:[%s9 + $0xe8] sm:$0xff]
        %v3071 = vld [vmem:[%s9 + $0xf0] sm:$0xff]
        %v3072 = vld [vmem:[%s9 + $0xf8] sm:$0xff]
        %v3073 = vld [vmem:[%s10] sm:$0x1]
        %v3075 = vlaneseq
        %v3076 = vshrl.u32 %v3075, 7
        %v3077 = vsub.s32 0, %v3076
        %v3078 = vrot.slane %v3073, %v3077
        %3080 = vmatprep.subr.mxu0 0.0
        %3081 = vmatpush1.msra.mxu0 %v3041
        %3082 = vmatprep.subr.mxu0 0.0
        %3083 = vmatpush1.msra.mxu0 %v3042
        %3084 = vmatprep.subr.mxu0 0.0
        %3085 = vmatpush1.msra.mxu0 %v3043
        %3086 = vmatprep.subr.mxu0 0.0
        %3087 = vmatpush1.msra.mxu0 %v3044
        %3088 = vmatprep.subr.mxu0 0.0
        %3089 = vmatpush1.msra.mxu0 %v3045
        %3090 = vmatprep.subr.mxu0 0.0
        %3091 = vmatpush1.msra.mxu0 %v3046
        %3092 = vmatprep.subr.mxu0 0.0
        %3093 = vmatpush1.msra.mxu0 %v3047
        %3094 = vmatprep.subr.mxu0 0.0
        %3095 = vmatpush1.msra.mxu0 %v3048
        %3096 = vmatprep.subr.mxu0 0.0
        %3097 = vmatpush1.msra.mxu0 %v3049
        %3098 = vmatprep.subr.mxu0 0.0
        %3099 = vmatpush1.msra.mxu0 %v3050
        %3100 = vmatprep.subr.mxu0 0.0
        %3101 = vmatpush1.msra.mxu0 %v3051
        %3102 = vmatprep.subr.mxu0 0.0
        %3103 = vmatpush1.msra.mxu0 %v3052
        %3104 = vmatprep.subr.mxu0 0.0
        %3105 = vmatpush1.msra.mxu0 %v3053
        %3106 = vmatprep.subr.mxu0 0.0
        %3107 = vmatpush1.msra.mxu0 %v3054
        %3108 = vmatprep.subr.mxu0 0.0
        %3109 = vmatpush1.msra.mxu0 %v3055
        %3110 = vmatprep.subr.mxu0 0.0
        %3111 = vmatpush1.msra.mxu0 %v3056
        %3112 = vmatprep.subr.mxu0 0.0
        %3113 = vmatpush1.msra.mxu0 %v3057
        %3114 = vmatprep.subr.mxu0 0.0
        %3115 = vmatpush1.msra.mxu0 %v3058
        %3116 = vmatprep.subr.mxu0 0.0
        %3117 = vmatpush1.msra.mxu0 %v3059
        %3118 = vmatprep.subr.mxu0 0.0
        %3119 = vmatpush1.msra.mxu0 %v3060
        %3120 = vmatprep.subr.mxu0 0.0
        %3121 = vmatpush1.msra.mxu0 %v3061
        %3122 = vmatprep.subr.mxu0 0.0
        %3123 = vmatpush1.msra.mxu0 %v3062
        %3124 = vmatprep.subr.mxu0 0.0
        %3125 = vmatpush1.msra.mxu0 %v3063
        %3126 = vmatprep.subr.mxu0 0.0
        %3127 = vmatpush1.msra.mxu0 %v3064
        %3128 = vmatprep.subr.mxu0 0.0
        %3129 = vmatpush1.msra.mxu0 %v3065
        %3130 = vmatprep.subr.mxu0 0.0
        %3131 = vmatpush1.msra.mxu0 %v3066
        %3132 = vmatprep.subr.mxu0 0.0
        %3133 = vmatpush1.msra.mxu0 %v3067
        %3134 = vmatprep.subr.mxu0 0.0
        %3135 = vmatpush1.msra.mxu0 %v3068
        %3136 = vmatprep.subr.mxu0 0.0
        %3137 = vmatpush1.msra.mxu0 %v3069
        %3138 = vmatprep.subr.mxu0 0.0
        %3139 = vmatpush1.msra.mxu0 %v3070
        %3140 = vmatprep.subr.mxu0 0.0
        %3141 = vmatpush1.msra.mxu0 %v3071
        %3142 = vmatprep.subr.mxu0 0.0
        %3143 = vmatpush1.msra.mxu0 %v3072
        %3144 = vmatprep.mubr.f32.mxu0 %v3026
        %3145 = vmatmul.mubr.f32.gmra.mrb[0].mxu0 %v3025
        %v3146 = vpop.f32.mrb[0].mxu0
        %v3147 = vadd.f32 %v3078, %v3146
        %v3148 = vpop.f32.mrb[0].mxu0
        %3149 = vmatprep.mubr.f32.mxu0 %v3028
        %3150 = vmatmul.mubr.f32.gmra.mrb[0].mxu0 %v3027
        %v3151 = vpop.f32.mrb[0].mxu0
        %v3152 = vadd.f32 %v3078, %v3151
        %v3153 = vpop.f32.mrb[0].mxu0
        %3154 = vmatprep.mubr.f32.mxu0 %v3030
        %3155 = vmatmul.mubr.f32.gmra.mrb[0].mxu0 %v3029
        %v3156 = vpop.f32.mrb[0].mxu0
        %v3157 = vadd.f32 %v3078, %v3156
        %v3158 = vpop.f32.mrb[0].mxu0
        %3159 = vmatprep.mubr.f32.mxu0 %v3032
        %3160 = vmatmul.mubr.f32.gmra.mrb[0].mxu0 %v3031
        %v3161 = vpop.f32.mrb[0].mxu0
        %v3162 = vadd.f32 %v3078, %v3161
        %v3163 = vpop.f32.mrb[0].mxu0
        %3164 = vmatprep.mubr.f32.mxu0 %v3034
        %3165 = vmatmul.mubr.f32.gmra.mrb[0].mxu0 %v3033
        %v3166 = vpop.f32.mrb[0].mxu0
        %v3167 = vadd.f32 %v3078, %v3166
        %v3168 = vpop.f32.mrb[0].mxu0
        %3169 = vmatprep.mubr.f32.mxu0 %v3036
        %3170 = vmatmul.mubr.f32.gmra.mrb[0].mxu0 %v3035
        %v3171 = vpop.f32.mrb[0].mxu0
        %v3172 = vadd.f32 %v3078, %v3171
        %v3173 = vpop.f32.mrb[0].mxu0
        %3174 = vmatprep.mubr.f32.mxu0 %v3038
        %3175 = vmatmul.mubr.f32.gmra.mrb[0].mxu0 %v3037
        %v3176 = vpop.f32.mrb[0].mxu0
        %v3177 = vadd.f32 %v3078, %v3176
        %v3178 = vpop.f32.mrb[0].mxu0
        %3179 = vmatprep.mubr.f32.mxu0 %v3040
        %3180 = vmatmul.mubr.f32.gmra.mrb[0].mxu0 %v3039
        %v3181 = vpop.f32.mrb[0].mxu0
        %v3182 = vadd.f32 %v3078, %v3181
        %v3183 = vpop.f32.mrb[0].mxu0
        %3184 = vdwg.mxu0
        %v3185 = vadd.f32 %v2764, %v3147
        %v3186 = vadd.f32 %v2765, %v3152
        %v3187 = vadd.f32 %v2766, %v3157
        %v3188 = vadd.f32 %v2767, %v3162
        %v3189 = vadd.f32 %v2768, %v3167
        %v3190 = vadd.f32 %v2769, %v3172
        %v3191 = vadd.f32 %v2770, %v3177
        %v3192 = vadd.f32 %v2771, %v3182
        %3193 = vst [vmem:[%s379] sm:$0xff] %v3185
        %3194 = vst [vmem:[%s379 + $0x8] sm:$0xff] %v3186
        %3195 = vst [vmem:[%s379 + $0x10] sm:$0xff] %v3187
        %3196 = vst [vmem:[%s379 + $0x18] sm:$0xff] %v3188
        %3197 = vst [vmem:[%s379 + $0x20] sm:$0xff] %v3189
        %3198 = vst [vmem:[%s379 + $0x28] sm:$0xff] %v3190
        %3199 = vst [vmem:[%s379 + $0x30] sm:$0xff] %v3191
        %3200 = vst [vmem:[%s379 + $0x38] sm:$0xff] %v3192
        %s3201 = sand.u32 %s269, 1
        %s3202 = scalar_lea.sflag [#allocation4], %s3201
        %s3203 = sand.u32 %s269, 1
        %s3204 = smul.addr %s3203, 64
        %s3205 = scalar_lea.vmem [#allocation3], %s3204
        // Predicated region
        $region65: #{psablock_forward.1} parent=63 // pred_check
          %p3206 = pneg %p279
        $region66: #{psablock_forward.1} parent=63 // pred_check_branch
          %3208 = sbr.rel (%p3206) target = $region68
        $region67: #{psablock_forward.1} parent=63 // pred_region
          %s3210 = ssub.s32 1024, 1024
          %3211 = vsyncadd %s3202, %s3210
          %s3212 = smul.addr %s25, 8
          %s3213 = smul.addr %s3212, 128
          %s3214 = scalar_lea.hbm %s11, %s3213
          %s3215 = sshll.u32 %s3205, 4
          %s3216 = int_to_ptr.vmem [resolvable:$true] %s3215
          %3221 = dma.vmem_to_hbm [thread:$0]  %s3216, 1024, %s3214, %s3202, 128, 128, 8
        $region68: #{psablock_forward.1} parent=63 // pred_fallthru
          _
      $region64: #{psablock_forward.1} parent=5 // pred_fallthru
        _
      %p3222 = scmp.le.s32.totalorder 2, %s20
      // Predicated region
      $region69: #{psablock_forward.1} parent=5 // pred_check
        %p3223 = pneg %p3222
      $region70: #{psablock_forward.1} parent=5 // pred_check_branch
        %3225 = sbr.rel (%p3223) target = $region72
      $region71: #{psablock_forward.1} parent=5 // pred_region
        %s3226 = ssub.s32 %s20, 2
        // Predicated region
        $region73: #{psablock_forward.1} parent=71 // pred_check
          %p3227 = pneg %p285
        $region74: #{psablock_forward.1} parent=71 // pred_check_branch
          %3229 = sbr.rel (%p3227) target = $region76
        $region75: #{psablock_forward.1} parent=71 // pred_region
          %s3230 = sand.u32 %s270, 1
          %s3231 = scalar_lea.sflag [#allocation4], %s3230
          %s3232 = sand.u32 %s270, 1
          %s3233 = smul.addr %s3232, 64
          %s3234 = scalar_lea.vmem [#allocation3], %s3233
          %3235 = dma.done %s3231, 1024
        $region76: #{psablock_forward.1} parent=71 // pred_fallthru
          _
      $region72: #{psablock_forward.1} parent=5 // pred_fallthru
        _
    $region6: #{psablock_forward.1} parent=1 // loop_footer
      %s24 = sadd.s32 1, %s20
    $region7: #{psablock_forward.1} parent=1 // loop_footer_branch
      %19 = sbr.rel target = $region3
    $region8: #{psablock_forward.1} parent=1 // loop_exit
      _
    %3236 = vsyncpa [#allocation4], 1
    %s3237 = scalar_lea.sflag [#allocation4], 1
    %3238 = vsyncpa %s3237, 1

</llo_original>
